<compile_context>
chip_gen: v6e
topology: v6e:2x2x1
jax: 0.10.0
libtpu: 0.0.40
codegen_flags: <defaults>
</compile_context>

<pallas_src>
import functools

import jax
import jax.numpy as jnp
from jax.experimental import pallas as pl
from jax.experimental.pallas import tpu as pltpu

LN_EPS = 1e-5                 # torch.nn.LayerNorm default
REZERO_ALPHA = 0.01           # Residual(use_rezero=True, rezero_init=0.01)
SCALE = 30.0                  # EncLayer scale
COMPUTE_DTYPE = jnp.bfloat16  # MXU dtype (f32 accumulation everywhere)
HE_DTYPE = jnp.bfloat16       # h_E residual stream dtype (perf/accuracy tradeoff)
GELU_TANH_APPROX = True       # tanh-GELU -> EUP slot; set False for exact torch erf-GELU


# ----------------------------- in-kernel helpers -----------------------------

def _gelu(x):
    if GELU_TANH_APPROX:
        return jax.nn.gelu(x, approximate=True)
    return 0.5 * x * (1.0 + jax.lax.erf(x * 0.7071067811865476))


def _gelu_exact(x):
    # exact (erf) GELU == torch.nn.GELU(approximate='none'); used by the f32 reference
    return 0.5 * x * (1.0 + jax.lax.erf(x * 0.7071067811865476))


def _layernorm(x, gamma, beta):
    mu = jnp.mean(x, axis=-1, keepdims=True)
    var = jnp.mean((x - mu) ** 2, axis=-1, keepdims=True)
    return (x - mu) * jax.lax.rsqrt(var + LN_EPS) * gamma + beta


def _edge_mlp_first(hv, he2, nb2, w_self_ref, w_en_ref, b_ref, cdt, fuse, K):
    """W1([hV_self ; hE ; gather(hV)]) without materializing the 3H concat.

    fuse=True  : one 2H-deep GEMM (fills the 256-deep MXU on v6e/v7x).
    fuse=False : two split 128-deep GEMMs (v5e's 4x128^2 MXU / unknown chips).
    """
    TN, H = hv.shape
    x_self = jnp.dot(hv.astype(cdt), w_self_ref[...],
                     preferred_element_type=jnp.float32) + b_ref[...]        # (TN,H)
    if fuse:
        hev = jnp.concatenate([he2, nb2], axis=-1)                           # (TN*K,2H) bf16
        x = jnp.dot(hev, w_en_ref[...], preferred_element_type=jnp.float32)
    else:
        x = jnp.dot(he2, w_en_ref[:H, :], preferred_element_type=jnp.float32)
        x = x + jnp.dot(nb2, w_en_ref[H:, :], preferred_element_type=jnp.float32)
    return x.reshape(TN, K, H) + x_self[:, None, :]


# ------------------------------- Pallas kernels -------------------------------

def _enc_node_kernel(hv_ref, he_ref, nbr_ref, ma_ref, mv_ref,
                     w1s_ref, w1en_ref, b1_ref, w2_ref, b2_ref, w3_ref, b3_ref,
                     g1_ref, be1_ref, win_ref, bin_ref, wout_ref, bout_ref,
                     g2_ref, be2_ref, out_ref, *, alpha, cdt, fuse):
    """Edge-message MLP + masked neighbor sum (1/scale folded into W3)
    + rezero residual + LN1 + FFN + rezero residual + LN2 + node mask."""
    hv = hv_ref[0]                      # (TN, H)    f32
    he = he_ref[0]                      # (TN, K, H) bf16
    nb = nbr_ref[0]                     # (TN, K, H) bf16 (gathered neighbors)
    ma = ma_ref[0]                      # (TN, K)    f32
    mv = mv_ref[0]                      # (TN, 1)    f32
    TN, K, H = he.shape

    he2 = he.reshape(TN * K, H).astype(cdt)
    nb2 = nb.reshape(TN * K, H).astype(cdt)

    x = _edge_mlp_first(hv, he2, nb2, w1s_ref, w1en_ref, b1_ref, cdt, fuse, K)
    h1 = _gelu(x).astype(cdt)                                                 # bf16 temp
    h2 = _gelu(jnp.dot(h1.reshape(TN * K, H), w2_ref[...],
                       preferred_element_type=jnp.float32) + b2_ref[...])     # f32 (TN*K,H)

    # Masked sum over K moved in front of W3 (W3 linear, 1/scale folded host-side):
    s = jnp.sum(h2.reshape(TN, K, H) * ma[:, :, None], axis=1)                # (TN, H) f32
    ma_sum = jnp.sum(ma, axis=1, keepdims=True)                               # (TN, 1)
    dh = jnp.dot(s.astype(cdt), w3_ref[...],
                 preferred_element_type=jnp.float32) + b3_ref[...] * ma_sum   # (TN, H)

    hv1 = _layernorm(alpha * dh + hv, g1_ref[...], be1_ref[...])
    ff = _gelu(jnp.dot(hv1.astype(cdt), win_ref[...],
                       preferred_element_type=jnp.float32) + bin_ref[...]).astype(cdt)
    ff = jnp.dot(ff, wout_ref[...], preferred_element_type=jnp.float32) + bout_ref[...]
    hv2 = _layernorm(alpha * ff + hv1, g2_ref[...], be2_ref[...])
    out_ref[0] = (mv * hv2).astype(out_ref.dtype)


def _enc_pair_kernel(hv_ref, he_ref, nbr_ref,
                     w11s_ref, w11en_ref, b11_ref, w12_ref, b12_ref,
                     w13_ref, b13_ref, g3_ref, be3_ref,
                     out_ref, *, alpha, cdt, fuse):
    """h_E = LN3(alpha * W13(gelu(W12(gelu(W11(h_EV))))) + h_E); h_EV built in-kernel."""
    hv = hv_ref[0]                      # (TN, H)    f32  (updated node features)
    he = he_ref[0]                      # (TN, K, H) bf16
    nb = nbr_ref[0]                     # (TN, K, H) bf16
    TN, K, H = he.shape

    he2 = he.reshape(TN * K, H).astype(cdt)
    nb2 = nb.reshape(TN * K, H).astype(cdt)

    x = _edge_mlp_first(hv, he2, nb2, w11s_ref, w11en_ref, b11_ref, cdt, fuse, K)
    h1 = _gelu(x).astype(cdt)
    h2 = _gelu(jnp.dot(h1.reshape(TN * K, H), w12_ref[...],
                       preferred_element_type=jnp.float32) + b12_ref[...]).astype(cdt)
    h3 = jnp.dot(h2, w13_ref[...], preferred_element_type=jnp.float32) + b13_ref[...]
    h3 = h3.reshape(TN, K, H)

    # residual add + LayerNorm statistics in f32; write back bf16
    res = alpha * h3 + he.astype(jnp.float32)
    out_ref[0] = _layernorm(res, g3_ref[...], be3_ref[...]).astype(out_ref.dtype)


# ----------------------------- pallas_call wrappers ----------------------------

def _wspec(shape):
    nd = len(shape)
    return pl.BlockSpec(shape, lambda b, n, _nd=nd: (0,) * _nd)


def _device_kind():
    try:
        return jax.devices()[0].device_kind.lower()
    except Exception:
        return ""


def _vmem_limit_bytes(kind):
    # Physical VMEM: 128 MiB on v5e/v5p/v6e, 64 MiB per TensorCore on v7x.
    if "v7" in kind:
        phys = 64 << 20
    elif ("v5" in kind) or ("v6" in kind):
        phys = 128 << 20
    else:
        phys = 64 << 20  # conservative for unknown generations
    return min(int(phys * 3 / 4), 100 << 20)


def _pick_tile_n(N, K, H, vmem_limit_bytes):
    """Largest residue tile (multiple of 8) whose per-step footprint fits ~2/3 of the
    VMEM limit (double-buffered bf16 he/nbr/out blocks + ~f32 (TN*K,H) in-kernel temps)."""
    budget = int(vmem_limit_bytes * 2 / 3)
    for t in (256, 128, 64, 32, 16, 8):
        if t > max(8, N):
            continue
        est = t * K * H * 30 + t * H * 24   # ~bytes per grid step (rough, conservative)
        if est <= budget:
            return t
    return 8


_NODE_W_NAMES = ('w1_self', 'w1_en', 'b1', 'w2', 'b2', 'w3s', 'b3s',
                 'g1', 'be1', 'win', 'bin', 'wout', 'bout', 'g2', 'be2')
_PAIR_W_NAMES = ('w11_self', 'w11_en', 'b11', 'w12', 'b12', 'w13', 'b13',
                 'g3', 'be3')


def _enc_node_call(hv, he, hv_nbr, ma, mv, kp, *, alpha, tile_n, fuse, vmem_limit):
    B, N, H = hv.shape
    K = he.shape[2]
    TN = tile_n
    w_args = [kp[n] for n in _NODE_W_NAMES]
    kern = functools.partial(_enc_node_kernel, alpha=alpha, cdt=COMPUTE_DTYPE, fuse=fuse)
    # TODO(synk): if per-step compute drops below DMA latency after these cuts,
    # bump the h_E block to pipeline_mode=pl.Buffered(3).
    return pl.pallas_call(
        kern,
        out_shape=jax.ShapeDtypeStruct((B, N, H), jnp.float32),
        grid=(B, N // TN),
        in_specs=[
            pl.BlockSpec((1, TN, H), lambda b, n: (b, n, 0)),
            pl.BlockSpec((1, TN, K, H), lambda b, n: (b, n, 0, 0)),
            pl.BlockSpec((1, TN, K, H), lambda b, n: (b, n, 0, 0)),
            pl.BlockSpec((1, TN, K), lambda b, n: (b, n, 0)),
            pl.BlockSpec((1, TN, 1), lambda b, n: (b, n, 0)),
        ] + [_wspec(w.shape) for w in w_args],
        out_specs=pl.BlockSpec((1, TN, H), lambda b, n: (b, n, 0)),
        compiler_params=pltpu.CompilerParams(
            dimension_semantics=("parallel", "parallel"),
            vmem_limit_bytes=vmem_limit),
    )(hv, he, hv_nbr, ma, mv, *w_args)


def _enc_pair_call(hv, he, hv_nbr, kp, *, alpha, tile_n, fuse, vmem_limit):
    B, N, H = hv.shape
    K = he.shape[2]
    TN = tile_n
    w_args = [kp[n] for n in _PAIR_W_NAMES]
    kern = functools.partial(_enc_pair_kernel, alpha=alpha, cdt=COMPUTE_DTYPE, fuse=fuse)
    return pl.pallas_call(
        kern,
        out_shape=jax.ShapeDtypeStruct((B, N, K, H), HE_DTYPE),
        grid=(B, N // TN),
        in_specs=[
            pl.BlockSpec((1, TN, H), lambda b, n: (b, n, 0)),
            pl.BlockSpec((1, TN, K, H), lambda b, n: (b, n, 0, 0)),
            pl.BlockSpec((1, TN, K, H), lambda b, n: (b, n, 0, 0)),
        ] + [_wspec(w.shape) for w in w_args],
        out_specs=pl.BlockSpec((1, TN, K, H), lambda b, n: (b, n, 0, 0)),
        compiler_params=pltpu.CompilerParams(
            dimension_semantics=("parallel", "parallel"),
            vmem_limit_bytes=vmem_limit),
    )(hv, he, hv_nbr, *w_args)


# --------------------------------- JAX glue ------------------------------------

def gather_nodes(nodes, neighbor_idx):
    # nodes (B, M, C), neighbor_idx (B, N, K) -> (B, N, K, C)
    B, N, K = neighbor_idx.shape
    flat = neighbor_idx.reshape(B, N * K)
    g = jnp.take_along_axis(nodes, flat[..., None], axis=1)
    return g.reshape(B, N, K, nodes.shape[-1])


def cat_neighbors_nodes(h_nodes, h_neighbors, E_idx):
    return jnp.concatenate([h_neighbors, gather_nodes(h_nodes, E_idx)], axis=-1)


# ------------------------------ parameter setup --------------------------------

def _xavier(key, shape):
    fan_in, fan_out = shape
    limit = (6.0 / (fan_in + fan_out)) ** 0.5
    return jax.random.uniform(key, shape, jnp.float32, -limit, limit)


def init_enc_params(key, H):
    ks = iter(jax.random.split(key, 32))

    def lin(din, dout):
        return dict(w=_xavier(next(ks), (din, dout)),
                    b=0.1 * jax.random.normal(next(ks), (1, dout), jnp.float32))

    def ln(d):
        return dict(g=1.0 + 0.1 * jax.random.normal(next(ks), (1, d), jnp.float32),
                    b=0.1 * jax.random.normal(next(ks), (1, d), jnp.float32))

    return dict(
        W1=lin(3 * H, H), W2=lin(H, H), W3=lin(H, H),
        W11=lin(3 * H, H), W12=lin(H, H), W13=lin(H, H),
        ln1=ln(H), ln2=ln(H), ln3=ln(H),
        Win=lin(H, 4 * H), Wout=lin(4 * H, H),
    )


def prepare_enc_kernel_params(p, H, scale, cdt):
    """Split W1/W11 into self vs [edge|neighbor] (2H) blocks, fold 1/scale into W3/b3,
    cast matmul weights to the MXU compute dtype.  Biases / LN params stay f32."""
    def mm(w):
        return w.astype(cdt)
    w1, w11 = p['W1']['w'], p['W11']['w']
    return dict(
        w1_self=mm(w1[:H]), w1_en=mm(w1[H:]), b1=p['W1']['b'],
        w2=mm(p['W2']['w']), b2=p['W2']['b'],
        w3s=mm(p['W3']['w'] / scale), b3s=p['W3']['b'] / scale,
        w11_self=mm(w11[:H]), w11_en=mm(w11[H:]), b11=p['W11']['b'],
        w12=mm(p['W12']['w']), b12=p['W12']['b'],
        w13=mm(p['W13']['w']), b13=p['W13']['b'],
        win=mm(p['Win']['w']), bin=p['Win']['b'],
        wout=mm(p['Wout']['w']), bout=p['Wout']['b'],
        g1=p['ln1']['g'], be1=p['ln1']['b'],
        g2=p['ln2']['g'], be2=p['ln2']['b'],
        g3=p['ln3']['g'], be3=p['ln3']['b'],
    )


# --------------------------------- forward -------------------------------------

def enc_layer_forward(params, h_V, h_E, E_idx, mask_V=None, mask_attend=None,
                      scale=SCALE, alpha=REZERO_ALPHA):
    """EncLayer.forward (eval mode; dropout = identity). Returns (h_V, h_E)."""
    B, N, H = h_V.shape
    K = E_idx.shape[2]

    kind = _device_kind()
    fuse = ("v6" in kind) or ("v7" in kind)          # 256-deep MXU generations only
    vmem_limit = _vmem_limit_bytes(kind)
    TN = _pick_tile_n(N, K, H, vmem_limit)
    kp = prepare_enc_kernel_params(params, H, scale, COMPUTE_DTYPE)

    hv = h_V.astype(jnp.float32)
    he = h_E.astype(HE_DTYPE)
    ma = (jnp.ones((B, N, K), jnp.float32) if mask_attend is None
          else mask_attend.astype(jnp.float32))
    mv = (jnp.ones((B, N, 1), jnp.float32) if mask_V is None
          else mask_V.reshape(B, N, 1).astype(jnp.float32))

    # Pad the residue axis to a multiple of TN (masks padded with zeros -> padded rows
    # contribute nothing; padded outputs sliced off below).
    Np = ((N + TN - 1) // TN) * TN
    eidx = E_idx
    if Np != N:
        pad2 = ((0, 0), (0, Np - N))
        hv = jnp.pad(hv, pad2 + ((0, 0),))
        he = jnp.pad(he, pad2 + ((0, 0), (0, 0)))
        ma = jnp.pad(ma, pad2 + ((0, 0),))
        mv = jnp.pad(mv, pad2 + ((0, 0),))
        eidx = jnp.pad(E_idx, pad2 + ((0, 0),))

    # TODO(synk): move the neighbor gather in-kernel (scalar-prefetched E_idx + DMA/vector
    # gather of the per-batch h_V slab) to remove this HBM round-trip; kept as an XLA-side
    # bf16 take_along_axis for lowering robustness.
    hv_nbr = gather_nodes(hv.astype(COMPUTE_DTYPE), eidx)
    h_V_new = _enc_node_call(hv, he, hv_nbr, ma, mv, kp,
                             alpha=alpha, tile_n=TN, fuse=fuse, vmem_limit=vmem_limit)

    hv_new_nbr = gather_nodes(h_V_new.astype(COMPUTE_DTYPE), eidx)
    h_E_new = _enc_pair_call(h_V_new, he, hv_new_nbr, kp,
                             alpha=alpha, tile_n=TN, fuse=fuse, vmem_limit=vmem_limit)

    if Np != N:
        h_V_new = h_V_new[:, :N]
        h_E_new = h_E_new[:, :N]
    return h_V_new, h_E_new


# ------------------------- pure-JAX f32 reference (check) ----------------------

def enc_layer_reference(p, h_V, h_E, E_idx, mask_V=None, mask_attend=None,
                        scale=SCALE, alpha=REZERO_ALPHA):
    """f32, exact erf-GELU reference matching the torch module semantics."""
    act = _gelu_exact
    lin = lambda x, W: x @ W['w'] + W['b']
    B, N, H = h_V.shape
    K = E_idx.shape[2]

    h_EV = cat_neighbors_nodes(h_V, h_E, E_idx)
    h_V_exp = jnp.broadcast_to(h_V[:, :, None, :], (B, N, K, H))
    h_EV = jnp.concatenate([h_V_exp, h_EV], axis=-1)
    h_msg = lin(act(lin(act(lin(h_EV, p['W1'])), p['W2'])), p['W3'])
    if mask_attend is not None:
        h_msg = mask_attend[..., None] * h_msg
    dh = jnp.sum(h_msg, axis=-2) / scale
    h_V = _layernorm(alpha * dh + h_V, p['ln1']['g'], p['ln1']['b'])
    dh = lin(act(lin(h_V, p['Win'])), p['Wout'])
    h_V = _layernorm(alpha * dh + h_V, p['ln2']['g'], p['ln2']['b'])
    if mask_V is not None:
        h_V = mask_V[..., None] * h_V

    h_EV = cat_neighbors_nodes(h_V, h_E, E_idx)
    h_V_exp = jnp.broadcast_to(h_V[:, :, None, :], (B, N, K, H))
    h_EV = jnp.concatenate([h_V_exp, h_EV], axis=-1)
    h_msg = lin(act(lin(act(lin(h_EV, p['W11'])), p['W12'])), p['W13'])
    h_E = _layernorm(alpha * h_msg + h_E, p['ln3']['g'], p['ln3']['b'])
    return h_V, h_E


# ---------------------------------- main ----------------------------------------

if __name__ == "__main__":
    key = jax.random.PRNGKey(0)
    # Small demo shapes. In production use H as a multiple of 128 (lane-dense stores).
    B, N, K, H = 2, 16, 8, 32

    keys = jax.random.split(key, 8)
    h_V = jax.random.normal(keys[0], (B, N, H), jnp.float32)
    h_E = jax.random.normal(keys[1], (B, N, K, H), jnp.float32)
    E_idx = jax.random.randint(keys[2], (B, N, K), 0, N).astype(jnp.int32)
    mask_V = jnp.ones((B, N), jnp.float32).at[0, -1].set(0.0)
    mask_attend = mask_V[:, :, None] * gather_nodes(mask_V[..., None], E_idx)[..., 0]

    params = init_enc_params(keys[3], H)

    hV_out, hE_out = enc_layer_forward(params, h_V, h_E, E_idx, mask_V, mask_attend)
    jax.block_until_ready((hV_out, hE_out))

    assert hV_out.shape == (B, N, H)
    assert hE_out.shape == (B, N, K, H)

    # Numerical check vs the pure-f32 / exact-GELU reference.  The kernel uses bf16 MXU
    # inputs, a bf16 h_E residual stream and tanh-GELU, so the pair-feature tolerance is
    # looser than the (f32-stream) node tolerance.
    ref_V, ref_E = enc_layer_reference(params, h_V, h_E, E_idx, mask_V, mask_attend)
    err_v = float(jnp.max(jnp.abs(hV_out.astype(jnp.float32) - ref_V)))
    err_e = float(jnp.max(jnp.abs(hE_out.astype(jnp.float32) - ref_E)))
    assert err_v < 3e-2, ("h_V mismatch", err_v)
    assert err_e < 6e-2, ("h_E mismatch", err_e)

    print("KERNEL_OK")
</pallas_src>

<mosaic_0001>
module attributes {stable_mosaic.version = 11 : i64} {
  func.func @_enc_node_kernel(%arg0: i32, %arg1: i32, %arg2: memref<1x16x32xf32, #tpu.memory_space<vmem>>, %arg3: memref<1x16x8x32xbf16, #tpu.memory_space<vmem>>, %arg4: memref<1x16x8x32xbf16, #tpu.memory_space<vmem>>, %arg5: memref<1x16x8xf32, #tpu.memory_space<vmem>>, %arg6: memref<1x16x1xf32, #tpu.memory_space<vmem>>, %arg7: memref<32x32xbf16, #tpu.memory_space<vmem>>, %arg8: memref<64x32xbf16, #tpu.memory_space<vmem>>, %arg9: memref<1x32xf32, #tpu.memory_space<vmem>>, %arg10: memref<32x32xbf16, #tpu.memory_space<vmem>>, %arg11: memref<1x32xf32, #tpu.memory_space<vmem>>, %arg12: memref<32x32xbf16, #tpu.memory_space<vmem>>, %arg13: memref<1x32xf32, #tpu.memory_space<vmem>>, %arg14: memref<1x32xf32, #tpu.memory_space<vmem>>, %arg15: memref<1x32xf32, #tpu.memory_space<vmem>>, %arg16: memref<32x128xbf16, #tpu.memory_space<vmem>>, %arg17: memref<1x128xf32, #tpu.memory_space<vmem>>, %arg18: memref<128x32xbf16, #tpu.memory_space<vmem>>, %arg19: memref<1x32xf32, #tpu.memory_space<vmem>>, %arg20: memref<1x32xf32, #tpu.memory_space<vmem>>, %arg21: memref<1x32xf32, #tpu.memory_space<vmem>>, %arg22: memref<1x16x32xf32, #tpu.memory_space<vmem>>) attributes {dimension_semantics = [#tpu.dimension_semantics<parallel>, #tpu.dimension_semantics<parallel>], iteration_bounds = array<i64: 2, 1>, scalar_prefetch = 0 : i64, scratch_operands = 0 : i64, tpu.core_type = #tpu.core_type<tc>, window_params = [{transform_indices = @transform_0, window_bounds = array<i64: 1, 16, 32>}, {transform_indices = @transform_1, window_bounds = array<i64: 1, 16, 8, 32>}, {transform_indices = @transform_2, window_bounds = array<i64: 1, 16, 8, 32>}, {transform_indices = @transform_3, window_bounds = array<i64: 1, 16, 8>}, {transform_indices = @transform_4, window_bounds = array<i64: 1, 16, 1>}, {pipeline_mode = #tpu.pipeline_mode<synchronous>, transform_indices = @transform_5, window_bounds = array<i64: 32, 32>}, {pipeline_mode = #tpu.pipeline_mode<synchronous>, transform_indices = @transform_6, window_bounds = array<i64: 64, 32>}, {pipeline_mode = #tpu.pipeline_mode<synchronous>, transform_indices = @transform_7, window_bounds = array<i64: 1, 32>}, {pipeline_mode = #tpu.pipeline_mode<synchronous>, transform_indices = @transform_8, window_bounds = array<i64: 32, 32>}, {pipeline_mode = #tpu.pipeline_mode<synchronous>, transform_indices = @transform_9, window_bounds = array<i64: 1, 32>}, {pipeline_mode = #tpu.pipeline_mode<synchronous>, transform_indices = @transform_10, window_bounds = array<i64: 32, 32>}, {pipeline_mode = #tpu.pipeline_mode<synchronous>, transform_indices = @transform_11, window_bounds = array<i64: 1, 32>}, {pipeline_mode = #tpu.pipeline_mode<synchronous>, transform_indices = @transform_12, window_bounds = array<i64: 1, 32>}, {pipeline_mode = #tpu.pipeline_mode<synchronous>, transform_indices = @transform_13, window_bounds = array<i64: 1, 32>}, {pipeline_mode = #tpu.pipeline_mode<synchronous>, transform_indices = @transform_14, window_bounds = array<i64: 32, 128>}, {pipeline_mode = #tpu.pipeline_mode<synchronous>, transform_indices = @transform_15, window_bounds = array<i64: 1, 128>}, {pipeline_mode = #tpu.pipeline_mode<synchronous>, transform_indices = @transform_16, window_bounds = array<i64: 128, 32>}, {pipeline_mode = #tpu.pipeline_mode<synchronous>, transform_indices = @transform_17, window_bounds = array<i64: 1, 32>}, {pipeline_mode = #tpu.pipeline_mode<synchronous>, transform_indices = @transform_18, window_bounds = array<i64: 1, 32>}, {pipeline_mode = #tpu.pipeline_mode<synchronous>, transform_indices = @transform_19, window_bounds = array<i64: 1, 32>}, {transform_indices = @transform_20, window_bounds = array<i64: 1, 16, 32>}]} {
    %c0 = arith.constant 0 : index
    %c0_0 = arith.constant 0 : index
    %c0_1 = arith.constant 0 : index
    %0 = vector.load %arg2[%c0, %c0_0, %c0_1] : memref<1x16x32xf32, #tpu.memory_space<vmem>>, vector<1x16x32xf32>
    %1 = vector.shape_cast %0 : vector<1x16x32xf32> to vector<16x32xf32>
    %c0_2 = arith.constant 0 : index
    %c0_3 = arith.constant 0 : index
    %c0_4 = arith.constant 0 : index
    %c0_5 = arith.constant 0 : index
    %2 = vector.load %arg3[%c0_2, %c0_3, %c0_4, %c0_5] : memref<1x16x8x32xbf16, #tpu.memory_space<vmem>>, vector<1x16x8x32xbf16>
    %3 = vector.shape_cast %2 : vector<1x16x8x32xbf16> to vector<16x8x32xbf16>
    %c0_6 = arith.constant 0 : index
    %c0_7 = arith.constant 0 : index
    %c0_8 = arith.constant 0 : index
    %c0_9 = arith.constant 0 : index
    %4 = vector.load %arg4[%c0_6, %c0_7, %c0_8, %c0_9] : memref<1x16x8x32xbf16, #tpu.memory_space<vmem>>, vector<1x16x8x32xbf16>
    %5 = vector.shape_cast %4 : vector<1x16x8x32xbf16> to vector<16x8x32xbf16>
    %c0_10 = arith.constant 0 : index
    %c0_11 = arith.constant 0 : index
    %c0_12 = arith.constant 0 : index
    %6 = vector.load %arg5[%c0_10, %c0_11, %c0_12] : memref<1x16x8xf32, #tpu.memory_space<vmem>>, vector<1x16x8xf32>
    %7 = vector.shape_cast %6 : vector<1x16x8xf32> to vector<16x8xf32>
    %c0_13 = arith.constant 0 : index
    %c0_14 = arith.constant 0 : index
    %c0_15 = arith.constant 0 : index
    %8 = vector.load %arg6[%c0_13, %c0_14, %c0_15] : memref<1x16x1xf32, #tpu.memory_space<vmem>>, vector<1x16x1xf32>
    %9 = vector.shape_cast %8 : vector<1x16x1xf32> to vector<16x1xf32>
    %10 = vector.shape_cast %3 : vector<16x8x32xbf16> to vector<128x32xbf16>
    %11 = vector.shape_cast %5 : vector<16x8x32xbf16> to vector<128x32xbf16>
    %12 = arith.truncf %1 : vector<16x32xf32> to vector<16x32xbf16>
    %c0_16 = arith.constant 0 : index
    %c0_17 = arith.constant 0 : index
    %13 = vector.load %arg7[%c0_16, %c0_17] : memref<32x32xbf16, #tpu.memory_space<vmem>>, vector<32x32xbf16>
    %cst = arith.constant dense<0.000000e+00> : vector<16x32xf32>
    %14 = tpu.matmul %12, %13, %cst {dimension_numbers = #tpu.dot_dimension_numbers<[1], [0], [0], [1], [0, 0, 1, 1], [], []>} : vector<16x32xbf16>, vector<32x32xbf16>, vector<16x32xf32> -> vector<16x32xf32>
    %c0_18 = arith.constant 0 : index
    %c0_19 = arith.constant 0 : index
    %15 = vector.load %arg9[%c0_18, %c0_19] : memref<1x32xf32, #tpu.memory_space<vmem>>, vector<1x32xf32>
    %16 = vector.broadcast %15 : vector<1x32xf32> to vector<16x32xf32>
    %17 = arith.addf %14, %16 : vector<16x32xf32>
    %c0_20 = arith.constant 0 : index
    %c0_21 = arith.constant 0 : index
    %18 = vector.load %arg8[%c0_20, %c0_21] : memref<64x32xbf16, #tpu.memory_space<vmem>>, vector<32x32xbf16>
    %cst_22 = arith.constant dense<0.000000e+00> : vector<128x32xf32>
    %19 = tpu.matmul %10, %18, %cst_22 {dimension_numbers = #tpu.dot_dimension_numbers<[1], [0], [0], [1], [0, 0, 1, 1], [], []>} : vector<128x32xbf16>, vector<32x32xbf16>, vector<128x32xf32> -> vector<128x32xf32>
    %c32 = arith.constant 32 : index
    %c0_23 = arith.constant 0 : index
    %20 = vector.load %arg8[%c32, %c0_23] : memref<64x32xbf16, #tpu.memory_space<vmem>>, vector<32x32xbf16>
    %cst_24 = arith.constant dense<0.000000e+00> : vector<128x32xf32>
    %21 = tpu.matmul %11, %20, %cst_24 {dimension_numbers = #tpu.dot_dimension_numbers<[1], [0], [0], [1], [0, 0, 1, 1], [], []>} : vector<128x32xbf16>, vector<32x32xbf16>, vector<128x32xf32> -> vector<128x32xf32>
    %22 = arith.addf %19, %21 : vector<128x32xf32>
    %23 = vector.shape_cast %22 : vector<128x32xf32> to vector<16x8x32xf32>
    %24 = vector.shape_cast %17 : vector<16x32xf32> to vector<16x1x32xf32>
    %25 = vector.broadcast %24 : vector<16x1x32xf32> to vector<16x8x32xf32>
    %26 = arith.addf %23, %25 : vector<16x8x32xf32>
    %27 = arith.mulf %26, %26 : vector<16x8x32xf32>
    %28 = arith.mulf %26, %27 : vector<16x8x32xf32>
    %cst_25 = arith.constant 4.471500e-02 : f32
    %29 = vector.broadcast %cst_25 : f32 to vector<16x8x32xf32>
    %30 = arith.mulf %29, %28 : vector<16x8x32xf32>
    %31 = arith.addf %26, %30 : vector<16x8x32xf32>
    %cst_26 = arith.constant 0.797884583 : f32
    %32 = vector.broadcast %cst_26 : f32 to vector<16x8x32xf32>
    %33 = arith.mulf %32, %31 : vector<16x8x32xf32>
    %34 = math.tanh %33 : vector<16x8x32xf32>
    %cst_27 = arith.constant 1.000000e+00 : f32
    %35 = vector.broadcast %cst_27 : f32 to vector<16x8x32xf32>
    %36 = arith.addf %35, %34 : vector<16x8x32xf32>
    %cst_28 = arith.constant 5.000000e-01 : f32
    %37 = vector.broadcast %cst_28 : f32 to vector<16x8x32xf32>
    %38 = arith.mulf %37, %36 : vector<16x8x32xf32>
    %39 = arith.mulf %26, %38 : vector<16x8x32xf32>
    %40 = arith.truncf %39 : vector<16x8x32xf32> to vector<16x8x32xbf16>
    %41 = vector.shape_cast %40 : vector<16x8x32xbf16> to vector<128x32xbf16>
    %c0_29 = arith.constant 0 : index
    %c0_30 = arith.constant 0 : index
    %42 = vector.load %arg10[%c0_29, %c0_30] : memref<32x32xbf16, #tpu.memory_space<vmem>>, vector<32x32xbf16>
    %cst_31 = arith.constant dense<0.000000e+00> : vector<128x32xf32>
    %43 = tpu.matmul %41, %42, %cst_31 {dimension_numbers = #tpu.dot_dimension_numbers<[1], [0], [0], [1], [0, 0, 1, 1], [], []>} : vector<128x32xbf16>, vector<32x32xbf16>, vector<128x32xf32> -> vector<128x32xf32>
    %c0_32 = arith.constant 0 : index
    %c0_33 = arith.constant 0 : index
    %44 = vector.load %arg11[%c0_32, %c0_33] : memref<1x32xf32, #tpu.memory_space<vmem>>, vector<1x32xf32>
    %45 = vector.broadcast %44 : vector<1x32xf32> to vector<128x32xf32>
    %46 = arith.addf %43, %45 : vector<128x32xf32>
    %47 = arith.mulf %46, %46 : vector<128x32xf32>
    %48 = arith.mulf %46, %47 : vector<128x32xf32>
    %cst_34 = arith.constant 4.471500e-02 : f32
    %49 = vector.broadcast %cst_34 : f32 to vector<128x32xf32>
    %50 = arith.mulf %49, %48 : vector<128x32xf32>
    %51 = arith.addf %46, %50 : vector<128x32xf32>
    %cst_35 = arith.constant 0.797884583 : f32
    %52 = vector.broadcast %cst_35 : f32 to vector<128x32xf32>
    %53 = arith.mulf %52, %51 : vector<128x32xf32>
    %54 = math.tanh %53 : vector<128x32xf32>
    %cst_36 = arith.constant 1.000000e+00 : f32
    %55 = vector.broadcast %cst_36 : f32 to vector<128x32xf32>
    %56 = arith.addf %55, %54 : vector<128x32xf32>
    %cst_37 = arith.constant 5.000000e-01 : f32
    %57 = vector.broadcast %cst_37 : f32 to vector<128x32xf32>
    %58 = arith.mulf %57, %56 : vector<128x32xf32>
    %59 = arith.mulf %46, %58 : vector<128x32xf32>
    %60 = vector.shape_cast %59 : vector<128x32xf32> to vector<16x8x32xf32>
    %61 = vector.shape_cast %7 : vector<16x8xf32> to vector<16x8x1xf32>
    %62 = vector.broadcast %61 : vector<16x8x1xf32> to vector<16x8x32xf32>
    %63 = arith.mulf %60, %62 : vector<16x8x32xf32>
    %cst_38 = arith.constant dense<0.000000e+00> : vector<16x32xf32>
    %64 = vector.multi_reduction <add>, %63, %cst_38 [1] : vector<16x8x32xf32> to vector<16x32xf32>
    %cst_39 = arith.constant dense<0.000000e+00> : vector<16xf32>
    %65 = vector.multi_reduction <add>, %7, %cst_39 [1] : vector<16x8xf32> to vector<16xf32>
    %66 = vector.shape_cast %65 : vector<16xf32> to vector<16x1xf32>
    %67 = arith.truncf %64 : vector<16x32xf32> to vector<16x32xbf16>
    %c0_40 = arith.constant 0 : index
    %c0_41 = arith.constant 0 : index
    %68 = vector.load %arg12[%c0_40, %c0_41] : memref<32x32xbf16, #tpu.memory_space<vmem>>, vector<32x32xbf16>
    %cst_42 = arith.constant dense<0.000000e+00> : vector<16x32xf32>
    %69 = tpu.matmul %67, %68, %cst_42 {dimension_numbers = #tpu.dot_dimension_numbers<[1], [0], [0], [1], [0, 0, 1, 1], [], []>} : vector<16x32xbf16>, vector<32x32xbf16>, vector<16x32xf32> -> vector<16x32xf32>
    %c0_43 = arith.constant 0 : index
    %c0_44 = arith.constant 0 : index
    %70 = vector.load %arg13[%c0_43, %c0_44] : memref<1x32xf32, #tpu.memory_space<vmem>>, vector<1x32xf32>
    %71 = vector.broadcast %70 : vector<1x32xf32> to vector<16x32xf32>
    %72 = vector.broadcast %66 : vector<16x1xf32> to vector<16x32xf32>
    %73 = arith.mulf %71, %72 : vector<16x32xf32>
    %74 = arith.addf %69, %73 : vector<16x32xf32>
    %cst_45 = arith.constant 0.00999999977 : f32
    %75 = vector.broadcast %cst_45 : f32 to vector<16x32xf32>
    %76 = arith.mulf %75, %74 : vector<16x32xf32>
    %77 = arith.addf %76, %1 : vector<16x32xf32>
    %c0_46 = arith.constant 0 : index
    %c0_47 = arith.constant 0 : index
    %78 = vector.load %arg14[%c0_46, %c0_47] : memref<1x32xf32, #tpu.memory_space<vmem>>, vector<1x32xf32>
    %c0_48 = arith.constant 0 : index
    %c0_49 = arith.constant 0 : index
    %79 = vector.load %arg15[%c0_48, %c0_49] : memref<1x32xf32, #tpu.memory_space<vmem>>, vector<1x32xf32>
    %cst_50 = arith.constant dense<0.000000e+00> : vector<16xf32>
    %80 = vector.multi_reduction <add>, %77, %cst_50 [1] : vector<16x32xf32> to vector<16xf32>
    %81 = vector.shape_cast %80 : vector<16xf32> to vector<16x1xf32>
    %cst_51 = arith.constant 3.200000e+01 : f32
    %82 = vector.broadcast %cst_51 : f32 to vector<16x1xf32>
    %83 = arith.divf %81, %82 : vector<16x1xf32>
    %84 = vector.broadcast %83 : vector<16x1xf32> to vector<16x32xf32>
    %85 = arith.subf %77, %84 : vector<16x32xf32>
    %86 = arith.mulf %85, %85 : vector<16x32xf32>
    %cst_52 = arith.constant dense<0.000000e+00> : vector<16xf32>
    %87 = vector.multi_reduction <add>, %86, %cst_52 [1] : vector<16x32xf32> to vector<16xf32>
    %88 = vector.shape_cast %87 : vector<16xf32> to vector<16x1xf32>
    %cst_53 = arith.constant 3.200000e+01 : f32
    %89 = vector.broadcast %cst_53 : f32 to vector<16x1xf32>
    %90 = arith.divf %88, %89 : vector<16x1xf32>
    %91 = vector.broadcast %83 : vector<16x1xf32> to vector<16x32xf32>
    %92 = arith.subf %77, %91 : vector<16x32xf32>
    %cst_54 = arith.constant 9.99999974E-6 : f32
    %93 = vector.broadcast %cst_54 : f32 to vector<16x1xf32>
    %94 = arith.addf %90, %93 : vector<16x1xf32>
    %95 = math.rsqrt %94 : vector<16x1xf32>
    %96 = vector.broadcast %95 : vector<16x1xf32> to vector<16x32xf32>
    %97 = arith.mulf %92, %96 : vector<16x32xf32>
    %98 = vector.broadcast %78 : vector<1x32xf32> to vector<16x32xf32>
    %99 = arith.mulf %97, %98 : vector<16x32xf32>
    %100 = vector.broadcast %79 : vector<1x32xf32> to vector<16x32xf32>
    %101 = arith.addf %99, %100 : vector<16x32xf32>
    %102 = arith.truncf %101 : vector<16x32xf32> to vector<16x32xbf16>
    %c0_55 = arith.constant 0 : index
    %c0_56 = arith.constant 0 : index
    %103 = vector.load %arg16[%c0_55, %c0_56] : memref<32x128xbf16, #tpu.memory_space<vmem>>, vector<32x128xbf16>
    %cst_57 = arith.constant dense<0.000000e+00> : vector<16x128xf32>
    %104 = tpu.matmul %102, %103, %cst_57 {dimension_numbers = #tpu.dot_dimension_numbers<[1], [0], [0], [1], [0, 0, 1, 1], [], []>} : vector<16x32xbf16>, vector<32x128xbf16>, vector<16x128xf32> -> vector<16x128xf32>
    %c0_58 = arith.constant 0 : index
    %c0_59 = arith.constant 0 : index
    %105 = vector.load %arg17[%c0_58, %c0_59] : memref<1x128xf32, #tpu.memory_space<vmem>>, vector<1x128xf32>
    %106 = vector.broadcast %105 : vector<1x128xf32> to vector<16x128xf32>
    %107 = arith.addf %104, %106 : vector<16x128xf32>
    %108 = arith.mulf %107, %107 : vector<16x128xf32>
    %109 = arith.mulf %107, %108 : vector<16x128xf32>
    %cst_60 = arith.constant 4.471500e-02 : f32
    %110 = vector.broadcast %cst_60 : f32 to vector<16x128xf32>
    %111 = arith.mulf %110, %109 : vector<16x128xf32>
    %112 = arith.addf %107, %111 : vector<16x128xf32>
    %cst_61 = arith.constant 0.797884583 : f32
    %113 = vector.broadcast %cst_61 : f32 to vector<16x128xf32>
    %114 = arith.mulf %113, %112 : vector<16x128xf32>
    %115 = math.tanh %114 : vector<16x128xf32>
    %cst_62 = arith.constant 1.000000e+00 : f32
    %116 = vector.broadcast %cst_62 : f32 to vector<16x128xf32>
    %117 = arith.addf %116, %115 : vector<16x128xf32>
    %cst_63 = arith.constant 5.000000e-01 : f32
    %118 = vector.broadcast %cst_63 : f32 to vector<16x128xf32>
    %119 = arith.mulf %118, %117 : vector<16x128xf32>
    %120 = arith.mulf %107, %119 : vector<16x128xf32>
    %121 = arith.truncf %120 : vector<16x128xf32> to vector<16x128xbf16>
    %c0_64 = arith.constant 0 : index
    %c0_65 = arith.constant 0 : index
    %122 = vector.load %arg18[%c0_64, %c0_65] : memref<128x32xbf16, #tpu.memory_space<vmem>>, vector<128x32xbf16>
    %cst_66 = arith.constant dense<0.000000e+00> : vector<16x32xf32>
    %123 = tpu.matmul %121, %122, %cst_66 {dimension_numbers = #tpu.dot_dimension_numbers<[1], [0], [0], [1], [0, 0, 1, 1], [], []>} : vector<16x128xbf16>, vector<128x32xbf16>, vector<16x32xf32> -> vector<16x32xf32>
    %c0_67 = arith.constant 0 : index
    %c0_68 = arith.constant 0 : index
    %124 = vector.load %arg19[%c0_67, %c0_68] : memref<1x32xf32, #tpu.memory_space<vmem>>, vector<1x32xf32>
    %125 = vector.broadcast %124 : vector<1x32xf32> to vector<16x32xf32>
    %126 = arith.addf %123, %125 : vector<16x32xf32>
    %cst_69 = arith.constant 0.00999999977 : f32
    %127 = vector.broadcast %cst_69 : f32 to vector<16x32xf32>
    %128 = arith.mulf %127, %126 : vector<16x32xf32>
    %129 = arith.addf %128, %101 : vector<16x32xf32>
    %c0_70 = arith.constant 0 : index
    %c0_71 = arith.constant 0 : index
    %130 = vector.load %arg20[%c0_70, %c0_71] : memref<1x32xf32, #tpu.memory_space<vmem>>, vector<1x32xf32>
    %c0_72 = arith.constant 0 : index
    %c0_73 = arith.constant 0 : index
    %131 = vector.load %arg21[%c0_72, %c0_73] : memref<1x32xf32, #tpu.memory_space<vmem>>, vector<1x32xf32>
    %cst_74 = arith.constant dense<0.000000e+00> : vector<16xf32>
    %132 = vector.multi_reduction <add>, %129, %cst_74 [1] : vector<16x32xf32> to vector<16xf32>
    %133 = vector.shape_cast %132 : vector<16xf32> to vector<16x1xf32>
    %cst_75 = arith.constant 3.200000e+01 : f32
    %134 = vector.broadcast %cst_75 : f32 to vector<16x1xf32>
    %135 = arith.divf %133, %134 : vector<16x1xf32>
    %136 = vector.broadcast %135 : vector<16x1xf32> to vector<16x32xf32>
    %137 = arith.subf %129, %136 : vector<16x32xf32>
    %138 = arith.mulf %137, %137 : vector<16x32xf32>
    %cst_76 = arith.constant dense<0.000000e+00> : vector<16xf32>
    %139 = vector.multi_reduction <add>, %138, %cst_76 [1] : vector<16x32xf32> to vector<16xf32>
    %140 = vector.shape_cast %139 : vector<16xf32> to vector<16x1xf32>
    %cst_77 = arith.constant 3.200000e+01 : f32
    %141 = vector.broadcast %cst_77 : f32 to vector<16x1xf32>
    %142 = arith.divf %140, %141 : vector<16x1xf32>
    %143 = vector.broadcast %135 : vector<16x1xf32> to vector<16x32xf32>
    %144 = arith.subf %129, %143 : vector<16x32xf32>
    %cst_78 = arith.constant 9.99999974E-6 : f32
    %145 = vector.broadcast %cst_78 : f32 to vector<16x1xf32>
    %146 = arith.addf %142, %145 : vector<16x1xf32>
    %147 = math.rsqrt %146 : vector<16x1xf32>
    %148 = vector.broadcast %147 : vector<16x1xf32> to vector<16x32xf32>
    %149 = arith.mulf %144, %148 : vector<16x32xf32>
    %150 = vector.broadcast %130 : vector<1x32xf32> to vector<16x32xf32>
    %151 = arith.mulf %149, %150 : vector<16x32xf32>
    %152 = vector.broadcast %131 : vector<1x32xf32> to vector<16x32xf32>
    %153 = arith.addf %151, %152 : vector<16x32xf32>
    %154 = vector.broadcast %9 : vector<16x1xf32> to vector<16x32xf32>
    %155 = arith.mulf %154, %153 : vector<16x32xf32>
    %c0_79 = arith.constant 0 : index
    %c0_80 = arith.constant 0 : index
    %c0_81 = arith.constant 0 : index
    %156 = vector.load %arg22[%c0_79, %c0_80, %c0_81] : memref<1x16x32xf32, #tpu.memory_space<vmem>>, vector<1x16x32xf32>
    %157 = vector.shape_cast %156 : vector<1x16x32xf32> to vector<16x32xf32>
    %158 = vector.shape_cast %155 : vector<16x32xf32> to vector<1x16x32xf32>
    tpu.vector_store %arg22[%c0_79, %c0_80, %c0_81], %158 {strides = array<i32>} : memref<1x16x32xf32, #tpu.memory_space<vmem>>, vector<1x16x32xf32>,
    return
  }
  func.func @transform_0(%arg0: i32, %arg1: i32) -> (i32, i32, i32) {
    %c0_i32 = arith.constant 0 : i32
    %c0_i32_0 = arith.constant 0 : i32
    return %arg0, %arg1, %c0_i32 : i32, i32, i32
  }
  func.func @transform_1(%arg0: i32, %arg1: i32) -> (i32, i32, i32, i32) {
    %c0_i32 = arith.constant 0 : i32
    %c0_i32_0 = arith.constant 0 : i32
    %c0_i32_1 = arith.constant 0 : i32
    return %arg0, %arg1, %c0_i32, %c0_i32_0 : i32, i32, i32, i32
  }
  func.func @transform_2(%arg0: i32, %arg1: i32) -> (i32, i32, i32, i32) {
    %c0_i32 = arith.constant 0 : i32
    %c0_i32_0 = arith.constant 0 : i32
    %c0_i32_1 = arith.constant 0 : i32
    return %arg0, %arg1, %c0_i32, %c0_i32_0 : i32, i32, i32, i32
  }
  func.func @transform_3(%arg0: i32, %arg1: i32) -> (i32, i32, i32) {
    %c0_i32 = arith.constant 0 : i32
    %c0_i32_0 = arith.constant 0 : i32
    return %arg0, %arg1, %c0_i32 : i32, i32, i32
  }
  func.func @transform_4(%arg0: i32, %arg1: i32) -> (i32, i32, i32) {
    %c0_i32 = arith.constant 0 : i32
    %c0_i32_0 = arith.constant 0 : i32
    return %arg0, %arg1, %c0_i32 : i32, i32, i32
  }
  func.func @transform_5(%arg0: i32, %arg1: i32) -> (i32, i32) {
    %c0_i32 = arith.constant 0 : i32
    %c0_i32_0 = arith.constant 0 : i32
    %c0_i32_1 = arith.constant 0 : i32
    return %c0_i32, %c0_i32_0 : i32, i32
  }
  func.func @transform_6(%arg0: i32, %arg1: i32) -> (i32, i32) {
    %c0_i32 = arith.constant 0 : i32
    %c0_i32_0 = arith.constant 0 : i32
    %c0_i32_1 = arith.constant 0 : i32
    return %c0_i32, %c0_i32_0 : i32, i32
  }
  func.func @transform_7(%arg0: i32, %arg1: i32) -> (i32, i32) {
    %c0_i32 = arith.constant 0 : i32
    %c0_i32_0 = arith.constant 0 : i32
    %c0_i32_1 = arith.constant 0 : i32
    return %c0_i32, %c0_i32_0 : i32, i32
  }
  func.func @transform_8(%arg0: i32, %arg1: i32) -> (i32, i32) {
    %c0_i32 = arith.constant 0 : i32
    %c0_i32_0 = arith.constant 0 : i32
    %c0_i32_1 = arith.constant 0 : i32
    return %c0_i32, %c0_i32_0 : i32, i32
  }
  func.func @transform_9(%arg0: i32, %arg1: i32) -> (i32, i32) {
    %c0_i32 = arith.constant 0 : i32
    %c0_i32_0 = arith.constant 0 : i32
    %c0_i32_1 = arith.constant 0 : i32
    return %c0_i32, %c0_i32_0 : i32, i32
  }
  func.func @transform_10(%arg0: i32, %arg1: i32) -> (i32, i32) {
    %c0_i32 = arith.constant 0 : i32
    %c0_i32_0 = arith.constant 0 : i32
    %c0_i32_1 = arith.constant 0 : i32
    return %c0_i32, %c0_i32_0 : i32, i32
  }
  func.func @transform_11(%arg0: i32, %arg1: i32) -> (i32, i32) {
    %c0_i32 = arith.constant 0 : i32
    %c0_i32_0 = arith.constant 0 : i32
    %c0_i32_1 = arith.constant 0 : i32
    return %c0_i32, %c0_i32_0 : i32, i32
  }
  func.func @transform_12(%arg0: i32, %arg1: i32) -> (i32, i32) {
    %c0_i32 = arith.constant 0 : i32
    %c0_i32_0 = arith.constant 0 : i32
    %c0_i32_1 = arith.constant 0 : i32
    return %c0_i32, %c0_i32_0 : i32, i32
  }
  func.func @transform_13(%arg0: i32, %arg1: i32) -> (i32, i32) {
    %c0_i32 = arith.constant 0 : i32
    %c0_i32_0 = arith.constant 0 : i32
    %c0_i32_1 = arith.constant 0 : i32
    return %c0_i32, %c0_i32_0 : i32, i32
  }
  func.func @transform_14(%arg0: i32, %arg1: i32) -> (i32, i32) {
    %c0_i32 = arith.constant 0 : i32
    %c0_i32_0 = arith.constant 0 : i32
    %c0_i32_1 = arith.constant 0 : i32
    return %c0_i32, %c0_i32_0 : i32, i32
  }
  func.func @transform_15(%arg0: i32, %arg1: i32) -> (i32, i32) {
    %c0_i32 = arith.constant 0 : i32
    %c0_i32_0 = arith.constant 0 : i32
    %c0_i32_1 = arith.constant 0 : i32
    return %c0_i32, %c0_i32_0 : i32, i32
  }
  func.func @transform_16(%arg0: i32, %arg1: i32) -> (i32, i32) {
    %c0_i32 = arith.constant 0 : i32
    %c0_i32_0 = arith.constant 0 : i32
    %c0_i32_1 = arith.constant 0 : i32
    return %c0_i32, %c0_i32_0 : i32, i32
  }
  func.func @transform_17(%arg0: i32, %arg1: i32) -> (i32, i32) {
    %c0_i32 = arith.constant 0 : i32
    %c0_i32_0 = arith.constant 0 : i32
    %c0_i32_1 = arith.constant 0 : i32
    return %c0_i32, %c0_i32_0 : i32, i32
  }
  func.func @transform_18(%arg0: i32, %arg1: i32) -> (i32, i32) {
    %c0_i32 = arith.constant 0 : i32
    %c0_i32_0 = arith.constant 0 : i32
    %c0_i32_1 = arith.constant 0 : i32
    return %c0_i32, %c0_i32_0 : i32, i32
  }
  func.func @transform_19(%arg0: i32, %arg1: i32) -> (i32, i32) {
    %c0_i32 = arith.constant 0 : i32
    %c0_i32_0 = arith.constant 0 : i32
    %c0_i32_1 = arith.constant 0 : i32
    return %c0_i32, %c0_i32_0 : i32, i32
  }
  func.func @transform_20(%arg0: i32, %arg1: i32) -> (i32, i32, i32) {
    %c0_i32 = arith.constant 0 : i32
    %c0_i32_0 = arith.constant 0 : i32
    return %arg0, %arg1, %c0_i32 : i32, i32, i32
  }
}

</mosaic_0001>

<llo_original>
// kernel: tpu_custom_call.1
$region0: #{tpu_custom_call.1}
  #allocation0 [shape = 'u32[]', space=smem, size = 0x4, offset = 0x4, fixed_abs, tag = 'smem constant byte address 0x4 - core index']
  #allocation1 [shape = 'u32[144,128]{1,0:T(1,128)}', space=vmem, size = 0x12000, scoped, tag = 'internal scratch']
  %s0 = inlined_call_operand.vmem [shape: f32[2,16,32], index: 0, kind: input, shape index: {}]
  %s1 = inlined_call_operand.vmem [shape: bf16[2,16,8,32], index: 1, kind: input, shape index: {}]
  %s2 = inlined_call_operand.hbm [shape: bf16[2,16,8,32], index: 2, kind: input, shape index: {}]
  %s3 = inlined_call_operand.vmem [shape: f32[2,16,8], index: 3, kind: input, shape index: {}]
  %s4 = inlined_call_operand.vmem [shape: f32[2,16,1], index: 4, kind: input, shape index: {}]
  %s5 = inlined_call_operand.vmem [shape: bf16[32,32], index: 5, kind: input, shape index: {}]
  %s6 = inlined_call_operand.vmem [shape: bf16[64,32], index: 6, kind: input, shape index: {}]
  %s7 = inlined_call_operand.hbm [shape: f32[1,32], index: 7, kind: input, shape index: {}]
  %s8 = inlined_call_operand.vmem [shape: bf16[32,32], index: 8, kind: input, shape index: {}]
  %s9 = inlined_call_operand.hbm [shape: f32[1,32], index: 9, kind: input, shape index: {}]
  %s10 = inlined_call_operand.hbm [shape: bf16[32,32], index: 10, kind: input, shape index: {}]
  %s11 = inlined_call_operand.vmem [shape: f32[1,32], index: 11, kind: input, shape index: {}]
  %s12 = inlined_call_operand.vmem [shape: f32[1,32], index: 12, kind: input, shape index: {}]
  %s13 = inlined_call_operand.vmem [shape: f32[1,32], index: 13, kind: input, shape index: {}]
  %s14 = inlined_call_operand.hbm [shape: bf16[32,128], index: 14, kind: input, shape index: {}]
  %s15 = inlined_call_operand.vmem [shape: f32[1,128], index: 15, kind: input, shape index: {}]
  %s16 = inlined_call_operand.vmem [shape: bf16[128,32], index: 16, kind: input, shape index: {}]
  %s17 = inlined_call_operand.vmem [shape: f32[1,32], index: 17, kind: input, shape index: {}]
  %s18 = inlined_call_operand.vmem [shape: f32[1,32], index: 18, kind: input, shape index: {}]
  %s19 = inlined_call_operand.vmem [shape: f32[1,32], index: 19, kind: input, shape index: {}]
  %s20 = inlined_call_operand.hbm [shape: f32[2,16,32], index: 20, kind: output, shape index: {}]
  %s21 = sld [smem:[#allocation0]]
  $region133: #{tpu_custom_call.1} parent=0
    _
  %s23 = ssub.s32 1, %s21
  %s24 = scalar_select 0, %s23, %s21
  $region1: #{tpu_custom_call.1} parent=0
    #allocation2 [shape = 'u8[65536]{0}', space=vmem, size = 0x10000, scoped, tag = 'input window, operand 2']
    #allocation3 [shape = 's32[2]{0}', space=sflag, size = 0x8, scoped, tag = 'scoped memory for tpu_custom_call.1']
    #allocation4 [shape = 's32[2]{0}', space=sflag, size = 0x8, scoped, tag = 'scoped memory for tpu_custom_call.1']
    #allocation5 [shape = 'u8[512]{0}', space=vmem, size = 0x400, scoped, tag = 'input window, operand 7, single buffered']
    #allocation6 [shape = 's32[1]{0}', space=sflag, size = 0x4, scoped, tag = 'scoped memory for tpu_custom_call.1']
    #allocation7 [shape = 'u8[512]{0}', space=vmem, size = 0x400, scoped, tag = 'input window, operand 9, single buffered']
    #allocation8 [shape = 'u8[8192]{0}', space=vmem, size = 0x2000, scoped, tag = 'input window, operand 10, single buffered']
    #allocation9 [shape = 's32[1]{0}', space=sflag, size = 0x4, scoped, tag = 'scoped memory for tpu_custom_call.1']
    #allocation10 [shape = 'u8[8192]{0}', space=vmem, size = 0x2000, scoped, tag = 'input window, operand 14, single buffered']
    #allocation11 [shape = 'u8[16384]{0}', space=vmem, size = 0x4000, scoped, tag = 'output window, operand 0']
    %25 = vsyncpa [#allocation3], 0
    %s26 = scalar_lea.sflag [#allocation3], 1
    %27 = vsyncpa %s26, 0
    %28 = vsyncpa [#allocation6], 0
    %29 = vsyncpa [#allocation9], 0
    %30 = vsyncpa [#allocation4], 0
    %s31 = scalar_lea.sflag [#allocation4], 1
    %32 = vsyncpa %s31, 0
    loop: start=0, step=1, limit=4
    $region2: #{tpu_custom_call.1} parent=1 // loop_pre_header
      _
    $region3: #{tpu_custom_call.1} parent=1 // loop_header
      %s34 = sphi 0, %s38
      %p35 = scmp.ge.s32.totalorder %s34, 4
      %s41 = sphi 0, %s53
      %s42 = sphi 0, %s49
      %s43 = sphi 0, %s41
      %s44 = sphi 0, %s42
      %s45 = sphi 0, %s43
      %s46 = sphi 0, %s44
      %s58 = sphi 0, %s60
      %s61 = sphi 0, %s58
      %s62 = sphi 0, %s61
      %s78 = sphi 0, %s62
      %s86 = sphi 0, %s88
      %s89 = sphi 0, %s86
      %s90 = sphi 0, %s89
      %s106 = sphi 0, %s90
      %s114 = sphi 0, %s116
      %s117 = sphi 0, %s114
      %s118 = sphi 0, %s117
      %s134 = sphi 0, %s118
      %s142 = sphi 0, %s144
      %s145 = sphi 0, %s142
      %s146 = sphi 0, %s145
      %s162 = sphi 0, %s146
      %s170 = sphi 0, %s172
      %s173 = sphi 0, %s170
      %s174 = sphi 0, %s173
      %s190 = sphi 0, %s174
      %s194 = sphi 0, %s194
      %s196 = sphi 0, %s194
      %s197 = sphi 0, %s196
      %s211 = sphi 0, %s197
      %s215 = sphi 0, %s215
      %s217 = sphi 0, %s215
      %s218 = sphi 0, %s217
      %s232 = sphi 0, %s218
      %s236 = sphi 0, %s236
      %s238 = sphi 0, %s236
      %s239 = sphi 0, %s238
      %s253 = sphi 0, %s239
      %s257 = sphi 0, %s257
      %s259 = sphi 0, %s257
      %s260 = sphi 0, %s259
      %s274 = sphi 0, %s260
      %s278 = sphi 0, %s278
      %s280 = sphi 0, %s278
      %s281 = sphi 0, %s280
      %s295 = sphi 0, %s281
      %s299 = sphi 0, %s299
      %s301 = sphi 0, %s299
      %s302 = sphi 0, %s301
      %s316 = sphi 0, %s302
      %s320 = sphi 0, %s320
      %s322 = sphi 0, %s320
      %s323 = sphi 0, %s322
      %s337 = sphi 0, %s323
      %s341 = sphi 0, %s341
      %s343 = sphi 0, %s341
      %s344 = sphi 0, %s343
      %s358 = sphi 0, %s344
      %s362 = sphi 0, %s362
      %s364 = sphi 0, %s362
      %s365 = sphi 0, %s364
      %s379 = sphi 0, %s365
      %s383 = sphi 0, %s383
      %s385 = sphi 0, %s383
      %s386 = sphi 0, %s385
      %s400 = sphi 0, %s386
      %s404 = sphi 0, %s404
      %s406 = sphi 0, %s404
      %s407 = sphi 0, %s406
      %s421 = sphi 0, %s407
      %s425 = sphi 0, %s425
      %s427 = sphi 0, %s425
      %s428 = sphi 0, %s427
      %s442 = sphi 0, %s428
      %s446 = sphi 0, %s446
      %s448 = sphi 0, %s446
      %s449 = sphi 0, %s448
      %s463 = sphi 0, %s449
      %s467 = sphi 0, %s467
      %s469 = sphi 0, %s467
      %s470 = sphi 0, %s469
      %s484 = sphi 0, %s470
      %s488 = sphi 0, %s488
      %s490 = sphi 0, %s488
      %s491 = sphi 0, %s490
      %s505 = sphi 0, %s491
      %s513 = sphi 0, %s515
      %s516 = sphi 0, %s513
      %s517 = sphi 0, %s516
      %s533 = sphi 0, %s517
    $region4: #{tpu_custom_call.1} parent=1 // loop_header_branch
      %37 = sbr.rel (%p35) target = $region8
    $region5: #{tpu_custom_call.1} parent=1 // loop_body
      %s39 = ssub.s32 %s34, 1
      %s40 = ssub.s32 %s34, 2
      %s47 = sadd.s32 1, %s42
      %p48 = scmp.ge.s32.totalorder %s47, 1
      %s49 = scalar_select %p48, 0, %s47
      %s50 = sadd.s32 1, %s41
      %s51 = scalar_select %p48, %s50, %s41
      %p52 = scmp.ge.s32.totalorder %s51, 2
      %s53 = scalar_select %p52, 0, %s51
      %s54 = ssub.s32 %s41, %s53
      %s55 = ssub.s32 %s42, %s49
      %s56 = sor.u32 %s54, %s55
      %p57 = scmp.eq.s32.totalorder %s56, 0
      %s59 = sadd.s32 %s58, 1
      %s60 = scalar_select %p57, %s58, %s59
      %p63 = pneg %p57
      %p64 = scmp.eq.s32.totalorder %s34, 1
      %p65 = por %p63, %p64
      %p66 = scmp.ne.s32.totalorder %s58, %s61
      %p67 = scmp.eq.s32.totalorder %s34, 0
      %p68 = por %p66, %p67
      %p69 = scmp.ne.s32.totalorder %s58, %s61
      %p70 = scmp.eq.s32.totalorder %s39, 1
      %p71 = por %p69, %p70
      %p72 = scmp.ne.s32.totalorder %s61, %s62
      %p73 = scmp.eq.s32.totalorder %s39, 0
      %p74 = por %p72, %p73
      %p75 = scmp.ne.s32.totalorder %s61, %s62
      %p76 = scmp.eq.s32.totalorder %s40, 1
      %p77 = por %p75, %p76
      %p79 = scmp.ne.s32.totalorder %s62, %s78
      %p80 = scmp.eq.s32.totalorder %s40, 0
      %p81 = por %p79, %p80
      %s82 = ssub.s32 %s41, %s53
      %s83 = ssub.s32 %s42, %s49
      %s84 = sor.u32 %s82, %s83
      %p85 = scmp.eq.s32.totalorder %s84, 0
      %s87 = sadd.s32 %s86, 1
      %s88 = scalar_select %p85, %s86, %s87
      %p91 = pneg %p85
      %p92 = scmp.eq.s32.totalorder %s34, 1
      %p93 = por %p91, %p92
      %p94 = scmp.ne.s32.totalorder %s86, %s89
      %p95 = scmp.eq.s32.totalorder %s34, 0
      %p96 = por %p94, %p95
      %p97 = scmp.ne.s32.totalorder %s86, %s89
      %p98 = scmp.eq.s32.totalorder %s39, 1
      %p99 = por %p97, %p98
      %p100 = scmp.ne.s32.totalorder %s89, %s90
      %p101 = scmp.eq.s32.totalorder %s39, 0
      %p102 = por %p100, %p101
      %p103 = scmp.ne.s32.totalorder %s89, %s90
      %p104 = scmp.eq.s32.totalorder %s40, 1
      %p105 = por %p103, %p104
      %p107 = scmp.ne.s32.totalorder %s90, %s106
      %p108 = scmp.eq.s32.totalorder %s40, 0
      %p109 = por %p107, %p108
      %s110 = ssub.s32 %s41, %s53
      %s111 = ssub.s32 %s42, %s49
      %s112 = sor.u32 %s110, %s111
      %p113 = scmp.eq.s32.totalorder %s112, 0
      %s115 = sadd.s32 %s114, 1
      %s116 = scalar_select %p113, %s114, %s115
      %p119 = pneg %p113
      %p120 = scmp.eq.s32.totalorder %s34, 1
      %p121 = por %p119, %p120
      %p122 = scmp.ne.s32.totalorder %s114, %s117
      %p123 = scmp.eq.s32.totalorder %s34, 0
      %p124 = por %p122, %p123
      %p125 = scmp.ne.s32.totalorder %s114, %s117
      %p126 = scmp.eq.s32.totalorder %s39, 1
      %p127 = por %p125, %p126
      %p128 = scmp.ne.s32.totalorder %s117, %s118
      %p129 = scmp.eq.s32.totalorder %s39, 0
      %p130 = por %p128, %p129
      %p131 = scmp.ne.s32.totalorder %s117, %s118
      %p132 = scmp.eq.s32.totalorder %s40, 1
      %p133 = por %p131, %p132
      %p135 = scmp.ne.s32.totalorder %s118, %s134
      %p136 = scmp.eq.s32.totalorder %s40, 0
      %p137 = por %p135, %p136
      %s138 = ssub.s32 %s41, %s53
      %s139 = ssub.s32 %s42, %s49
      %s140 = sor.u32 %s138, %s139
      %p141 = scmp.eq.s32.totalorder %s140, 0
      %s143 = sadd.s32 %s142, 1
      %s144 = scalar_select %p141, %s142, %s143
      %p147 = pneg %p141
      %p148 = scmp.eq.s32.totalorder %s34, 1
      %p149 = por %p147, %p148
      %p150 = scmp.ne.s32.totalorder %s142, %s145
      %p151 = scmp.eq.s32.totalorder %s34, 0
      %p152 = por %p150, %p151
      %p153 = scmp.ne.s32.totalorder %s142, %s145
      %p154 = scmp.eq.s32.totalorder %s39, 1
      %p155 = por %p153, %p154
      %p156 = scmp.ne.s32.totalorder %s145, %s146
      %p157 = scmp.eq.s32.totalorder %s39, 0
      %p158 = por %p156, %p157
      %p159 = scmp.ne.s32.totalorder %s145, %s146
      %p160 = scmp.eq.s32.totalorder %s40, 1
      %p161 = por %p159, %p160
      %p163 = scmp.ne.s32.totalorder %s146, %s162
      %p164 = scmp.eq.s32.totalorder %s40, 0
      %p165 = por %p163, %p164
      %s166 = ssub.s32 %s41, %s53
      %s167 = ssub.s32 %s42, %s49
      %s168 = sor.u32 %s166, %s167
      %p169 = scmp.eq.s32.totalorder %s168, 0
      %s171 = sadd.s32 %s170, 1
      %s172 = scalar_select %p169, %s170, %s171
      %p175 = pneg %p169
      %p176 = scmp.eq.s32.totalorder %s34, 1
      %p177 = por %p175, %p176
      %p178 = scmp.ne.s32.totalorder %s170, %s173
      %p179 = scmp.eq.s32.totalorder %s34, 0
      %p180 = por %p178, %p179
      %p181 = scmp.ne.s32.totalorder %s170, %s173
      %p182 = scmp.eq.s32.totalorder %s39, 1
      %p183 = por %p181, %p182
      %p184 = scmp.ne.s32.totalorder %s173, %s174
      %p185 = scmp.eq.s32.totalorder %s39, 0
      %p186 = por %p184, %p185
      %p187 = scmp.ne.s32.totalorder %s173, %s174
      %p188 = scmp.eq.s32.totalorder %s40, 1
      %p189 = por %p187, %p188
      %p191 = scmp.ne.s32.totalorder %s174, %s190
      %p192 = scmp.eq.s32.totalorder %s40, 0
      %p193 = por %p191, %p192
      %s195 = sadd.s32 %s194, 1
      %p198 = scmp.eq.s32.totalorder %s34, 1
      %p199 = scmp.ne.s32.totalorder %s194, %s196
      %p200 = scmp.eq.s32.totalorder %s34, 0
      %p201 = por %p199, %p200
      %p202 = scmp.ne.s32.totalorder %s194, %s196
      %p203 = scmp.eq.s32.totalorder %s39, 1
      %p204 = por %p202, %p203
      %p205 = scmp.ne.s32.totalorder %s196, %s197
      %p206 = scmp.eq.s32.totalorder %s39, 0
      %p207 = por %p205, %p206
      %p208 = scmp.ne.s32.totalorder %s196, %s197
      %p209 = scmp.eq.s32.totalorder %s40, 1
      %p210 = por %p208, %p209
      %p212 = scmp.ne.s32.totalorder %s197, %s211
      %p213 = scmp.eq.s32.totalorder %s40, 0
      %p214 = por %p212, %p213
      %s216 = sadd.s32 %s215, 1
      %p219 = scmp.eq.s32.totalorder %s34, 1
      %p220 = scmp.ne.s32.totalorder %s215, %s217
      %p221 = scmp.eq.s32.totalorder %s34, 0
      %p222 = por %p220, %p221
      %p223 = scmp.ne.s32.totalorder %s215, %s217
      %p224 = scmp.eq.s32.totalorder %s39, 1
      %p225 = por %p223, %p224
      %p226 = scmp.ne.s32.totalorder %s217, %s218
      %p227 = scmp.eq.s32.totalorder %s39, 0
      %p228 = por %p226, %p227
      %p229 = scmp.ne.s32.totalorder %s217, %s218
      %p230 = scmp.eq.s32.totalorder %s40, 1
      %p231 = por %p229, %p230
      %p233 = scmp.ne.s32.totalorder %s218, %s232
      %p234 = scmp.eq.s32.totalorder %s40, 0
      %p235 = por %p233, %p234
      %s237 = sadd.s32 %s236, 1
      %p240 = scmp.eq.s32.totalorder %s34, 1
      %p241 = scmp.ne.s32.totalorder %s236, %s238
      %p242 = scmp.eq.s32.totalorder %s34, 0
      %p243 = por %p241, %p242
      %p244 = scmp.ne.s32.totalorder %s236, %s238
      %p245 = scmp.eq.s32.totalorder %s39, 1
      %p246 = por %p244, %p245
      %p247 = scmp.ne.s32.totalorder %s238, %s239
      %p248 = scmp.eq.s32.totalorder %s39, 0
      %p249 = por %p247, %p248
      %p250 = scmp.ne.s32.totalorder %s238, %s239
      %p251 = scmp.eq.s32.totalorder %s40, 1
      %p252 = por %p250, %p251
      %p254 = scmp.ne.s32.totalorder %s239, %s253
      %p255 = scmp.eq.s32.totalorder %s40, 0
      %p256 = por %p254, %p255
      %s258 = sadd.s32 %s257, 1
      %p261 = scmp.eq.s32.totalorder %s34, 1
      %p262 = scmp.ne.s32.totalorder %s257, %s259
      %p263 = scmp.eq.s32.totalorder %s34, 0
      %p264 = por %p262, %p263
      %p265 = scmp.ne.s32.totalorder %s257, %s259
      %p266 = scmp.eq.s32.totalorder %s39, 1
      %p267 = por %p265, %p266
      %p268 = scmp.ne.s32.totalorder %s259, %s260
      %p269 = scmp.eq.s32.totalorder %s39, 0
      %p270 = por %p268, %p269
      %p271 = scmp.ne.s32.totalorder %s259, %s260
      %p272 = scmp.eq.s32.totalorder %s40, 1
      %p273 = por %p271, %p272
      %p275 = scmp.ne.s32.totalorder %s260, %s274
      %p276 = scmp.eq.s32.totalorder %s40, 0
      %p277 = por %p275, %p276
      %s279 = sadd.s32 %s278, 1
      %p282 = scmp.eq.s32.totalorder %s34, 1
      %p283 = scmp.ne.s32.totalorder %s278, %s280
      %p284 = scmp.eq.s32.totalorder %s34, 0
      %p285 = por %p283, %p284
      %p286 = scmp.ne.s32.totalorder %s278, %s280
      %p287 = scmp.eq.s32.totalorder %s39, 1
      %p288 = por %p286, %p287
      %p289 = scmp.ne.s32.totalorder %s280, %s281
      %p290 = scmp.eq.s32.totalorder %s39, 0
      %p291 = por %p289, %p290
      %p292 = scmp.ne.s32.totalorder %s280, %s281
      %p293 = scmp.eq.s32.totalorder %s40, 1
      %p294 = por %p292, %p293
      %p296 = scmp.ne.s32.totalorder %s281, %s295
      %p297 = scmp.eq.s32.totalorder %s40, 0
      %p298 = por %p296, %p297
      %s300 = sadd.s32 %s299, 1
      %p303 = scmp.eq.s32.totalorder %s34, 1
      %p304 = scmp.ne.s32.totalorder %s299, %s301
      %p305 = scmp.eq.s32.totalorder %s34, 0
      %p306 = por %p304, %p305
      %p307 = scmp.ne.s32.totalorder %s299, %s301
      %p308 = scmp.eq.s32.totalorder %s39, 1
      %p309 = por %p307, %p308
      %p310 = scmp.ne.s32.totalorder %s301, %s302
      %p311 = scmp.eq.s32.totalorder %s39, 0
      %p312 = por %p310, %p311
      %p313 = scmp.ne.s32.totalorder %s301, %s302
      %p314 = scmp.eq.s32.totalorder %s40, 1
      %p315 = por %p313, %p314
      %p317 = scmp.ne.s32.totalorder %s302, %s316
      %p318 = scmp.eq.s32.totalorder %s40, 0
      %p319 = por %p317, %p318
      %s321 = sadd.s32 %s320, 1
      %p324 = scmp.eq.s32.totalorder %s34, 1
      %p325 = scmp.ne.s32.totalorder %s320, %s322
      %p326 = scmp.eq.s32.totalorder %s34, 0
      %p327 = por %p325, %p326
      %p328 = scmp.ne.s32.totalorder %s320, %s322
      %p329 = scmp.eq.s32.totalorder %s39, 1
      %p330 = por %p328, %p329
      %p331 = scmp.ne.s32.totalorder %s322, %s323
      %p332 = scmp.eq.s32.totalorder %s39, 0
      %p333 = por %p331, %p332
      %p334 = scmp.ne.s32.totalorder %s322, %s323
      %p335 = scmp.eq.s32.totalorder %s40, 1
      %p336 = por %p334, %p335
      %p338 = scmp.ne.s32.totalorder %s323, %s337
      %p339 = scmp.eq.s32.totalorder %s40, 0
      %p340 = por %p338, %p339
      %s342 = sadd.s32 %s341, 1
      %p345 = scmp.eq.s32.totalorder %s34, 1
      %p346 = scmp.ne.s32.totalorder %s341, %s343
      %p347 = scmp.eq.s32.totalorder %s34, 0
      %p348 = por %p346, %p347
      %p349 = scmp.ne.s32.totalorder %s341, %s343
      %p350 = scmp.eq.s32.totalorder %s39, 1
      %p351 = por %p349, %p350
      %p352 = scmp.ne.s32.totalorder %s343, %s344
      %p353 = scmp.eq.s32.totalorder %s39, 0
      %p354 = por %p352, %p353
      %p355 = scmp.ne.s32.totalorder %s343, %s344
      %p356 = scmp.eq.s32.totalorder %s40, 1
      %p357 = por %p355, %p356
      %p359 = scmp.ne.s32.totalorder %s344, %s358
      %p360 = scmp.eq.s32.totalorder %s40, 0
      %p361 = por %p359, %p360
      %s363 = sadd.s32 %s362, 1
      %p366 = scmp.eq.s32.totalorder %s34, 1
      %p367 = scmp.ne.s32.totalorder %s362, %s364
      %p368 = scmp.eq.s32.totalorder %s34, 0
      %p369 = por %p367, %p368
      %p370 = scmp.ne.s32.totalorder %s362, %s364
      %p371 = scmp.eq.s32.totalorder %s39, 1
      %p372 = por %p370, %p371
      %p373 = scmp.ne.s32.totalorder %s364, %s365
      %p374 = scmp.eq.s32.totalorder %s39, 0
      %p375 = por %p373, %p374
      %p376 = scmp.ne.s32.totalorder %s364, %s365
      %p377 = scmp.eq.s32.totalorder %s40, 1
      %p378 = por %p376, %p377
      %p380 = scmp.ne.s32.totalorder %s365, %s379
      %p381 = scmp.eq.s32.totalorder %s40, 0
      %p382 = por %p380, %p381
      %s384 = sadd.s32 %s383, 1
      %p387 = scmp.eq.s32.totalorder %s34, 1
      %p388 = scmp.ne.s32.totalorder %s383, %s385
      %p389 = scmp.eq.s32.totalorder %s34, 0
      %p390 = por %p388, %p389
      %p391 = scmp.ne.s32.totalorder %s383, %s385
      %p392 = scmp.eq.s32.totalorder %s39, 1
      %p393 = por %p391, %p392
      %p394 = scmp.ne.s32.totalorder %s385, %s386
      %p395 = scmp.eq.s32.totalorder %s39, 0
      %p396 = por %p394, %p395
      %p397 = scmp.ne.s32.totalorder %s385, %s386
      %p398 = scmp.eq.s32.totalorder %s40, 1
      %p399 = por %p397, %p398
      %p401 = scmp.ne.s32.totalorder %s386, %s400
      %p402 = scmp.eq.s32.totalorder %s40, 0
      %p403 = por %p401, %p402
      %s405 = sadd.s32 %s404, 1
      %p408 = scmp.eq.s32.totalorder %s34, 1
      %p409 = scmp.ne.s32.totalorder %s404, %s406
      %p410 = scmp.eq.s32.totalorder %s34, 0
      %p411 = por %p409, %p410
      %p412 = scmp.ne.s32.totalorder %s404, %s406
      %p413 = scmp.eq.s32.totalorder %s39, 1
      %p414 = por %p412, %p413
      %p415 = scmp.ne.s32.totalorder %s406, %s407
      %p416 = scmp.eq.s32.totalorder %s39, 0
      %p417 = por %p415, %p416
      %p418 = scmp.ne.s32.totalorder %s406, %s407
      %p419 = scmp.eq.s32.totalorder %s40, 1
      %p420 = por %p418, %p419
      %p422 = scmp.ne.s32.totalorder %s407, %s421
      %p423 = scmp.eq.s32.totalorder %s40, 0
      %p424 = por %p422, %p423
      %s426 = sadd.s32 %s425, 1
      %p429 = scmp.eq.s32.totalorder %s34, 1
      %p430 = scmp.ne.s32.totalorder %s425, %s427
      %p431 = scmp.eq.s32.totalorder %s34, 0
      %p432 = por %p430, %p431
      %p433 = scmp.ne.s32.totalorder %s425, %s427
      %p434 = scmp.eq.s32.totalorder %s39, 1
      %p435 = por %p433, %p434
      %p436 = scmp.ne.s32.totalorder %s427, %s428
      %p437 = scmp.eq.s32.totalorder %s39, 0
      %p438 = por %p436, %p437
      %p439 = scmp.ne.s32.totalorder %s427, %s428
      %p440 = scmp.eq.s32.totalorder %s40, 1
      %p441 = por %p439, %p440
      %p443 = scmp.ne.s32.totalorder %s428, %s442
      %p444 = scmp.eq.s32.totalorder %s40, 0
      %p445 = por %p443, %p444
      %s447 = sadd.s32 %s446, 1
      %p450 = scmp.eq.s32.totalorder %s34, 1
      %p451 = scmp.ne.s32.totalorder %s446, %s448
      %p452 = scmp.eq.s32.totalorder %s34, 0
      %p453 = por %p451, %p452
      %p454 = scmp.ne.s32.totalorder %s446, %s448
      %p455 = scmp.eq.s32.totalorder %s39, 1
      %p456 = por %p454, %p455
      %p457 = scmp.ne.s32.totalorder %s448, %s449
      %p458 = scmp.eq.s32.totalorder %s39, 0
      %p459 = por %p457, %p458
      %p460 = scmp.ne.s32.totalorder %s448, %s449
      %p461 = scmp.eq.s32.totalorder %s40, 1
      %p462 = por %p460, %p461
      %p464 = scmp.ne.s32.totalorder %s449, %s463
      %p465 = scmp.eq.s32.totalorder %s40, 0
      %p466 = por %p464, %p465
      %s468 = sadd.s32 %s467, 1
      %p471 = scmp.eq.s32.totalorder %s34, 1
      %p472 = scmp.ne.s32.totalorder %s467, %s469
      %p473 = scmp.eq.s32.totalorder %s34, 0
      %p474 = por %p472, %p473
      %p475 = scmp.ne.s32.totalorder %s467, %s469
      %p476 = scmp.eq.s32.totalorder %s39, 1
      %p477 = por %p475, %p476
      %p478 = scmp.ne.s32.totalorder %s469, %s470
      %p479 = scmp.eq.s32.totalorder %s39, 0
      %p480 = por %p478, %p479
      %p481 = scmp.ne.s32.totalorder %s469, %s470
      %p482 = scmp.eq.s32.totalorder %s40, 1
      %p483 = por %p481, %p482
      %p485 = scmp.ne.s32.totalorder %s470, %s484
      %p486 = scmp.eq.s32.totalorder %s40, 0
      %p487 = por %p485, %p486
      %s489 = sadd.s32 %s488, 1
      %p492 = scmp.eq.s32.totalorder %s34, 1
      %p493 = scmp.ne.s32.totalorder %s488, %s490
      %p494 = scmp.eq.s32.totalorder %s34, 0
      %p495 = por %p493, %p494
      %p496 = scmp.ne.s32.totalorder %s488, %s490
      %p497 = scmp.eq.s32.totalorder %s39, 1
      %p498 = por %p496, %p497
      %p499 = scmp.ne.s32.totalorder %s490, %s491
      %p500 = scmp.eq.s32.totalorder %s39, 0
      %p501 = por %p499, %p500
      %p502 = scmp.ne.s32.totalorder %s490, %s491
      %p503 = scmp.eq.s32.totalorder %s40, 1
      %p504 = por %p502, %p503
      %p506 = scmp.ne.s32.totalorder %s491, %s505
      %p507 = scmp.eq.s32.totalorder %s40, 0
      %p508 = por %p506, %p507
      %s509 = ssub.s32 %s41, %s53
      %s510 = ssub.s32 %s42, %s49
      %s511 = sor.u32 %s509, %s510
      %p512 = scmp.eq.s32.totalorder %s511, 0
      %s514 = sadd.s32 %s513, 1
      %s515 = scalar_select %p512, %s513, %s514
      %p518 = pneg %p512
      %p519 = scmp.eq.s32.totalorder %s34, 1
      %p520 = por %p518, %p519
      %p521 = scmp.ne.s32.totalorder %s513, %s516
      %p522 = scmp.eq.s32.totalorder %s34, 0
      %p523 = por %p521, %p522
      %p524 = scmp.ne.s32.totalorder %s513, %s516
      %p525 = scmp.eq.s32.totalorder %s39, 1
      %p526 = por %p524, %p525
      %p527 = scmp.ne.s32.totalorder %s516, %s517
      %p528 = scmp.eq.s32.totalorder %s39, 0
      %p529 = por %p527, %p528
      %p530 = scmp.ne.s32.totalorder %s516, %s517
      %p531 = scmp.eq.s32.totalorder %s40, 1
      %p532 = por %p530, %p531
      %p534 = scmp.ne.s32.totalorder %s517, %s533
      %p535 = scmp.eq.s32.totalorder %s40, 0
      %p536 = por %p534, %p535
      %p537 = scmp.le.s32.totalorder 1, %s34
      %p538 = scmp.lt.s32.totalorder %s34, 3
      %p539 = pnand %p537, %p538
      %p540 = pneg %p539
      // Predicated region
      $region9: #{tpu_custom_call.1} parent=5 // pred_check
        _
      $region10: #{tpu_custom_call.1} parent=5 // pred_check_branch
        %542 = sbr.rel (%p539) target = $region12
      $region11: #{tpu_custom_call.1} parent=5 // pred_region
        %s543 = ssub.s32 %s34, 1
        // Predicated region
        $region13: #{tpu_custom_call.1} parent=11 // pred_check
          %p544 = pneg %p207
        $region14: #{tpu_custom_call.1} parent=11 // pred_check_branch
          %546 = sbr.rel (%p544) target = $region16
        $region15: #{tpu_custom_call.1} parent=11 // pred_region
          _
        $region16: #{tpu_custom_call.1} parent=11 // pred_fallthru
          _
        // Predicated region
        $region17: #{tpu_custom_call.1} parent=11 // pred_check
          %p547 = pneg %p228
        $region18: #{tpu_custom_call.1} parent=11 // pred_check_branch
          %549 = sbr.rel (%p547) target = $region20
        $region19: #{tpu_custom_call.1} parent=11 // pred_region
          _
        $region20: #{tpu_custom_call.1} parent=11 // pred_fallthru
          _
        // Predicated region
        $region21: #{tpu_custom_call.1} parent=11 // pred_check
          %p550 = pneg %p249
        $region22: #{tpu_custom_call.1} parent=11 // pred_check_branch
          %552 = sbr.rel (%p550) target = $region24
        $region23: #{tpu_custom_call.1} parent=11 // pred_region
          %s554 = ssub.s32 16, 16
          %555 = vsyncadd [#allocation6], %s554
          %s557 = sshll.u32 [#allocation5], 4
          %s558 = int_to_ptr.vmem [resolvable:$true] %s557
          %560 = dma.hbm_to_vmem [thread:$0]  %s7, 16, %s558, [#allocation6]
        $region24: #{tpu_custom_call.1} parent=11 // pred_fallthru
          _
        // Predicated region
        $region25: #{tpu_custom_call.1} parent=11 // pred_check
          %p561 = pneg %p270
        $region26: #{tpu_custom_call.1} parent=11 // pred_check_branch
          %563 = sbr.rel (%p561) target = $region28
        $region27: #{tpu_custom_call.1} parent=11 // pred_region
          _
        $region28: #{tpu_custom_call.1} parent=11 // pred_fallthru
          _
        // Predicated region
        $region29: #{tpu_custom_call.1} parent=11 // pred_check
          %p564 = pneg %p291
        $region30: #{tpu_custom_call.1} parent=11 // pred_check_branch
          %566 = sbr.rel (%p564) target = $region32
        $region31: #{tpu_custom_call.1} parent=11 // pred_region
          %s568 = ssub.s32 16, 16
          %569 = vsyncadd [#allocation6], %s568
          %s571 = sshll.u32 [#allocation7], 4
          %s572 = int_to_ptr.vmem [resolvable:$true] %s571
          %574 = dma.hbm_to_vmem [thread:$0]  %s9, 16, %s572, [#allocation6]
        $region32: #{tpu_custom_call.1} parent=11 // pred_fallthru
          _
        // Predicated region
        $region33: #{tpu_custom_call.1} parent=11 // pred_check
          %p575 = pneg %p312
        $region34: #{tpu_custom_call.1} parent=11 // pred_check_branch
          %577 = sbr.rel (%p575) target = $region36
        $region35: #{tpu_custom_call.1} parent=11 // pred_region
          %s579 = ssub.s32 256, 256
          %580 = vsyncadd [#allocation9], %s579
          %s581 = sshll.u32 [#allocation8], 4
          %s582 = int_to_ptr.vmem [resolvable:$true] %s581
          %587 = dma.hbm_to_vmem [thread:$0]  %s10, 256, %s582, [#allocation9], 64, 64, 4
        $region36: #{tpu_custom_call.1} parent=11 // pred_fallthru
          _
        // Predicated region
        $region37: #{tpu_custom_call.1} parent=11 // pred_check
          %p588 = pneg %p333
        $region38: #{tpu_custom_call.1} parent=11 // pred_check_branch
          %590 = sbr.rel (%p588) target = $region40
        $region39: #{tpu_custom_call.1} parent=11 // pred_region
          _
        $region40: #{tpu_custom_call.1} parent=11 // pred_fallthru
          _
        // Predicated region
        $region41: #{tpu_custom_call.1} parent=11 // pred_check
          %p591 = pneg %p354
        $region42: #{tpu_custom_call.1} parent=11 // pred_check_branch
          %593 = sbr.rel (%p591) target = $region44
        $region43: #{tpu_custom_call.1} parent=11 // pred_region
          _
        $region44: #{tpu_custom_call.1} parent=11 // pred_fallthru
          _
        // Predicated region
        $region45: #{tpu_custom_call.1} parent=11 // pred_check
          %p594 = pneg %p375
        $region46: #{tpu_custom_call.1} parent=11 // pred_check_branch
          %596 = sbr.rel (%p594) target = $region48
        $region47: #{tpu_custom_call.1} parent=11 // pred_region
          _
        $region48: #{tpu_custom_call.1} parent=11 // pred_fallthru
          _
        // Predicated region
        $region49: #{tpu_custom_call.1} parent=11 // pred_check
          %p597 = pneg %p396
        $region50: #{tpu_custom_call.1} parent=11 // pred_check_branch
          %599 = sbr.rel (%p597) target = $region52
        $region51: #{tpu_custom_call.1} parent=11 // pred_region
          %s601 = ssub.s32 256, 256
          %602 = vsyncadd [#allocation9], %s601
          %s603 = sshll.u32 [#allocation10], 4
          %s604 = int_to_ptr.vmem [resolvable:$true] %s603
          %609 = dma.hbm_to_vmem [thread:$0]  %s14, 256, %s604, [#allocation9], 64, 64, 4
        $region52: #{tpu_custom_call.1} parent=11 // pred_fallthru
          _
        // Predicated region
        $region53: #{tpu_custom_call.1} parent=11 // pred_check
          %p610 = pneg %p417
        $region54: #{tpu_custom_call.1} parent=11 // pred_check_branch
          %612 = sbr.rel (%p610) target = $region56
        $region55: #{tpu_custom_call.1} parent=11 // pred_region
          _
        $region56: #{tpu_custom_call.1} parent=11 // pred_fallthru
          _
        // Predicated region
        $region57: #{tpu_custom_call.1} parent=11 // pred_check
          %p613 = pneg %p438
        $region58: #{tpu_custom_call.1} parent=11 // pred_check_branch
          %615 = sbr.rel (%p613) target = $region60
        $region59: #{tpu_custom_call.1} parent=11 // pred_region
          _
        $region60: #{tpu_custom_call.1} parent=11 // pred_fallthru
          _
        // Predicated region
        $region61: #{tpu_custom_call.1} parent=11 // pred_check
          %p616 = pneg %p459
        $region62: #{tpu_custom_call.1} parent=11 // pred_check_branch
          %618 = sbr.rel (%p616) target = $region64
        $region63: #{tpu_custom_call.1} parent=11 // pred_region
          _
        $region64: #{tpu_custom_call.1} parent=11 // pred_fallthru
          _
        // Predicated region
        $region65: #{tpu_custom_call.1} parent=11 // pred_check
          %p619 = pneg %p480
        $region66: #{tpu_custom_call.1} parent=11 // pred_check_branch
          %621 = sbr.rel (%p619) target = $region68
        $region67: #{tpu_custom_call.1} parent=11 // pred_region
          _
        $region68: #{tpu_custom_call.1} parent=11 // pred_fallthru
          _
        // Predicated region
        $region69: #{tpu_custom_call.1} parent=11 // pred_check
          %p622 = pneg %p501
        $region70: #{tpu_custom_call.1} parent=11 // pred_check_branch
          %624 = sbr.rel (%p622) target = $region72
        $region71: #{tpu_custom_call.1} parent=11 // pred_region
          _
        $region72: #{tpu_custom_call.1} parent=11 // pred_fallthru
          _
      $region12: #{tpu_custom_call.1} parent=5 // pred_fallthru
        _
      %p625 = scmp.lt.s32.totalorder %s34, 2
      // Predicated region
      $region73: #{tpu_custom_call.1} parent=5 // pred_check
        %p626 = pneg %p625
      $region74: #{tpu_custom_call.1} parent=5 // pred_check_branch
        %628 = sbr.rel (%p626) target = $region76
      $region75: #{tpu_custom_call.1} parent=5 // pred_region
        // Predicated region
        $region77: #{tpu_custom_call.1} parent=75 // pred_check
          %p629 = pneg %p68
        $region78: #{tpu_custom_call.1} parent=75 // pred_check_branch
          %631 = sbr.rel (%p629) target = $region80
        $region79: #{tpu_custom_call.1} parent=75 // pred_region
          %s632 = smul.u32 2, %s42
          %p633 = scmp.lt.s32.totalorder %s41, 1
          %s634 = scalar_select %p633, %s41, 1
          %p635 = scmp.lt.s32.totalorder %s632, 1
          %s636 = scalar_select %p635, %s632, 1
          %s637 = smul.addr %s634, 2
          %s638 = sadd.s32 %s636, %s637
          %s639 = smul.addr %s638, 8
          %s640 = scalar_lea.vmem %s0, %s639
          %s641 = smul.u32 2, %s42
        $region80: #{tpu_custom_call.1} parent=75 // pred_fallthru
          _
        // Predicated region
        $region81: #{tpu_custom_call.1} parent=75 // pred_check
          %p642 = pneg %p96
        $region82: #{tpu_custom_call.1} parent=75 // pred_check_branch
          %644 = sbr.rel (%p642) target = $region84
        $region83: #{tpu_custom_call.1} parent=75 // pred_region
          %s645 = smul.u32 16, %s42
          %p646 = scmp.lt.s32.totalorder %s41, 1
          %s647 = scalar_select %p646, %s41, 1
          %p648 = scmp.lt.s32.totalorder %s645, 15
          %s649 = scalar_select %p648, %s645, 15
          %s650 = smul.addr %s647, 16
          %s651 = sadd.s32 %s649, %s650
          %s652 = smul.addr %s651, 4
          %s653 = scalar_lea.vmem %s1, %s652
          %s654 = smul.u32 16, %s42
        $region84: #{tpu_custom_call.1} parent=75 // pred_fallthru
          _
        // Predicated region
        $region85: #{tpu_custom_call.1} parent=75 // pred_check
          %p655 = pneg %p124
        $region86: #{tpu_custom_call.1} parent=75 // pred_check_branch
          %657 = sbr.rel (%p655) target = $region88
        $region87: #{tpu_custom_call.1} parent=75 // pred_region
          %s658 = sand.u32 %s114, 1
          %s659 = scalar_lea.sflag [#allocation3], %s658
          %s660 = sand.u32 %s114, 1
          %s661 = smul.addr %s660, 64
          %s662 = scalar_lea.vmem [#allocation2], %s661
          %s663 = smul.u32 16, %s42
          %s665 = ssub.s32 1024, 1024
          %666 = vsyncadd %s659, %s665
          %s667 = smul.addr %s41, 16
          %s668 = sadd.s32 %s663, %s667
          %s669 = smul.addr %s668, 64
          %s670 = scalar_lea.hbm %s2, %s669
          %s671 = sshll.u32 %s662, 4
          %s672 = int_to_ptr.vmem [resolvable:$true] %s671
          %677 = dma.hbm_to_vmem [thread:$0]  %s670, 1024, %s672, %s659, 64, 64, 4
        $region88: #{tpu_custom_call.1} parent=75 // pred_fallthru
          _
        // Predicated region
        $region89: #{tpu_custom_call.1} parent=75 // pred_check
          %p678 = pneg %p152
        $region90: #{tpu_custom_call.1} parent=75 // pred_check_branch
          %680 = sbr.rel (%p678) target = $region92
        $region91: #{tpu_custom_call.1} parent=75 // pred_region
          %s681 = smul.u32 2, %s42
          %p682 = scmp.lt.s32.totalorder %s41, 1
          %s683 = scalar_select %p682, %s41, 1
          %p684 = scmp.lt.s32.totalorder %s681, 1
          %s685 = scalar_select %p684, %s681, 1
          %s686 = smul.addr %s683, 2
          %s687 = sadd.s32 %s685, %s686
          %s688 = smul.addr %s687, 8
          %s689 = scalar_lea.vmem %s3, %s688
          %s690 = smul.u32 2, %s42
        $region92: #{tpu_custom_call.1} parent=75 // pred_fallthru
          _
        // Predicated region
        $region93: #{tpu_custom_call.1} parent=75 // pred_check
          %p691 = pneg %p180
        $region94: #{tpu_custom_call.1} parent=75 // pred_check_branch
          %693 = sbr.rel (%p691) target = $region96
        $region95: #{tpu_custom_call.1} parent=75 // pred_region
          %s694 = smul.u32 2, %s42
          %p695 = scmp.lt.s32.totalorder %s41, 1
          %s696 = scalar_select %p695, %s41, 1
          %p697 = scmp.lt.s32.totalorder %s694, 1
          %s698 = scalar_select %p697, %s694, 1
          %s699 = smul.addr %s696, 2
          %s700 = sadd.s32 %s698, %s699
          %s701 = smul.addr %s700, 8
          %s702 = scalar_lea.vmem %s4, %s701
          %s703 = smul.u32 2, %s42
        $region96: #{tpu_custom_call.1} parent=75 // pred_fallthru
          _
      $region76: #{tpu_custom_call.1} parent=5 // pred_fallthru
        _
      %p704 = scmp.le.s32.totalorder 1, %s34
      %p705 = scmp.lt.s32.totalorder %s34, 3
      %p706 = pnand %p704, %p705
      %p707 = pneg %p706
      // Predicated region
      $region97: #{tpu_custom_call.1} parent=5 // pred_check
        _
      $region98: #{tpu_custom_call.1} parent=5 // pred_check_branch
        %709 = sbr.rel (%p706) target = $region100
      $region99: #{tpu_custom_call.1} parent=5 // pred_region
        %s710 = ssub.s32 %s34, 1
        %s711 = sand.u32 %s117, 1
        %s712 = scalar_lea.sflag [#allocation3], %s711
        %s713 = sand.u32 %s117, 1
        %s714 = smul.addr %s713, 64
        %s715 = scalar_lea.vmem [#allocation2], %s714
        // Predicated region
        $region101: #{tpu_custom_call.1} parent=99 // pred_check
          %p716 = pneg %p130
        $region102: #{tpu_custom_call.1} parent=99 // pred_check_branch
          %718 = sbr.rel (%p716) target = $region104
        $region103: #{tpu_custom_call.1} parent=99 // pred_region
          %719 = dma.done %s712, 1024
        $region104: #{tpu_custom_call.1} parent=99 // pred_fallthru
          _
        // Predicated region
        $region105: #{tpu_custom_call.1} parent=99 // pred_check
          %p720 = pneg %p249
        $region106: #{tpu_custom_call.1} parent=99 // pred_check_branch
          %722 = sbr.rel (%p720) target = $region108
        $region107: #{tpu_custom_call.1} parent=99 // pred_region
          %723 = dma.done [#allocation6], 16
        $region108: #{tpu_custom_call.1} parent=99 // pred_fallthru
          _
        // Predicated region
        $region109: #{tpu_custom_call.1} parent=99 // pred_check
          %p724 = pneg %p291
        $region110: #{tpu_custom_call.1} parent=99 // pred_check_branch
          %726 = sbr.rel (%p724) target = $region112
        $region111: #{tpu_custom_call.1} parent=99 // pred_region
          %727 = dma.done [#allocation6], 16
        $region112: #{tpu_custom_call.1} parent=99 // pred_fallthru
          _
        // Predicated region
        $region113: #{tpu_custom_call.1} parent=99 // pred_check
          %p728 = pneg %p312
        $region114: #{tpu_custom_call.1} parent=99 // pred_check_branch
          %730 = sbr.rel (%p728) target = $region116
        $region115: #{tpu_custom_call.1} parent=99 // pred_region
          %731 = dma.done [#allocation9], 256
        $region116: #{tpu_custom_call.1} parent=99 // pred_fallthru
          _
        // Predicated region
        $region117: #{tpu_custom_call.1} parent=99 // pred_check
          %p732 = pneg %p396
        $region118: #{tpu_custom_call.1} parent=99 // pred_check_branch
          %734 = sbr.rel (%p732) target = $region120
        $region119: #{tpu_custom_call.1} parent=99 // pred_region
          %735 = dma.done [#allocation9], 256
        $region120: #{tpu_custom_call.1} parent=99 // pred_fallthru
          _
        %s736 = smul.u32 2, %s44
        %p737 = scmp.lt.s32.totalorder %s43, 1
        %s738 = scalar_select %p737, %s43, 1
        %p739 = scmp.lt.s32.totalorder %s736, 1
        %s740 = scalar_select %p739, %s736, 1
        %s741 = smul.addr %s738, 2
        %s742 = sadd.s32 %s740, %s741
        %s743 = smul.addr %s742, 8
        %s744 = scalar_lea.vmem %s0, %s743
        %p745 = pneg %p74
        %p746 = pneg %p71
        %s747 = smul.u32 16, %s44
        %p748 = scmp.lt.s32.totalorder %s43, 1
        %s749 = scalar_select %p748, %s43, 1
        %p750 = scmp.lt.s32.totalorder %s747, 15
        %s751 = scalar_select %p750, %s747, 15
        %s752 = smul.addr %s749, 16
        %s753 = sadd.s32 %s751, %s752
        %s754 = smul.addr %s753, 4
        %s755 = scalar_lea.vmem %s1, %s754
        %p756 = pneg %p102
        %p757 = pneg %p99
        %s758 = sand.u32 %s117, 1
        %s759 = scalar_lea.sflag [#allocation3], %s758
        %s760 = sand.u32 %s117, 1
        %s761 = smul.addr %s760, 64
        %s762 = scalar_lea.vmem [#allocation2], %s761
        %p763 = pneg %p130
        %p764 = pneg %p127
        %s765 = smul.u32 2, %s44
        %p766 = scmp.lt.s32.totalorder %s43, 1
        %s767 = scalar_select %p766, %s43, 1
        %p768 = scmp.lt.s32.totalorder %s765, 1
        %s769 = scalar_select %p768, %s765, 1
        %s770 = smul.addr %s767, 2
        %s771 = sadd.s32 %s769, %s770
        %s772 = smul.addr %s771, 8
        %s773 = scalar_lea.vmem %s3, %s772
        %p774 = pneg %p158
        %p775 = pneg %p155
        %s776 = smul.u32 2, %s44
        %p777 = scmp.lt.s32.totalorder %s43, 1
        %s778 = scalar_select %p777, %s43, 1
        %p779 = scmp.lt.s32.totalorder %s776, 1
        %s780 = scalar_select %p779, %s776, 1
        %s781 = smul.addr %s778, 2
        %s782 = sadd.s32 %s780, %s781
        %s783 = smul.addr %s782, 8
        %s784 = scalar_lea.vmem %s4, %s783
        %p785 = pneg %p186
        %p786 = pneg %p183
        %p787 = pneg %p207
        %p788 = pneg %p204
        %p789 = pneg %p228
        %p790 = pneg %p225
        %p791 = pneg %p249
        %p792 = pneg %p246
        %p793 = pneg %p270
        %p794 = pneg %p267
        %p795 = pneg %p291
        %p796 = pneg %p288
        %p797 = pneg %p312
        %p798 = pneg %p309
        %p799 = pneg %p333
        %p800 = pneg %p330
        %p801 = pneg %p354
        %p802 = pneg %p351
        %p803 = pneg %p375
        %p804 = pneg %p372
        %p805 = pneg %p396
        %p806 = pneg %p393
        %p807 = pneg %p417
        %p808 = pneg %p414
        %p809 = pneg %p438
        %p810 = pneg %p435
        %p811 = pneg %p459
        %p812 = pneg %p456
        %p813 = pneg %p480
        %p814 = pneg %p477
        %p815 = pneg %p501
        %p816 = pneg %p498
        %p817 = pneg %p529
        %p818 = pneg %p526
        %s819 = sand.u32 %s516, 1
        %s820 = scalar_lea.sflag [#allocation4], %s819
        %s821 = sand.u32 %s516, 1
        %s822 = smul.addr %s821, 16
        %s823 = scalar_lea.vmem [#allocation11], %s822
        %s824 = smul.u32 2, %s44
        %p825 = scmp.lt.s32.totalorder %s43, 1
        %s826 = scalar_select %p825, %s43, 1
        %p827 = scmp.lt.s32.totalorder %s824, 1
        %s828 = scalar_select %p827, %s824, 1
        %s829 = smul.addr %s826, 2
        %s830 = sadd.s32 %s828, %s829
        %s831 = smul.addr %s830, 8
        %s832 = scalar_lea.vmem %s0, %s831
        %s833 = smul.u32 2, %s44
        %s834 = smul.u32 16, %s44
        %p835 = scmp.lt.s32.totalorder %s43, 1
        %s836 = scalar_select %p835, %s43, 1
        %p837 = scmp.lt.s32.totalorder %s834, 15
        %s838 = scalar_select %p837, %s834, 15
        %s839 = smul.addr %s836, 16
        %s840 = sadd.s32 %s838, %s839
        %s841 = smul.addr %s840, 4
        %s842 = scalar_lea.vmem %s1, %s841
        %s843 = smul.u32 16, %s44
        %s844 = smul.u32 16, %s44
        %s845 = smul.u32 2, %s44
        %p846 = scmp.lt.s32.totalorder %s43, 1
        %s847 = scalar_select %p846, %s43, 1
        %p848 = scmp.lt.s32.totalorder %s845, 1
        %s849 = scalar_select %p848, %s845, 1
        %s850 = smul.addr %s847, 2
        %s851 = sadd.s32 %s849, %s850
        %s852 = smul.addr %s851, 8
        %s853 = scalar_lea.vmem %s3, %s852
        %s854 = smul.u32 2, %s44
        %s855 = smul.u32 2, %s44
        %p856 = scmp.lt.s32.totalorder %s43, 1
        %s857 = scalar_select %p856, %s43, 1
        %p858 = scmp.lt.s32.totalorder %s855, 1
        %s859 = scalar_select %p858, %s855, 1
        %s860 = smul.addr %s857, 2
        %s861 = sadd.s32 %s859, %s860
        %s862 = smul.addr %s861, 8
        %s863 = scalar_lea.vmem %s4, %s862
        %s864 = smul.u32 2, %s44
        %s865 = smul.u32 2, %s44
        %v867 = vld [vmem:[%s832] sm:$0xff]
        %v868 = vld [vmem:[%s832 + $0x8] sm:$0xff]
        %v869 = vld [vmem:[%s842] sm:$0xf]
        %v870 = vld [vmem:[%s842 + $0x4] sm:$0xf]
        %v871 = vld [vmem:[%s842 + $0x8] sm:$0xf]
        %v872 = vld [vmem:[%s842 + $0xc] sm:$0xf]
        %v873 = vld [vmem:[%s842 + $0x10] sm:$0xf]
        %v874 = vld [vmem:[%s842 + $0x14] sm:$0xf]
        %v875 = vld [vmem:[%s842 + $0x18] sm:$0xf]
        %v876 = vld [vmem:[%s842 + $0x1c] sm:$0xf]
        %v877 = vld [vmem:[%s842 + $0x20] sm:$0xf]
        %v878 = vld [vmem:[%s842 + $0x24] sm:$0xf]
        %v879 = vld [vmem:[%s842 + $0x28] sm:$0xf]
        %v880 = vld [vmem:[%s842 + $0x2c] sm:$0xf]
        %v881 = vld [vmem:[%s842 + $0x30] sm:$0xf]
        %v882 = vld [vmem:[%s842 + $0x34] sm:$0xf]
        %v883 = vld [vmem:[%s842 + $0x38] sm:$0xf]
        %v884 = vld [vmem:[%s842 + $0x3c] sm:$0xf]
        %v885 = vld [vmem:[%s715] sm:$0xf]
        %v886 = vld [vmem:[%s715 + $0x4] sm:$0xf]
        %v887 = vld [vmem:[%s715 + $0x8] sm:$0xf]
        %v888 = vld [vmem:[%s715 + $0xc] sm:$0xf]
        %v889 = vld [vmem:[%s715 + $0x10] sm:$0xf]
        %v890 = vld [vmem:[%s715 + $0x14] sm:$0xf]
        %v891 = vld [vmem:[%s715 + $0x18] sm:$0xf]
        %v892 = vld [vmem:[%s715 + $0x1c] sm:$0xf]
        %v893 = vld [vmem:[%s715 + $0x20] sm:$0xf]
        %v894 = vld [vmem:[%s715 + $0x24] sm:$0xf]
        %v895 = vld [vmem:[%s715 + $0x28] sm:$0xf]
        %v896 = vld [vmem:[%s715 + $0x2c] sm:$0xf]
        %v897 = vld [vmem:[%s715 + $0x30] sm:$0xf]
        %v898 = vld [vmem:[%s715 + $0x34] sm:$0xf]
        %v899 = vld [vmem:[%s715 + $0x38] sm:$0xf]
        %v900 = vld [vmem:[%s715 + $0x3c] sm:$0xf]
        %v901 = vld [vmem:[%s853] sm:$0xff]
        %v902 = vld [vmem:[%s853 + $0x8] sm:$0xff]
        %v903 = vld [vmem:[%s863] sm:$0xff]
        %v904 = vld [vmem:[%s863 + $0x8] sm:$0xff]
        %v905 = vpack.c.bf16 %v868, %v867
        %v906 = vld [vmem:[%s5] sm:$0xf]
        %v907 = vld [vmem:[%s5 + $0x4] sm:$0xf]
        %v908 = vld [vmem:[%s5 + $0x8] sm:$0xf]
        %v909 = vld [vmem:[%s5 + $0xc] sm:$0xf]
        %v910 = vld [vmem:[#allocation5] sm:$0x1]
        %v912 = vlaneseq
        %v913 = vshrl.u32 %v912, 7
        %v914 = vsub.s32 0, %v913
        %v915 = vrot.slane %v910, %v914
        %v921 = vunpack.c.l.b16 %v906
        %v922 = vunpack.c.l.b16 %v907
        %v923 = vunpack.c.l.b16 %v908
        %v924 = vunpack.c.l.b16 %v909
        %v925 = vpack.c.b16 %v922, %v921
        %v926 = vpack.c.b16 %v924, %v923
        %vm929 = vcmask 261120
        %v931 = vsel %vm929, %v905, 0
        %933 = vmatprep.subr.bf16.mxu0 0
        %934 = vmatpush1.bf16.msra.mxu0 0
        %935 = vmatprep.subr.bf16.mxu0 0
        %936 = vmatpush1.bf16.msra.mxu0 0
        %937 = vmatprep.subr.bf16.mxu0 0
        %938 = vmatpush1.bf16.msra.mxu0 0
        %939 = vmatprep.subr.bf16.mxu0 0
        %940 = vmatpush1.bf16.msra.mxu0 0
        %941 = vmatprep.subr.bf16.mxu0 0
        %942 = vmatpush1.bf16.msra.mxu0 0
        %943 = vmatprep.subr.bf16.mxu0 0
        %944 = vmatpush1.bf16.msra.mxu0 0
        %945 = vmatprep.subr.bf16.mxu0 0
        %946 = vmatpush1.bf16.msra.mxu0 %v926
        %947 = vmatprep.subr.bf16.mxu0 0
        %948 = vmatpush1.bf16.msra.mxu0 %v925
        %949 = vmatprep.subr.bf16.mxu0 0
        %950 = vmatpush2.bf16.msra.mxu0 0
        %951 = vmatprep.subr.bf16.mxu0 0
        %952 = vmatpush2.bf16.msra.mxu0 0
        %953 = vmatprep.subr.bf16.mxu0 0
        %954 = vmatpush2.bf16.msra.mxu0 0
        %955 = vmatprep.subr.bf16.mxu0 0
        %956 = vmatpush2.bf16.msra.mxu0 0
        %957 = vmatprep.subr.bf16.mxu0 0
        %958 = vmatpush2.bf16.msra.mxu0 0
        %959 = vmatprep.subr.bf16.mxu0 0
        %960 = vmatpush2.bf16.msra.mxu0 0
        %961 = vmatprep.subr.bf16.mxu0 0
        %962 = vmatpush2.bf16.msra.mxu0 0
        %963 = vmatprep.subr.bf16.mxu0 0
        %964 = vmatpush2.bf16.msra.mxu0 0
        %965 = vmatprep.mubr.bf16.mxu0 0
        %966 = vmatmul.mubr.bf16.gmra.mxu0 %v931
        %v967 = vpop.f32.mrf.mxu0
        %v968 = vadd.f32 %v915, %v967
        %v969 = vpop.f32.mrf.mxu0
        %v970 = vpop.f32.mrf.mxu0
        %v971 = vadd.f32 %v915, %v970
        %v972 = vpop.f32.mrf.mxu0
        %973 = vdwg.mxu0
        %v974 = vld [vmem:[%s6] sm:$0xf]
        %v975 = vld [vmem:[%s6 + $0x4] sm:$0xf]
        %v976 = vld [vmem:[%s6 + $0x8] sm:$0xf]
        %v977 = vld [vmem:[%s6 + $0xc] sm:$0xf]
        %v978 = vld [vmem:[%s6 + $0x10] sm:$0xf]
        %v979 = vld [vmem:[%s6 + $0x14] sm:$0xf]
        %v980 = vld [vmem:[%s6 + $0x18] sm:$0xf]
        %v981 = vld [vmem:[%s6 + $0x1c] sm:$0xf]
        %v998 = vunpack.c.l.b16 %v885
        %v999 = vunpack.c.l.b16 %v886
        %v1000 = vunpack.c.l.b16 %v887
        %v1001 = vunpack.c.l.b16 %v888
        %v1002 = vunpack.c.l.b16 %v889
        %v1003 = vunpack.c.l.b16 %v890
        %v1004 = vunpack.c.l.b16 %v891
        %v1005 = vunpack.c.l.b16 %v892
        %v1006 = vunpack.c.l.b16 %v893
        %v1007 = vunpack.c.l.b16 %v894
        %v1008 = vunpack.c.l.b16 %v895
        %v1009 = vunpack.c.l.b16 %v896
        %v1010 = vunpack.c.l.b16 %v897
        %v1011 = vunpack.c.l.b16 %v898
        %v1012 = vunpack.c.l.b16 %v899
        %v1013 = vunpack.c.l.b16 %v900
        %v1014 = vpack.c.b16 %v999, %v998
        %v1015 = vpack.c.b16 %v1001, %v1000
        %v1016 = vpack.c.b16 %v1003, %v1002
        %v1017 = vpack.c.b16 %v1005, %v1004
        %v1018 = vpack.c.b16 %v1007, %v1006
        %v1019 = vpack.c.b16 %v1009, %v1008
        %v1020 = vpack.c.b16 %v1011, %v1010
        %v1021 = vpack.c.b16 %v1013, %v1012
        %v1026 = vunpack.c.l.b16 %v978
        %v1027 = vunpack.c.l.b16 %v979
        %v1028 = vunpack.c.l.b16 %v980
        %v1029 = vunpack.c.l.b16 %v981
        %v1030 = vpack.c.b16 %v1027, %v1026
        %v1031 = vpack.c.b16 %v1029, %v1028
        %v1035 = vsel %vm929, %v1014, 0
        %v1038 = vsel %vm929, %v1015, 0
        %v1041 = vsel %vm929, %v1016, 0
        %v1044 = vsel %vm929, %v1017, 0
        %v1047 = vsel %vm929, %v1018, 0
        %v1050 = vsel %vm929, %v1019, 0
        %v1053 = vsel %vm929, %v1020, 0
        %v1056 = vsel %vm929, %v1021, 0
        %1058 = vmatprep.subr.bf16.mxu0 0
        %1059 = vmatpush1.bf16.msra.mxu0 0
        %1060 = vmatprep.subr.bf16.mxu0 0
        %1061 = vmatpush1.bf16.msra.mxu0 0
        %1062 = vmatprep.subr.bf16.mxu0 0
        %1063 = vmatpush1.bf16.msra.mxu0 0
        %1064 = vmatprep.subr.bf16.mxu0 0
        %1065 = vmatpush1.bf16.msra.mxu0 0
        %1066 = vmatprep.subr.bf16.mxu0 0
        %1067 = vmatpush1.bf16.msra.mxu0 0
        %1068 = vmatprep.subr.bf16.mxu0 0
        %1069 = vmatpush1.bf16.msra.mxu0 0
        %1070 = vmatprep.subr.bf16.mxu0 0
        %1071 = vmatpush1.bf16.msra.mxu0 %v1031
        %1072 = vmatprep.subr.bf16.mxu0 0
        %1073 = vmatpush1.bf16.msra.mxu0 %v1030
        %1074 = vmatprep.subr.bf16.mxu0 0
        %1075 = vmatpush2.bf16.msra.mxu0 0
        %1076 = vmatprep.subr.bf16.mxu0 0
        %1077 = vmatpush2.bf16.msra.mxu0 0
        %1078 = vmatprep.subr.bf16.mxu0 0
        %1079 = vmatpush2.bf16.msra.mxu0 0
        %1080 = vmatprep.subr.bf16.mxu0 0
        %1081 = vmatpush2.bf16.msra.mxu0 0
        %1082 = vmatprep.subr.bf16.mxu0 0
        %1083 = vmatpush2.bf16.msra.mxu0 0
        %1084 = vmatprep.subr.bf16.mxu0 0
        %1085 = vmatpush2.bf16.msra.mxu0 0
        %1086 = vmatprep.subr.bf16.mxu0 0
        %1087 = vmatpush2.bf16.msra.mxu0 0
        %1088 = vmatprep.subr.bf16.mxu0 0
        %1089 = vmatpush2.bf16.msra.mxu0 0
        %1090 = vmatprep.mubr.bf16.mxu0 0
        %1091 = vmatmul.mubr.bf16.gmra.mxu0 %v1035
        %v1092 = vpop.f32.mrf.mxu0
        %v1093 = vadd.f32 0.0, %v1092
        %v1094 = vpop.f32.mrf.mxu0
        %v1095 = vpop.f32.mrf.mxu0
        %v1096 = vadd.f32 0.0, %v1095
        %v1097 = vpop.f32.mrf.mxu0
        %1098 = vmatprep.mubr.bf16.mxu0 0
        %1099 = vmatmul.mubr.bf16.gmra.mxu0 %v1038
        %v1100 = vpop.f32.mrf.mxu0
        %v1101 = vadd.f32 0.0, %v1100
        %v1102 = vpop.f32.mrf.mxu0
        %v1103 = vpop.f32.mrf.mxu0
        %v1104 = vadd.f32 0.0, %v1103
        %v1105 = vpop.f32.mrf.mxu0
        %1106 = vmatprep.mubr.bf16.mxu0 0
        %1107 = vmatmul.mubr.bf16.gmra.mxu0 %v1041
        %v1108 = vpop.f32.mrf.mxu0
        %v1109 = vadd.f32 0.0, %v1108
        %v1110 = vpop.f32.mrf.mxu0
        %v1111 = vpop.f32.mrf.mxu0
        %v1112 = vadd.f32 0.0, %v1111
        %v1113 = vpop.f32.mrf.mxu0
        %1114 = vmatprep.mubr.bf16.mxu0 0
        %1115 = vmatmul.mubr.bf16.gmra.mxu0 %v1044
        %v1116 = vpop.f32.mrf.mxu0
        %v1117 = vadd.f32 0.0, %v1116
        %v1118 = vpop.f32.mrf.mxu0
        %v1119 = vpop.f32.mrf.mxu0
        %v1120 = vadd.f32 0.0, %v1119
        %v1121 = vpop.f32.mrf.mxu0
        %1122 = vmatprep.mubr.bf16.mxu0 0
        %1123 = vmatmul.mubr.bf16.gmra.mxu0 %v1047
        %v1124 = vpop.f32.mrf.mxu0
        %v1125 = vadd.f32 0.0, %v1124
        %v1126 = vpop.f32.mrf.mxu0
        %v1127 = vpop.f32.mrf.mxu0
        %v1128 = vadd.f32 0.0, %v1127
        %v1129 = vpop.f32.mrf.mxu0
        %1130 = vmatprep.mubr.bf16.mxu0 0
        %1131 = vmatmul.mubr.bf16.gmra.mxu0 %v1050
        %v1132 = vpop.f32.mrf.mxu0
        %v1133 = vadd.f32 0.0, %v1132
        %v1134 = vpop.f32.mrf.mxu0
        %v1135 = vpop.f32.mrf.mxu0
        %v1136 = vadd.f32 0.0, %v1135
        %v1137 = vpop.f32.mrf.mxu0
        %1138 = vmatprep.mubr.bf16.mxu0 0
        %1139 = vmatmul.mubr.bf16.gmra.mxu0 %v1053
        %v1140 = vpop.f32.mrf.mxu0
        %v1141 = vadd.f32 0.0, %v1140
        %v1142 = vpop.f32.mrf.mxu0
        %v1143 = vpop.f32.mrf.mxu0
        %v1144 = vadd.f32 0.0, %v1143
        %v1145 = vpop.f32.mrf.mxu0
        %1146 = vmatprep.mubr.bf16.mxu0 0
        %1147 = vmatmul.mubr.bf16.gmra.mxu0 %v1056
        %v1148 = vpop.f32.mrf.mxu0
        %v1149 = vadd.f32 0.0, %v1148
        %v1150 = vpop.f32.mrf.mxu0
        %v1151 = vpop.f32.mrf.mxu0
        %v1152 = vadd.f32 0.0, %v1151
        %v1153 = vpop.f32.mrf.mxu0
        %1154 = vdwg.mxu0
        %v1171 = vunpack.c.l.b16 %v869
        %v1172 = vunpack.c.l.b16 %v870
        %v1173 = vunpack.c.l.b16 %v871
        %v1174 = vunpack.c.l.b16 %v872
        %v1175 = vunpack.c.l.b16 %v873
        %v1176 = vunpack.c.l.b16 %v874
        %v1177 = vunpack.c.l.b16 %v875
        %v1178 = vunpack.c.l.b16 %v876
        %v1179 = vunpack.c.l.b16 %v877
        %v1180 = vunpack.c.l.b16 %v878
        %v1181 = vunpack.c.l.b16 %v879
        %v1182 = vunpack.c.l.b16 %v880
        %v1183 = vunpack.c.l.b16 %v881
        %v1184 = vunpack.c.l.b16 %v882
        %v1185 = vunpack.c.l.b16 %v883
        %v1186 = vunpack.c.l.b16 %v884
        %v1187 = vpack.c.b16 %v1172, %v1171
        %v1188 = vpack.c.b16 %v1174, %v1173
        %v1189 = vpack.c.b16 %v1176, %v1175
        %v1190 = vpack.c.b16 %v1178, %v1177
        %v1191 = vpack.c.b16 %v1180, %v1179
        %v1192 = vpack.c.b16 %v1182, %v1181
        %v1193 = vpack.c.b16 %v1184, %v1183
        %v1194 = vpack.c.b16 %v1186, %v1185
        %v1199 = vunpack.c.l.b16 %v974
        %v1200 = vunpack.c.l.b16 %v975
        %v1201 = vunpack.c.l.b16 %v976
        %v1202 = vunpack.c.l.b16 %v977
        %v1203 = vpack.c.b16 %v1200, %v1199
        %v1204 = vpack.c.b16 %v1202, %v1201
        %v1208 = vsel %vm929, %v1187, 0
        %v1211 = vsel %vm929, %v1188, 0
        %v1214 = vsel %vm929, %v1189, 0
        %v1217 = vsel %vm929, %v1190, 0
        %v1220 = vsel %vm929, %v1191, 0
        %v1223 = vsel %vm929, %v1192, 0
        %v1226 = vsel %vm929, %v1193, 0
        %v1229 = vsel %vm929, %v1194, 0
        %1231 = vmatprep.subr.bf16.mxu0 0
        %1232 = vmatpush1.bf16.msra.mxu0 0
        %1233 = vmatprep.subr.bf16.mxu0 0
        %1234 = vmatpush1.bf16.msra.mxu0 0
        %1235 = vmatprep.subr.bf16.mxu0 0
        %1236 = vmatpush1.bf16.msra.mxu0 0
        %1237 = vmatprep.subr.bf16.mxu0 0
        %1238 = vmatpush1.bf16.msra.mxu0 0
        %1239 = vmatprep.subr.bf16.mxu0 0
        %1240 = vmatpush1.bf16.msra.mxu0 0
        %1241 = vmatprep.subr.bf16.mxu0 0
        %1242 = vmatpush1.bf16.msra.mxu0 0
        %1243 = vmatprep.subr.bf16.mxu0 0
        %1244 = vmatpush1.bf16.msra.mxu0 %v1204
        %1245 = vmatprep.subr.bf16.mxu0 0
        %1246 = vmatpush1.bf16.msra.mxu0 %v1203
        %1247 = vmatprep.subr.bf16.mxu0 0
        %1248 = vmatpush2.bf16.msra.mxu0 0
        %1249 = vmatprep.subr.bf16.mxu0 0
        %1250 = vmatpush2.bf16.msra.mxu0 0
        %1251 = vmatprep.subr.bf16.mxu0 0
        %1252 = vmatpush2.bf16.msra.mxu0 0
        %1253 = vmatprep.subr.bf16.mxu0 0
        %1254 = vmatpush2.bf16.msra.mxu0 0
        %1255 = vmatprep.subr.bf16.mxu0 0
        %1256 = vmatpush2.bf16.msra.mxu0 0
        %1257 = vmatprep.subr.bf16.mxu0 0
        %1258 = vmatpush2.bf16.msra.mxu0 0
        %1259 = vmatprep.subr.bf16.mxu0 0
        %1260 = vmatpush2.bf16.msra.mxu0 0
        %1261 = vmatprep.subr.bf16.mxu0 0
        %1262 = vmatpush2.bf16.msra.mxu0 0
        %1263 = vmatprep.mubr.bf16.mxu0 0
        %1264 = vmatmul.mubr.bf16.gmra.mxu0 %v1208
        %v1265 = vpop.f32.mrf.mxu0
        %v1266 = vadd.f32 %v1093, %v1265
        %v1267 = vpop.f32.mrf.mxu0
        %v1268 = vpop.f32.mrf.mxu0
        %v1269 = vadd.f32 %v1096, %v1268
        %v1270 = vpop.f32.mrf.mxu0
        %1271 = vmatprep.mubr.bf16.mxu0 0
        %1272 = vmatmul.mubr.bf16.gmra.mxu0 %v1211
        %v1273 = vpop.f32.mrf.mxu0
        %v1274 = vadd.f32 %v1101, %v1273
        %v1275 = vpop.f32.mrf.mxu0
        %v1276 = vpop.f32.mrf.mxu0
        %v1277 = vadd.f32 %v1104, %v1276
        %v1278 = vpop.f32.mrf.mxu0
        %1279 = vmatprep.mubr.bf16.mxu0 0
        %1280 = vmatmul.mubr.bf16.gmra.mxu0 %v1214
        %v1281 = vpop.f32.mrf.mxu0
        %v1282 = vadd.f32 %v1109, %v1281
        %v1283 = vpop.f32.mrf.mxu0
        %v1284 = vpop.f32.mrf.mxu0
        %v1285 = vadd.f32 %v1112, %v1284
        %v1286 = vpop.f32.mrf.mxu0
        %1287 = vmatprep.mubr.bf16.mxu0 0
        %1288 = vmatmul.mubr.bf16.gmra.mxu0 %v1217
        %v1289 = vpop.f32.mrf.mxu0
        %v1290 = vadd.f32 %v1117, %v1289
        %v1291 = vpop.f32.mrf.mxu0
        %v1292 = vpop.f32.mrf.mxu0
        %v1293 = vadd.f32 %v1120, %v1292
        %v1294 = vpop.f32.mrf.mxu0
        %1295 = vmatprep.mubr.bf16.mxu0 0
        %1296 = vmatmul.mubr.bf16.gmra.mxu0 %v1220
        %v1297 = vpop.f32.mrf.mxu0
        %v1298 = vadd.f32 %v1125, %v1297
        %v1299 = vpop.f32.mrf.mxu0
        %v1300 = vpop.f32.mrf.mxu0
        %v1301 = vadd.f32 %v1128, %v1300
        %v1302 = vpop.f32.mrf.mxu0
        %1303 = vmatprep.mubr.bf16.mxu0 0
        %1304 = vmatmul.mubr.bf16.gmra.mxu0 %v1223
        %v1305 = vpop.f32.mrf.mxu0
        %v1306 = vadd.f32 %v1133, %v1305
        %v1307 = vpop.f32.mrf.mxu0
        %v1308 = vpop.f32.mrf.mxu0
        %v1309 = vadd.f32 %v1136, %v1308
        %v1310 = vpop.f32.mrf.mxu0
        %1311 = vmatprep.mubr.bf16.mxu0 0
        %1312 = vmatmul.mubr.bf16.gmra.mxu0 %v1226
        %v1313 = vpop.f32.mrf.mxu0
        %v1314 = vadd.f32 %v1141, %v1313
        %v1315 = vpop.f32.mrf.mxu0
        %v1316 = vpop.f32.mrf.mxu0
        %v1317 = vadd.f32 %v1144, %v1316
        %v1318 = vpop.f32.mrf.mxu0
        %1319 = vmatprep.mubr.bf16.mxu0 0
        %1320 = vmatmul.mubr.bf16.gmra.mxu0 %v1229
        %v1321 = vpop.f32.mrf.mxu0
        %v1322 = vadd.f32 %v1149, %v1321
        %v1323 = vpop.f32.mrf.mxu0
        %v1324 = vpop.f32.mrf.mxu0
        %v1325 = vadd.f32 %v1152, %v1324
        %v1326 = vpop.f32.mrf.mxu0
        %1327 = vdwg.mxu0
        %v1330 = vcombine.high %v968, %v968
        %v1332 = vunpack.c.l.s4 1966171168
        %v1333 = vunpack.c.0.s8 %v1332
        %v1334 = vlaneseq
        %v1335 = vshrl.u32 %v1334, 7
        %v1336 = vsub.s32 %v1333, %v1335
        %v1337 = vrot.slane %v968, %v1336
        %v1339 = vunpack.c.l.s4 1966171168
        %v1340 = vunpack.c.0.s8 %v1339
        %v1341 = vlaneseq
        %v1342 = vshrl.u32 %v1341, 7
        %v1343 = vsub.s32 %v1340, %v1342
        %v1344 = vrot.slane %v1330, %v1343
        %v1345 = vcombine.high %v1337, %v1337
        %v1346 = vcombine.high %v1344, %v1344
        %v1348 = vunpack.c.l.s4 1966171168
        %v1349 = vunpack.c.0.s8 %v1348
        %v1350 = vlaneseq
        %v1351 = vshrl.u32 %v1350, 7
        %v1352 = vsub.s32 %v1349, %v1351
        %v1353 = vrot.slane %v1337, %v1352
        %v1355 = vunpack.c.l.s4 1966171168
        %v1356 = vunpack.c.0.s8 %v1355
        %v1357 = vlaneseq
        %v1358 = vshrl.u32 %v1357, 7
        %v1359 = vsub.s32 %v1356, %v1358
        %v1360 = vrot.slane %v1344, %v1359
        %v1362 = vunpack.c.l.s4 1966171168
        %v1363 = vunpack.c.0.s8 %v1362
        %v1364 = vlaneseq
        %v1365 = vshrl.u32 %v1364, 7
        %v1366 = vsub.s32 %v1363, %v1365
        %v1367 = vrot.slane %v1345, %v1366
        %v1369 = vunpack.c.l.s4 1966171168
        %v1370 = vunpack.c.0.s8 %v1369
        %v1371 = vlaneseq
        %v1372 = vshrl.u32 %v1371, 7
        %v1373 = vsub.s32 %v1370, %v1372
        %v1374 = vrot.slane %v1346, %v1373
        %v1375 = vcombine.high %v1353, %v1353
        %v1376 = vcombine.high %v1360, %v1360
        %v1377 = vcombine.high %v1367, %v1367
        %v1378 = vcombine.high %v1374, %v1374
        %v1379 = vcombine.high %v971, %v971
        %v1381 = vunpack.c.l.s4 1966171168
        %v1382 = vunpack.c.0.s8 %v1381
        %v1383 = vlaneseq
        %v1384 = vshrl.u32 %v1383, 7
        %v1385 = vsub.s32 %v1382, %v1384
        %v1386 = vrot.slane %v971, %v1385
        %v1388 = vunpack.c.l.s4 1966171168
        %v1389 = vunpack.c.0.s8 %v1388
        %v1390 = vlaneseq
        %v1391 = vshrl.u32 %v1390, 7
        %v1392 = vsub.s32 %v1389, %v1391
        %v1393 = vrot.slane %v1379, %v1392
        %v1394 = vcombine.high %v1386, %v1386
        %v1395 = vcombine.high %v1393, %v1393
        %v1397 = vunpack.c.l.s4 1966171168
        %v1398 = vunpack.c.0.s8 %v1397
        %v1399 = vlaneseq
        %v1400 = vshrl.u32 %v1399, 7
        %v1401 = vsub.s32 %v1398, %v1400
        %v1402 = vrot.slane %v1386, %v1401
        %v1404 = vunpack.c.l.s4 1966171168
        %v1405 = vunpack.c.0.s8 %v1404
        %v1406 = vlaneseq
        %v1407 = vshrl.u32 %v1406, 7
        %v1408 = vsub.s32 %v1405, %v1407
        %v1409 = vrot.slane %v1393, %v1408
        %v1411 = vunpack.c.l.s4 1966171168
        %v1412 = vunpack.c.0.s8 %v1411
        %v1413 = vlaneseq
        %v1414 = vshrl.u32 %v1413, 7
        %v1415 = vsub.s32 %v1412, %v1414
        %v1416 = vrot.slane %v1394, %v1415
        %v1418 = vunpack.c.l.s4 1966171168
        %v1419 = vunpack.c.0.s8 %v1418
        %v1420 = vlaneseq
        %v1421 = vshrl.u32 %v1420, 7
        %v1422 = vsub.s32 %v1419, %v1421
        %v1423 = vrot.slane %v1395, %v1422
        %v1424 = vcombine.high %v1402, %v1402
        %v1425 = vcombine.high %v1409, %v1409
        %v1426 = vcombine.high %v1416, %v1416
        %v1427 = vcombine.high %v1423, %v1423
        %v1428 = vlaneseq
        %v1429 = vshrl.u32 %v1428, 7
        %v1430 = vsub.s32 0, %v1429
        %v1431 = vrot.slane %v1353, %v1430
        %v1432 = vlaneseq
        %v1433 = vshrl.u32 %v1432, 7
        %v1434 = vsub.s32 0, %v1433
        %v1435 = vrot.slane %v1367, %v1434
        %v1436 = vlaneseq
        %v1437 = vshrl.u32 %v1436, 7
        %v1438 = vsub.s32 0, %v1437
        %v1439 = vrot.slane %v1375, %v1438
        %v1440 = vlaneseq
        %v1441 = vshrl.u32 %v1440, 7
        %v1442 = vsub.s32 0, %v1441
        %v1443 = vrot.slane %v1377, %v1442
        %v1444 = vlaneseq
        %v1445 = vshrl.u32 %v1444, 7
        %v1446 = vsub.s32 0, %v1445
        %v1447 = vrot.slane %v1360, %v1446
        %v1448 = vlaneseq
        %v1449 = vshrl.u32 %v1448, 7
        %v1450 = vsub.s32 0, %v1449
        %v1451 = vrot.slane %v1374, %v1450
        %v1452 = vlaneseq
        %v1453 = vshrl.u32 %v1452, 7
        %v1454 = vsub.s32 0, %v1453
        %v1455 = vrot.slane %v1376, %v1454
        %v1456 = vlaneseq
        %v1457 = vshrl.u32 %v1456, 7
        %v1458 = vsub.s32 0, %v1457
        %v1459 = vrot.slane %v1378, %v1458
        %v1460 = vlaneseq
        %v1461 = vshrl.u32 %v1460, 7
        %v1462 = vsub.s32 0, %v1461
        %v1463 = vrot.slane %v1402, %v1462
        %v1464 = vlaneseq
        %v1465 = vshrl.u32 %v1464, 7
        %v1466 = vsub.s32 0, %v1465
        %v1467 = vrot.slane %v1416, %v1466
        %v1468 = vlaneseq
        %v1469 = vshrl.u32 %v1468, 7
        %v1470 = vsub.s32 0, %v1469
        %v1471 = vrot.slane %v1424, %v1470
        %v1472 = vlaneseq
        %v1473 = vshrl.u32 %v1472, 7
        %v1474 = vsub.s32 0, %v1473
        %v1475 = vrot.slane %v1426, %v1474
        %v1476 = vlaneseq
        %v1477 = vshrl.u32 %v1476, 7
        %v1478 = vsub.s32 0, %v1477
        %v1479 = vrot.slane %v1409, %v1478
        %v1480 = vlaneseq
        %v1481 = vshrl.u32 %v1480, 7
        %v1482 = vsub.s32 0, %v1481
        %v1483 = vrot.slane %v1423, %v1482
        %v1484 = vlaneseq
        %v1485 = vshrl.u32 %v1484, 7
        %v1486 = vsub.s32 0, %v1485
        %v1487 = vrot.slane %v1425, %v1486
        %v1488 = vlaneseq
        %v1489 = vshrl.u32 %v1488, 7
        %v1490 = vsub.s32 0, %v1489
        %v1491 = vrot.slane %v1427, %v1490
        %v1508 = vadd.f32 %v1266, %v1431
        %v1509 = vadd.f32 %v1269, %v1435
        %v1510 = vadd.f32 %v1274, %v1439
        %v1511 = vadd.f32 %v1277, %v1443
        %v1512 = vadd.f32 %v1282, %v1447
        %v1513 = vadd.f32 %v1285, %v1451
        %v1514 = vadd.f32 %v1290, %v1455
        %v1515 = vadd.f32 %v1293, %v1459
        %v1516 = vadd.f32 %v1298, %v1463
        %v1517 = vadd.f32 %v1301, %v1467
        %v1518 = vadd.f32 %v1306, %v1471
        %v1519 = vadd.f32 %v1309, %v1475
        %v1520 = vadd.f32 %v1314, %v1479
        %v1521 = vadd.f32 %v1317, %v1483
        %v1522 = vadd.f32 %v1322, %v1487
        %v1523 = vadd.f32 %v1325, %v1491
        %v1524 = vmul.f32 %v1508, %v1508
        %v1525 = vmul.f32 %v1509, %v1509
        %v1526 = vmul.f32 %v1510, %v1510
        %v1527 = vmul.f32 %v1511, %v1511
        %v1528 = vmul.f32 %v1512, %v1512
        %v1529 = vmul.f32 %v1513, %v1513
        %v1530 = vmul.f32 %v1514, %v1514
        %v1531 = vmul.f32 %v1515, %v1515
        %v1532 = vmul.f32 %v1516, %v1516
        %v1533 = vmul.f32 %v1517, %v1517
        %v1534 = vmul.f32 %v1518, %v1518
        %v1535 = vmul.f32 %v1519, %v1519
        %v1536 = vmul.f32 %v1520, %v1520
        %v1537 = vmul.f32 %v1521, %v1521
        %v1538 = vmul.f32 %v1522, %v1522
        %v1539 = vmul.f32 %v1523, %v1523
        %v1540 = vmul.f32 %v1508, %v1524
        %v1541 = vmul.f32 %v1509, %v1525
        %v1542 = vmul.f32 %v1510, %v1526
        %v1543 = vmul.f32 %v1511, %v1527
        %v1544 = vmul.f32 %v1512, %v1528
        %v1545 = vmul.f32 %v1513, %v1529
        %v1546 = vmul.f32 %v1514, %v1530
        %v1547 = vmul.f32 %v1515, %v1531
        %v1548 = vmul.f32 %v1516, %v1532
        %v1549 = vmul.f32 %v1517, %v1533
        %v1550 = vmul.f32 %v1518, %v1534
        %v1551 = vmul.f32 %v1519, %v1535
        %v1552 = vmul.f32 %v1520, %v1536
        %v1553 = vmul.f32 %v1521, %v1537
        %v1554 = vmul.f32 %v1522, %v1538
        %v1555 = vmul.f32 %v1523, %v1539
        %v1556 = vmul.f32 %v1540, 0.044715
        %v1557 = vmul.f32 %v1541, 0.044715
        %v1558 = vmul.f32 %v1542, 0.044715
        %v1559 = vmul.f32 %v1543, 0.044715
        %v1560 = vmul.f32 %v1544, 0.044715
        %v1561 = vmul.f32 %v1545, 0.044715
        %v1562 = vmul.f32 %v1546, 0.044715
        %v1563 = vmul.f32 %v1547, 0.044715
        %v1564 = vmul.f32 %v1548, 0.044715
        %v1565 = vmul.f32 %v1549, 0.044715
        %v1566 = vmul.f32 %v1550, 0.044715
        %v1567 = vmul.f32 %v1551, 0.044715
        %v1568 = vmul.f32 %v1552, 0.044715
        %v1569 = vmul.f32 %v1553, 0.044715
        %v1570 = vmul.f32 %v1554, 0.044715
        %v1571 = vmul.f32 %v1555, 0.044715
        %v1572 = vadd.f32 %v1508, %v1556
        %v1573 = vadd.f32 %v1509, %v1557
        %v1574 = vadd.f32 %v1510, %v1558
        %v1575 = vadd.f32 %v1511, %v1559
        %v1576 = vadd.f32 %v1512, %v1560
        %v1577 = vadd.f32 %v1513, %v1561
        %v1578 = vadd.f32 %v1514, %v1562
        %v1579 = vadd.f32 %v1515, %v1563
        %v1580 = vadd.f32 %v1516, %v1564
        %v1581 = vadd.f32 %v1517, %v1565
        %v1582 = vadd.f32 %v1518, %v1566
        %v1583 = vadd.f32 %v1519, %v1567
        %v1584 = vadd.f32 %v1520, %v1568
        %v1585 = vadd.f32 %v1521, %v1569
        %v1586 = vadd.f32 %v1522, %v1570
        %v1587 = vadd.f32 %v1523, %v1571
        %v1588 = vmul.f32 %v1572, 0.7978846
        %v1589 = vmul.f32 %v1573, 0.7978846
        %v1590 = vmul.f32 %v1574, 0.7978846
        %v1591 = vmul.f32 %v1575, 0.7978846
        %v1592 = vmul.f32 %v1576, 0.7978846
        %v1593 = vmul.f32 %v1577, 0.7978846
        %v1594 = vmul.f32 %v1578, 0.7978846
        %v1595 = vmul.f32 %v1579, 0.7978846
        %v1596 = vmul.f32 %v1580, 0.7978846
        %v1597 = vmul.f32 %v1581, 0.7978846
        %v1598 = vmul.f32 %v1582, 0.7978846
        %v1599 = vmul.f32 %v1583, 0.7978846
        %v1600 = vmul.f32 %v1584, 0.7978846
        %v1601 = vmul.f32 %v1585, 0.7978846
        %v1602 = vmul.f32 %v1586, 0.7978846
        %v1603 = vmul.f32 %v1587, 0.7978846
        %v1604 = vtanh.pop %v1588
        %v1605 = vtanh.pop %v1589
        %v1606 = vtanh.pop %v1590
        %v1607 = vtanh.pop %v1591
        %v1608 = vtanh.pop %v1592
        %v1609 = vtanh.pop %v1593
        %v1610 = vtanh.pop %v1594
        %v1611 = vtanh.pop %v1595
        %v1612 = vtanh.pop %v1596
        %v1613 = vtanh.pop %v1597
        %v1614 = vtanh.pop %v1598
        %v1615 = vtanh.pop %v1599
        %v1616 = vtanh.pop %v1600
        %v1617 = vtanh.pop %v1601
        %v1618 = vtanh.pop %v1602
        %v1619 = vtanh.pop %v1603
        %v1620 = vadd.f32 %v1604, 1.0
        %v1621 = vadd.f32 %v1605, 1.0
        %v1622 = vadd.f32 %v1606, 1.0
        %v1623 = vadd.f32 %v1607, 1.0
        %v1624 = vadd.f32 %v1608, 1.0
        %v1625 = vadd.f32 %v1609, 1.0
        %v1626 = vadd.f32 %v1610, 1.0
        %v1627 = vadd.f32 %v1611, 1.0
        %v1628 = vadd.f32 %v1612, 1.0
        %v1629 = vadd.f32 %v1613, 1.0
        %v1630 = vadd.f32 %v1614, 1.0
        %v1631 = vadd.f32 %v1615, 1.0
        %v1632 = vadd.f32 %v1616, 1.0
        %v1633 = vadd.f32 %v1617, 1.0
        %v1634 = vadd.f32 %v1618, 1.0
        %v1635 = vadd.f32 %v1619, 1.0
        %v1636 = vmul.f32 %v1620, 0.5
        %v1637 = vmul.f32 %v1621, 0.5
        %v1638 = vmul.f32 %v1622, 0.5
        %v1639 = vmul.f32 %v1623, 0.5
        %v1640 = vmul.f32 %v1624, 0.5
        %v1641 = vmul.f32 %v1625, 0.5
        %v1642 = vmul.f32 %v1626, 0.5
        %v1643 = vmul.f32 %v1627, 0.5
        %v1644 = vmul.f32 %v1628, 0.5
        %v1645 = vmul.f32 %v1629, 0.5
        %v1646 = vmul.f32 %v1630, 0.5
        %v1647 = vmul.f32 %v1631, 0.5
        %v1648 = vmul.f32 %v1632, 0.5
        %v1649 = vmul.f32 %v1633, 0.5
        %v1650 = vmul.f32 %v1634, 0.5
        %v1651 = vmul.f32 %v1635, 0.5
        %v1652 = vmul.f32 %v1508, %v1636
        %v1653 = vmul.f32 %v1509, %v1637
        %v1654 = vmul.f32 %v1510, %v1638
        %v1655 = vmul.f32 %v1511, %v1639
        %v1656 = vmul.f32 %v1512, %v1640
        %v1657 = vmul.f32 %v1513, %v1641
        %v1658 = vmul.f32 %v1514, %v1642
        %v1659 = vmul.f32 %v1515, %v1643
        %v1660 = vmul.f32 %v1516, %v1644
        %v1661 = vmul.f32 %v1517, %v1645
        %v1662 = vmul.f32 %v1518, %v1646
        %v1663 = vmul.f32 %v1519, %v1647
        %v1664 = vmul.f32 %v1520, %v1648
        %v1665 = vmul.f32 %v1521, %v1649
        %v1666 = vmul.f32 %v1522, %v1650
        %v1667 = vmul.f32 %v1523, %v1651
        %v1668 = vpack.c.bf16 %v1652, %v1652
        %v1669 = vpack.c.bf16 %v1653, %v1653
        %v1670 = vpack.c.bf16 %v1654, %v1654
        %v1671 = vpack.c.bf16 %v1655, %v1655
        %v1672 = vpack.c.bf16 %v1656, %v1656
        %v1673 = vpack.c.bf16 %v1657, %v1657
        %v1674 = vpack.c.bf16 %v1658, %v1658
        %v1675 = vpack.c.bf16 %v1659, %v1659
        %v1676 = vpack.c.bf16 %v1660, %v1660
        %v1677 = vpack.c.bf16 %v1661, %v1661
        %v1678 = vpack.c.bf16 %v1662, %v1662
        %v1679 = vpack.c.bf16 %v1663, %v1663
        %v1680 = vpack.c.bf16 %v1664, %v1664
        %v1681 = vpack.c.bf16 %v1665, %v1665
        %v1682 = vpack.c.bf16 %v1666, %v1666
        %v1683 = vpack.c.bf16 %v1667, %v1667
        %v1684 = vld [vmem:[%s8] sm:$0xf]
        %v1685 = vld [vmem:[%s8 + $0x4] sm:$0xf]
        %v1686 = vld [vmem:[%s8 + $0x8] sm:$0xf]
        %v1687 = vld [vmem:[%s8 + $0xc] sm:$0xf]
        %v1688 = vld [vmem:[#allocation7] sm:$0x1]
        %v1690 = vlaneseq
        %v1691 = vshrl.u32 %v1690, 7
        %v1692 = vsub.s32 0, %v1691
        %v1693 = vrot.slane %v1688, %v1692
        %v1711 = vunpack.c.l.b16 %v1668
        %v1712 = vunpack.c.l.b16 %v1669
        %v1713 = vunpack.c.l.b16 %v1670
        %v1714 = vunpack.c.l.b16 %v1671
        %v1715 = vunpack.c.l.b16 %v1672
        %v1716 = vunpack.c.l.b16 %v1673
        %v1717 = vunpack.c.l.b16 %v1674
        %v1718 = vunpack.c.l.b16 %v1675
        %v1719 = vunpack.c.l.b16 %v1676
        %v1720 = vunpack.c.l.b16 %v1677
        %v1721 = vunpack.c.l.b16 %v1678
        %v1722 = vunpack.c.l.b16 %v1679
        %v1723 = vunpack.c.l.b16 %v1680
        %v1724 = vunpack.c.l.b16 %v1681
        %v1725 = vunpack.c.l.b16 %v1682
        %v1726 = vunpack.c.l.b16 %v1683
        %v1727 = vpack.c.b16 %v1712, %v1711
        %v1728 = vpack.c.b16 %v1714, %v1713
        %v1729 = vpack.c.b16 %v1716, %v1715
        %v1730 = vpack.c.b16 %v1718, %v1717
        %v1731 = vpack.c.b16 %v1720, %v1719
        %v1732 = vpack.c.b16 %v1722, %v1721
        %v1733 = vpack.c.b16 %v1724, %v1723
        %v1734 = vpack.c.b16 %v1726, %v1725
        %v1739 = vunpack.c.l.b16 %v1684
        %v1740 = vunpack.c.l.b16 %v1685
        %v1741 = vunpack.c.l.b16 %v1686
        %v1742 = vunpack.c.l.b16 %v1687
        %v1743 = vpack.c.b16 %v1740, %v1739
        %v1744 = vpack.c.b16 %v1742, %v1741
        %v1748 = vsel %vm929, %v1727, 0
        %v1751 = vsel %vm929, %v1728, 0
        %v1754 = vsel %vm929, %v1729, 0
        %v1757 = vsel %vm929, %v1730, 0
        %v1760 = vsel %vm929, %v1731, 0
        %v1763 = vsel %vm929, %v1732, 0
        %v1766 = vsel %vm929, %v1733, 0
        %v1769 = vsel %vm929, %v1734, 0
        %1771 = vmatprep.subr.bf16.mxu0 0
        %1772 = vmatpush1.bf16.msra.mxu0 0
        %1773 = vmatprep.subr.bf16.mxu0 0
        %1774 = vmatpush1.bf16.msra.mxu0 0
        %1775 = vmatprep.subr.bf16.mxu0 0
        %1776 = vmatpush1.bf16.msra.mxu0 0
        %1777 = vmatprep.subr.bf16.mxu0 0
        %1778 = vmatpush1.bf16.msra.mxu0 0
        %1779 = vmatprep.subr.bf16.mxu0 0
        %1780 = vmatpush1.bf16.msra.mxu0 0
        %1781 = vmatprep.subr.bf16.mxu0 0
        %1782 = vmatpush1.bf16.msra.mxu0 0
        %1783 = vmatprep.subr.bf16.mxu0 0
        %1784 = vmatpush1.bf16.msra.mxu0 %v1744
        %1785 = vmatprep.subr.bf16.mxu0 0
        %1786 = vmatpush1.bf16.msra.mxu0 %v1743
        %1787 = vmatprep.subr.bf16.mxu0 0
        %1788 = vmatpush2.bf16.msra.mxu0 0
        %1789 = vmatprep.subr.bf16.mxu0 0
        %1790 = vmatpush2.bf16.msra.mxu0 0
        %1791 = vmatprep.subr.bf16.mxu0 0
        %1792 = vmatpush2.bf16.msra.mxu0 0
        %1793 = vmatprep.subr.bf16.mxu0 0
        %1794 = vmatpush2.bf16.msra.mxu0 0
        %1795 = vmatprep.subr.bf16.mxu0 0
        %1796 = vmatpush2.bf16.msra.mxu0 0
        %1797 = vmatprep.subr.bf16.mxu0 0
        %1798 = vmatpush2.bf16.msra.mxu0 0
        %1799 = vmatprep.subr.bf16.mxu0 0
        %1800 = vmatpush2.bf16.msra.mxu0 0
        %1801 = vmatprep.subr.bf16.mxu0 0
        %1802 = vmatpush2.bf16.msra.mxu0 0
        %1803 = vmatprep.mubr.bf16.mxu0 0
        %1804 = vmatmul.mubr.bf16.gmra.mxu0 %v1748
        %v1805 = vpop.f32.mrf.mxu0
        %v1806 = vadd.f32 %v1693, %v1805
        %v1807 = vpop.f32.mrf.mxu0
        %v1808 = vpop.f32.mrf.mxu0
        %v1809 = vadd.f32 %v1693, %v1808
        %v1810 = vpop.f32.mrf.mxu0
        %1811 = vmatprep.mubr.bf16.mxu0 0
        %1812 = vmatmul.mubr.bf16.gmra.mxu0 %v1751
        %v1813 = vpop.f32.mrf.mxu0
        %v1814 = vadd.f32 %v1693, %v1813
        %v1815 = vpop.f32.mrf.mxu0
        %v1816 = vpop.f32.mrf.mxu0
        %v1817 = vadd.f32 %v1693, %v1816
        %v1818 = vpop.f32.mrf.mxu0
        %1819 = vmatprep.mubr.bf16.mxu0 0
        %1820 = vmatmul.mubr.bf16.gmra.mxu0 %v1754
        %v1821 = vpop.f32.mrf.mxu0
        %v1822 = vadd.f32 %v1693, %v1821
        %v1823 = vpop.f32.mrf.mxu0
        %v1824 = vpop.f32.mrf.mxu0
        %v1825 = vadd.f32 %v1693, %v1824
        %v1826 = vpop.f32.mrf.mxu0
        %1827 = vmatprep.mubr.bf16.mxu0 0
        %1828 = vmatmul.mubr.bf16.gmra.mxu0 %v1757
        %v1829 = vpop.f32.mrf.mxu0
        %v1830 = vadd.f32 %v1693, %v1829
        %v1831 = vpop.f32.mrf.mxu0
        %v1832 = vpop.f32.mrf.mxu0
        %v1833 = vadd.f32 %v1693, %v1832
        %v1834 = vpop.f32.mrf.mxu0
        %1835 = vmatprep.mubr.bf16.mxu0 0
        %1836 = vmatmul.mubr.bf16.gmra.mxu0 %v1760
        %v1837 = vpop.f32.mrf.mxu0
        %v1838 = vadd.f32 %v1693, %v1837
        %v1839 = vpop.f32.mrf.mxu0
        %v1840 = vpop.f32.mrf.mxu0
        %v1841 = vadd.f32 %v1693, %v1840
        %v1842 = vpop.f32.mrf.mxu0
        %1843 = vmatprep.mubr.bf16.mxu0 0
        %1844 = vmatmul.mubr.bf16.gmra.mxu0 %v1763
        %v1845 = vpop.f32.mrf.mxu0
        %v1846 = vadd.f32 %v1693, %v1845
        %v1847 = vpop.f32.mrf.mxu0
        %v1848 = vpop.f32.mrf.mxu0
        %v1849 = vadd.f32 %v1693, %v1848
        %v1850 = vpop.f32.mrf.mxu0
        %1851 = vmatprep.mubr.bf16.mxu0 0
        %1852 = vmatmul.mubr.bf16.gmra.mxu0 %v1766
        %v1853 = vpop.f32.mrf.mxu0
        %v1854 = vadd.f32 %v1693, %v1853
        %v1855 = vpop.f32.mrf.mxu0
        %v1856 = vpop.f32.mrf.mxu0
        %v1857 = vadd.f32 %v1693, %v1856
        %v1858 = vpop.f32.mrf.mxu0
        %1859 = vmatprep.mubr.bf16.mxu0 0
        %1860 = vmatmul.mubr.bf16.gmra.mxu0 %v1769
        %v1861 = vpop.f32.mrf.mxu0
        %v1862 = vadd.f32 %v1693, %v1861
        %v1863 = vpop.f32.mrf.mxu0
        %v1864 = vpop.f32.mrf.mxu0
        %v1865 = vadd.f32 %v1693, %v1864
        %v1866 = vpop.f32.mrf.mxu0
        %1867 = vdwg.mxu0
        %v1868 = vmul.f32 %v1806, %v1806
        %v1869 = vmul.f32 %v1809, %v1809
        %v1870 = vmul.f32 %v1814, %v1814
        %v1871 = vmul.f32 %v1817, %v1817
        %v1872 = vmul.f32 %v1822, %v1822
        %v1873 = vmul.f32 %v1825, %v1825
        %v1874 = vmul.f32 %v1830, %v1830
        %v1875 = vmul.f32 %v1833, %v1833
        %v1876 = vmul.f32 %v1838, %v1838
        %v1877 = vmul.f32 %v1841, %v1841
        %v1878 = vmul.f32 %v1846, %v1846
        %v1879 = vmul.f32 %v1849, %v1849
        %v1880 = vmul.f32 %v1854, %v1854
        %v1881 = vmul.f32 %v1857, %v1857
        %v1882 = vmul.f32 %v1862, %v1862
        %v1883 = vmul.f32 %v1865, %v1865
        %v1884 = vmul.f32 %v1806, %v1868
        %v1885 = vmul.f32 %v1809, %v1869
        %v1886 = vmul.f32 %v1814, %v1870
        %v1887 = vmul.f32 %v1817, %v1871
        %v1888 = vmul.f32 %v1822, %v1872
        %v1889 = vmul.f32 %v1825, %v1873
        %v1890 = vmul.f32 %v1830, %v1874
        %v1891 = vmul.f32 %v1833, %v1875
        %v1892 = vmul.f32 %v1838, %v1876
        %v1893 = vmul.f32 %v1841, %v1877
        %v1894 = vmul.f32 %v1846, %v1878
        %v1895 = vmul.f32 %v1849, %v1879
        %v1896 = vmul.f32 %v1854, %v1880
        %v1897 = vmul.f32 %v1857, %v1881
        %v1898 = vmul.f32 %v1862, %v1882
        %v1899 = vmul.f32 %v1865, %v1883
        %v1900 = vmul.f32 %v1884, 0.044715
        %v1901 = vmul.f32 %v1885, 0.044715
        %v1902 = vmul.f32 %v1886, 0.044715
        %v1903 = vmul.f32 %v1887, 0.044715
        %v1904 = vmul.f32 %v1888, 0.044715
        %v1905 = vmul.f32 %v1889, 0.044715
        %v1906 = vmul.f32 %v1890, 0.044715
        %v1907 = vmul.f32 %v1891, 0.044715
        %v1908 = vmul.f32 %v1892, 0.044715
        %v1909 = vmul.f32 %v1893, 0.044715
        %v1910 = vmul.f32 %v1894, 0.044715
        %v1911 = vmul.f32 %v1895, 0.044715
        %v1912 = vmul.f32 %v1896, 0.044715
        %v1913 = vmul.f32 %v1897, 0.044715
        %v1914 = vmul.f32 %v1898, 0.044715
        %v1915 = vmul.f32 %v1899, 0.044715
        %v1916 = vadd.f32 %v1806, %v1900
        %v1917 = vadd.f32 %v1809, %v1901
        %v1918 = vadd.f32 %v1814, %v1902
        %v1919 = vadd.f32 %v1817, %v1903
        %v1920 = vadd.f32 %v1822, %v1904
        %v1921 = vadd.f32 %v1825, %v1905
        %v1922 = vadd.f32 %v1830, %v1906
        %v1923 = vadd.f32 %v1833, %v1907
        %v1924 = vadd.f32 %v1838, %v1908
        %v1925 = vadd.f32 %v1841, %v1909
        %v1926 = vadd.f32 %v1846, %v1910
        %v1927 = vadd.f32 %v1849, %v1911
        %v1928 = vadd.f32 %v1854, %v1912
        %v1929 = vadd.f32 %v1857, %v1913
        %v1930 = vadd.f32 %v1862, %v1914
        %v1931 = vadd.f32 %v1865, %v1915
        %v1932 = vmul.f32 %v1916, 0.7978846
        %v1933 = vmul.f32 %v1917, 0.7978846
        %v1934 = vmul.f32 %v1918, 0.7978846
        %v1935 = vmul.f32 %v1919, 0.7978846
        %v1936 = vmul.f32 %v1920, 0.7978846
        %v1937 = vmul.f32 %v1921, 0.7978846
        %v1938 = vmul.f32 %v1922, 0.7978846
        %v1939 = vmul.f32 %v1923, 0.7978846
        %v1940 = vmul.f32 %v1924, 0.7978846
        %v1941 = vmul.f32 %v1925, 0.7978846
        %v1942 = vmul.f32 %v1926, 0.7978846
        %v1943 = vmul.f32 %v1927, 0.7978846
        %v1944 = vmul.f32 %v1928, 0.7978846
        %v1945 = vmul.f32 %v1929, 0.7978846
        %v1946 = vmul.f32 %v1930, 0.7978846
        %v1947 = vmul.f32 %v1931, 0.7978846
        %v1948 = vtanh.pop %v1932
        %v1949 = vtanh.pop %v1933
        %v1950 = vtanh.pop %v1934
        %v1951 = vtanh.pop %v1935
        %v1952 = vtanh.pop %v1936
        %v1953 = vtanh.pop %v1937
        %v1954 = vtanh.pop %v1938
        %v1955 = vtanh.pop %v1939
        %v1956 = vtanh.pop %v1940
        %v1957 = vtanh.pop %v1941
        %v1958 = vtanh.pop %v1942
        %v1959 = vtanh.pop %v1943
        %v1960 = vtanh.pop %v1944
        %v1961 = vtanh.pop %v1945
        %v1962 = vtanh.pop %v1946
        %v1963 = vtanh.pop %v1947
        %v1964 = vadd.f32 %v1948, 1.0
        %v1965 = vadd.f32 %v1949, 1.0
        %v1966 = vadd.f32 %v1950, 1.0
        %v1967 = vadd.f32 %v1951, 1.0
        %v1968 = vadd.f32 %v1952, 1.0
        %v1969 = vadd.f32 %v1953, 1.0
        %v1970 = vadd.f32 %v1954, 1.0
        %v1971 = vadd.f32 %v1955, 1.0
        %v1972 = vadd.f32 %v1956, 1.0
        %v1973 = vadd.f32 %v1957, 1.0
        %v1974 = vadd.f32 %v1958, 1.0
        %v1975 = vadd.f32 %v1959, 1.0
        %v1976 = vadd.f32 %v1960, 1.0
        %v1977 = vadd.f32 %v1961, 1.0
        %v1978 = vadd.f32 %v1962, 1.0
        %v1979 = vadd.f32 %v1963, 1.0
        %v1980 = vmul.f32 %v1964, 0.5
        %v1981 = vmul.f32 %v1965, 0.5
        %v1982 = vmul.f32 %v1966, 0.5
        %v1983 = vmul.f32 %v1967, 0.5
        %v1984 = vmul.f32 %v1968, 0.5
        %v1985 = vmul.f32 %v1969, 0.5
        %v1986 = vmul.f32 %v1970, 0.5
        %v1987 = vmul.f32 %v1971, 0.5
        %v1988 = vmul.f32 %v1972, 0.5
        %v1989 = vmul.f32 %v1973, 0.5
        %v1990 = vmul.f32 %v1974, 0.5
        %v1991 = vmul.f32 %v1975, 0.5
        %v1992 = vmul.f32 %v1976, 0.5
        %v1993 = vmul.f32 %v1977, 0.5
        %v1994 = vmul.f32 %v1978, 0.5
        %v1995 = vmul.f32 %v1979, 0.5
        %v1996 = vmul.f32 %v1806, %v1980
        %v1997 = vmul.f32 %v1809, %v1981
        %v1998 = vmul.f32 %v1814, %v1982
        %v1999 = vmul.f32 %v1817, %v1983
        %v2000 = vmul.f32 %v1822, %v1984
        %v2001 = vmul.f32 %v1825, %v1985
        %v2002 = vmul.f32 %v1830, %v1986
        %v2003 = vmul.f32 %v1833, %v1987
        %v2004 = vmul.f32 %v1838, %v1988
        %v2005 = vmul.f32 %v1841, %v1989
        %v2006 = vmul.f32 %v1846, %v1990
        %v2007 = vmul.f32 %v1849, %v1991
        %v2008 = vmul.f32 %v1854, %v1992
        %v2009 = vmul.f32 %v1857, %v1993
        %v2010 = vmul.f32 %v1862, %v1994
        %v2011 = vmul.f32 %v1865, %v1995
        %v2012 = vlaneseq
        %v2013 = vshrl.u32 %v2012, 7
        %v2014 = vsub.s32 0, %v2013
        %v2015 = vrot.slane %v901, %v2014
        %2017 = vbcast.lane.b32.xlu0 %v2015, 256
        %v2018 = vpop.permute.xlu0 %2017
        %v2019 = vlaneseq
        %v2020 = vshrl.u32 %v2019, 7
        %v2021 = vsub.s32 1, %v2020
        %v2022 = vrot.slane %v901, %v2021
        %2024 = vbcast.lane.b32.xlu0 %v2022, 256
        %v2025 = vpop.permute.xlu0 %2024
        %v2026 = vlaneseq
        %v2027 = vshrl.u32 %v2026, 7
        %v2028 = vsub.s32 2, %v2027
        %v2029 = vrot.slane %v901, %v2028
        %2031 = vbcast.lane.b32.xlu0 %v2029, 256
        %v2032 = vpop.permute.xlu0 %2031
        %v2033 = vlaneseq
        %v2034 = vshrl.u32 %v2033, 7
        %v2035 = vsub.s32 3, %v2034
        %v2036 = vrot.slane %v901, %v2035
        %2038 = vbcast.lane.b32.xlu0 %v2036, 256
        %v2039 = vpop.permute.xlu0 %2038
        %v2040 = vlaneseq
        %v2041 = vshrl.u32 %v2040, 7
        %v2042 = vsub.s32 4, %v2041
        %v2043 = vrot.slane %v901, %v2042
        %2045 = vbcast.lane.b32.xlu0 %v2043, 256
        %v2046 = vpop.permute.xlu0 %2045
        %v2047 = vlaneseq
        %v2048 = vshrl.u32 %v2047, 7
        %v2049 = vsub.s32 5, %v2048
        %v2050 = vrot.slane %v901, %v2049
        %2052 = vbcast.lane.b32.xlu0 %v2050, 256
        %v2053 = vpop.permute.xlu0 %2052
        %v2054 = vlaneseq
        %v2055 = vshrl.u32 %v2054, 7
        %v2056 = vsub.s32 6, %v2055
        %v2057 = vrot.slane %v901, %v2056
        %2059 = vbcast.lane.b32.xlu0 %v2057, 256
        %v2060 = vpop.permute.xlu0 %2059
        %v2061 = vlaneseq
        %v2062 = vshrl.u32 %v2061, 7
        %v2063 = vsub.s32 7, %v2062
        %v2064 = vrot.slane %v901, %v2063
        %2066 = vbcast.lane.b32.xlu0 %v2064, 256
        %v2067 = vpop.permute.xlu0 %2066
        %v2068 = vlaneseq
        %v2069 = vshrl.u32 %v2068, 7
        %v2070 = vsub.s32 0, %v2069
        %v2071 = vrot.slane %v902, %v2070
        %2073 = vbcast.lane.b32.xlu0 %v2071, 256
        %v2074 = vpop.permute.xlu0 %2073
        %v2075 = vlaneseq
        %v2076 = vshrl.u32 %v2075, 7
        %v2077 = vsub.s32 1, %v2076
        %v2078 = vrot.slane %v902, %v2077
        %2080 = vbcast.lane.b32.xlu0 %v2078, 256
        %v2081 = vpop.permute.xlu0 %2080
        %v2082 = vlaneseq
        %v2083 = vshrl.u32 %v2082, 7
        %v2084 = vsub.s32 2, %v2083
        %v2085 = vrot.slane %v902, %v2084
        %2087 = vbcast.lane.b32.xlu0 %v2085, 256
        %v2088 = vpop.permute.xlu0 %2087
        %v2089 = vlaneseq
        %v2090 = vshrl.u32 %v2089, 7
        %v2091 = vsub.s32 3, %v2090
        %v2092 = vrot.slane %v902, %v2091
        %2094 = vbcast.lane.b32.xlu0 %v2092, 256
        %v2095 = vpop.permute.xlu0 %2094
        %v2096 = vlaneseq
        %v2097 = vshrl.u32 %v2096, 7
        %v2098 = vsub.s32 4, %v2097
        %v2099 = vrot.slane %v902, %v2098
        %2101 = vbcast.lane.b32.xlu0 %v2099, 256
        %v2102 = vpop.permute.xlu0 %2101
        %v2103 = vlaneseq
        %v2104 = vshrl.u32 %v2103, 7
        %v2105 = vsub.s32 5, %v2104
        %v2106 = vrot.slane %v902, %v2105
        %2108 = vbcast.lane.b32.xlu0 %v2106, 256
        %v2109 = vpop.permute.xlu0 %2108
        %v2110 = vlaneseq
        %v2111 = vshrl.u32 %v2110, 7
        %v2112 = vsub.s32 6, %v2111
        %v2113 = vrot.slane %v902, %v2112
        %2115 = vbcast.lane.b32.xlu0 %v2113, 256
        %v2116 = vpop.permute.xlu0 %2115
        %v2117 = vlaneseq
        %v2118 = vshrl.u32 %v2117, 7
        %v2119 = vsub.s32 7, %v2118
        %v2120 = vrot.slane %v902, %v2119
        %2122 = vbcast.lane.b32.xlu0 %v2120, 256
        %v2123 = vpop.permute.xlu0 %2122
        %v2124 = vmul.f32 %v1996, %v2018
        %v2125 = vmul.f32 %v1997, %v2025
        %v2126 = vmul.f32 %v1998, %v2032
        %v2127 = vmul.f32 %v1999, %v2039
        %v2128 = vmul.f32 %v2000, %v2046
        %v2129 = vmul.f32 %v2001, %v2053
        %v2130 = vmul.f32 %v2002, %v2060
        %v2131 = vmul.f32 %v2003, %v2067
        %v2132 = vmul.f32 %v2004, %v2074
        %v2133 = vmul.f32 %v2005, %v2081
        %v2134 = vmul.f32 %v2006, %v2088
        %v2135 = vmul.f32 %v2007, %v2095
        %v2136 = vmul.f32 %v2008, %v2102
        %v2137 = vmul.f32 %v2009, %v2109
        %v2138 = vmul.f32 %v2010, %v2116
        %v2139 = vmul.f32 %v2011, %v2123
        %v2140 = vsel %vm929, %v2124, 0.0
        %v2141 = vrot.slane %v2140, 4
        %v2142 = vadd.f32 %v2140, %v2141
        %v2143 = vrot.slane %v2142, 2
        %v2144 = vadd.f32 %v2142, %v2143
        %v2145 = vrot.slane %v2144, 1
        %v2146 = vadd.f32 %v2144, %v2145
        %v2147 = vsel %vm929, %v2125, 0.0
        %v2148 = vrot.slane %v2147, 4
        %v2149 = vadd.f32 %v2147, %v2148
        %v2150 = vrot.slane %v2149, 2
        %v2151 = vadd.f32 %v2149, %v2150
        %v2152 = vrot.slane %v2151, 1
        %v2153 = vadd.f32 %v2151, %v2152
        %v2154 = vsel %vm929, %v2126, 0.0
        %v2155 = vrot.slane %v2154, 4
        %v2156 = vadd.f32 %v2154, %v2155
        %v2157 = vrot.slane %v2156, 2
        %v2158 = vadd.f32 %v2156, %v2157
        %v2159 = vrot.slane %v2158, 1
        %v2160 = vadd.f32 %v2158, %v2159
        %v2161 = vsel %vm929, %v2127, 0.0
        %v2162 = vrot.slane %v2161, 4
        %v2163 = vadd.f32 %v2161, %v2162
        %v2164 = vrot.slane %v2163, 2
        %v2165 = vadd.f32 %v2163, %v2164
        %v2166 = vrot.slane %v2165, 1
        %v2167 = vadd.f32 %v2165, %v2166
        %v2168 = vsel %vm929, %v2128, 0.0
        %v2169 = vrot.slane %v2168, 4
        %v2170 = vadd.f32 %v2168, %v2169
        %v2171 = vrot.slane %v2170, 2
        %v2172 = vadd.f32 %v2170, %v2171
        %v2173 = vrot.slane %v2172, 1
        %v2174 = vadd.f32 %v2172, %v2173
        %v2175 = vsel %vm929, %v2129, 0.0
        %v2176 = vrot.slane %v2175, 4
        %v2177 = vadd.f32 %v2175, %v2176
        %v2178 = vrot.slane %v2177, 2
        %v2179 = vadd.f32 %v2177, %v2178
        %v2180 = vrot.slane %v2179, 1
        %v2181 = vadd.f32 %v2179, %v2180
        %v2182 = vsel %vm929, %v2130, 0.0
        %v2183 = vrot.slane %v2182, 4
        %v2184 = vadd.f32 %v2182, %v2183
        %v2185 = vrot.slane %v2184, 2
        %v2186 = vadd.f32 %v2184, %v2185
        %v2187 = vrot.slane %v2186, 1
        %v2188 = vadd.f32 %v2186, %v2187
        %v2189 = vsel %vm929, %v2131, 0.0
        %v2190 = vrot.slane %v2189, 4
        %v2191 = vadd.f32 %v2189, %v2190
        %v2192 = vrot.slane %v2191, 2
        %v2193 = vadd.f32 %v2191, %v2192
        %v2194 = vrot.slane %v2193, 1
        %v2195 = vadd.f32 %v2193, %v2194
        %v2196 = vsel %vm929, %v2132, 0.0
        %v2197 = vrot.slane %v2196, 4
        %v2198 = vadd.f32 %v2196, %v2197
        %v2199 = vrot.slane %v2198, 2
        %v2200 = vadd.f32 %v2198, %v2199
        %v2201 = vrot.slane %v2200, 1
        %v2202 = vadd.f32 %v2200, %v2201
        %v2203 = vsel %vm929, %v2133, 0.0
        %v2204 = vrot.slane %v2203, 4
        %v2205 = vadd.f32 %v2203, %v2204
        %v2206 = vrot.slane %v2205, 2
        %v2207 = vadd.f32 %v2205, %v2206
        %v2208 = vrot.slane %v2207, 1
        %v2209 = vadd.f32 %v2207, %v2208
        %v2210 = vsel %vm929, %v2134, 0.0
        %v2211 = vrot.slane %v2210, 4
        %v2212 = vadd.f32 %v2210, %v2211
        %v2213 = vrot.slane %v2212, 2
        %v2214 = vadd.f32 %v2212, %v2213
        %v2215 = vrot.slane %v2214, 1
        %v2216 = vadd.f32 %v2214, %v2215
        %v2217 = vsel %vm929, %v2135, 0.0
        %v2218 = vrot.slane %v2217, 4
        %v2219 = vadd.f32 %v2217, %v2218
        %v2220 = vrot.slane %v2219, 2
        %v2221 = vadd.f32 %v2219, %v2220
        %v2222 = vrot.slane %v2221, 1
        %v2223 = vadd.f32 %v2221, %v2222
        %v2224 = vsel %vm929, %v2136, 0.0
        %v2225 = vrot.slane %v2224, 4
        %v2226 = vadd.f32 %v2224, %v2225
        %v2227 = vrot.slane %v2226, 2
        %v2228 = vadd.f32 %v2226, %v2227
        %v2229 = vrot.slane %v2228, 1
        %v2230 = vadd.f32 %v2228, %v2229
        %v2231 = vsel %vm929, %v2137, 0.0
        %v2232 = vrot.slane %v2231, 4
        %v2233 = vadd.f32 %v2231, %v2232
        %v2234 = vrot.slane %v2233, 2
        %v2235 = vadd.f32 %v2233, %v2234
        %v2236 = vrot.slane %v2235, 1
        %v2237 = vadd.f32 %v2235, %v2236
        %v2238 = vsel %vm929, %v2138, 0.0
        %v2239 = vrot.slane %v2238, 4
        %v2240 = vadd.f32 %v2238, %v2239
        %v2241 = vrot.slane %v2240, 2
        %v2242 = vadd.f32 %v2240, %v2241
        %v2243 = vrot.slane %v2242, 1
        %v2244 = vadd.f32 %v2242, %v2243
        %v2245 = vsel %vm929, %v2139, 0.0
        %v2246 = vrot.slane %v2245, 4
        %v2247 = vadd.f32 %v2245, %v2246
        %v2248 = vrot.slane %v2247, 2
        %v2249 = vadd.f32 %v2247, %v2248
        %v2250 = vrot.slane %v2249, 1
        %v2251 = vadd.f32 %v2249, %v2250
        %vm2252 = vcmask 64512
        %v2253 = vsel %vm2252, %v901, 0.0
        %2254 = vadd.xlane.f32.xlu0 %v2253
        %v2255 = vpop.xlane.xlu0 %2254
        %v2256 = vsel %vm2252, %v902, 0.0
        %2257 = vadd.xlane.f32.xlu0 %v2256
        %v2258 = vpop.xlane.xlu0 %2257
        %v2259 = vpack.c.bf16 %v2146, %v2146
        %v2260 = vpack.c.bf16 %v2153, %v2153
        %v2261 = vpack.c.bf16 %v2160, %v2160
        %v2262 = vpack.c.bf16 %v2167, %v2167
        %v2263 = vpack.c.bf16 %v2174, %v2174
        %v2264 = vpack.c.bf16 %v2181, %v2181
        %v2265 = vpack.c.bf16 %v2188, %v2188
        %v2266 = vpack.c.bf16 %v2195, %v2195
        %v2267 = vpack.c.bf16 %v2202, %v2202
        %v2268 = vpack.c.bf16 %v2209, %v2209
        %v2269 = vpack.c.bf16 %v2216, %v2216
        %v2270 = vpack.c.bf16 %v2223, %v2223
        %v2271 = vpack.c.bf16 %v2230, %v2230
        %v2272 = vpack.c.bf16 %v2237, %v2237
        %v2273 = vpack.c.bf16 %v2244, %v2244
        %v2274 = vpack.c.bf16 %v2251, %v2251
        %v2275 = vld [vmem:[#allocation8] sm:$0xf]
        %v2276 = vld [vmem:[#allocation8 + $0x4] sm:$0xf]
        %v2277 = vld [vmem:[#allocation8 + $0x8] sm:$0xf]
        %v2278 = vld [vmem:[#allocation8 + $0xc] sm:$0xf]
        %v2279 = vld [vmem:[%s11] sm:$0x1]
        %v2281 = vlaneseq
        %v2282 = vshrl.u32 %v2281, 7
        %v2283 = vsub.s32 0, %v2282
        %v2284 = vrot.slane %v2279, %v2283
        %v2286 = vmul.f32 %v2284, %v2255
        %v2287 = vmul.f32 %v2284, %v2258
        %v2304 = vunpack.c.l.b16 %v2259
        %v2305 = vunpack.c.l.b16 %v2260
        %v2306 = vunpack.c.l.b16 %v2261
        %v2307 = vunpack.c.l.b16 %v2262
        %v2308 = vunpack.c.l.b16 %v2263
        %v2309 = vunpack.c.l.b16 %v2264
        %v2310 = vunpack.c.l.b16 %v2265
        %v2311 = vunpack.c.l.b16 %v2266
        %v2312 = vunpack.c.l.b16 %v2267
        %v2313 = vunpack.c.l.b16 %v2268
        %v2314 = vunpack.c.l.b16 %v2269
        %v2315 = vunpack.c.l.b16 %v2270
        %v2316 = vunpack.c.l.b16 %v2271
        %v2317 = vunpack.c.l.b16 %v2272
        %v2318 = vunpack.c.l.b16 %v2273
        %v2319 = vunpack.c.l.b16 %v2274
        %vm2320 = vcmask 1041409
        %v2321 = vsel %vm2320, %v2305, %v2304
        %vm2322 = vcmask 1042434
        %v2323 = vsel %vm2322, %v2306, %v2321
        %vm2324 = vcmask 1043459
        %v2325 = vsel %vm2324, %v2307, %v2323
        %vm2326 = vcmask 1044484
        %v2327 = vsel %vm2326, %v2308, %v2325
        %vm2328 = vcmask 1045509
        %v2329 = vsel %vm2328, %v2309, %v2327
        %vm2330 = vcmask 1046534
        %v2331 = vsel %vm2330, %v2310, %v2329
        %vm2332 = vcmask 1047559
        %v2333 = vsel %vm2332, %v2311, %v2331
        %v2334 = vsel %vm2320, %v2313, %v2312
        %v2335 = vsel %vm2322, %v2314, %v2334
        %v2336 = vsel %vm2324, %v2315, %v2335
        %v2337 = vsel %vm2326, %v2316, %v2336
        %v2338 = vsel %vm2328, %v2317, %v2337
        %v2339 = vsel %vm2330, %v2318, %v2338
        %v2340 = vsel %vm2332, %v2319, %v2339
        %v2341 = vpack.c.b16 %v2340, %v2333
        %v2346 = vunpack.c.l.b16 %v2275
        %v2347 = vunpack.c.l.b16 %v2276
        %v2348 = vunpack.c.l.b16 %v2277
        %v2349 = vunpack.c.l.b16 %v2278
        %v2350 = vpack.c.b16 %v2347, %v2346
        %v2351 = vpack.c.b16 %v2349, %v2348
        %v2355 = vsel %vm929, %v2341, 0
        %2357 = vmatprep.subr.bf16.mxu0 0
        %2358 = vmatpush1.bf16.msra.mxu0 0
        %2359 = vmatprep.subr.bf16.mxu0 0
        %2360 = vmatpush1.bf16.msra.mxu0 0
        %2361 = vmatprep.subr.bf16.mxu0 0
        %2362 = vmatpush1.bf16.msra.mxu0 0
        %2363 = vmatprep.subr.bf16.mxu0 0
        %2364 = vmatpush1.bf16.msra.mxu0 0
        %2365 = vmatprep.subr.bf16.mxu0 0
        %2366 = vmatpush1.bf16.msra.mxu0 0
        %2367 = vmatprep.subr.bf16.mxu0 0
        %2368 = vmatpush1.bf16.msra.mxu0 0
        %2369 = vmatprep.subr.bf16.mxu0 0
        %2370 = vmatpush1.bf16.msra.mxu0 %v2351
        %2371 = vmatprep.subr.bf16.mxu0 0
        %2372 = vmatpush1.bf16.msra.mxu0 %v2350
        %2373 = vmatprep.subr.bf16.mxu0 0
        %2374 = vmatpush2.bf16.msra.mxu0 0
        %2375 = vmatprep.subr.bf16.mxu0 0
        %2376 = vmatpush2.bf16.msra.mxu0 0
        %2377 = vmatprep.subr.bf16.mxu0 0
        %2378 = vmatpush2.bf16.msra.mxu0 0
        %2379 = vmatprep.subr.bf16.mxu0 0
        %2380 = vmatpush2.bf16.msra.mxu0 0
        %2381 = vmatprep.subr.bf16.mxu0 0
        %2382 = vmatpush2.bf16.msra.mxu0 0
        %2383 = vmatprep.subr.bf16.mxu0 0
        %2384 = vmatpush2.bf16.msra.mxu0 0
        %2385 = vmatprep.subr.bf16.mxu0 0
        %2386 = vmatpush2.bf16.msra.mxu0 0
        %2387 = vmatprep.subr.bf16.mxu0 0
        %2388 = vmatpush2.bf16.msra.mxu0 0
        %2389 = vmatprep.mubr.bf16.mxu0 0
        %2390 = vmatmul.mubr.bf16.gmra.mxu0 %v2355
        %v2391 = vpop.f32.mrf.mxu0
        %v2392 = vadd.f32 %v2286, %v2391
        %v2393 = vpop.f32.mrf.mxu0
        %v2394 = vpop.f32.mrf.mxu0
        %v2395 = vadd.f32 %v2287, %v2394
        %v2396 = vpop.f32.mrf.mxu0
        %2397 = vdwg.mxu0
        %v2398 = vmul.f32 %v2392, 0.01
        %v2399 = vmul.f32 %v2395, 0.01
        %v2400 = vadd.f32 %v2398, %v867
        %v2401 = vadd.f32 %v2399, %v868
        %v2402 = vld [vmem:[%s12] sm:$0x1]
        %v2403 = vld [vmem:[%s13] sm:$0x1]
        %v2404 = vsel %vm929, %v2400, 0.0
        %2405 = vadd.xlane.f32.xlu0 %v2404
        %v2406 = vpop.xlane.xlu0 %2405
        %v2407 = vsel %vm929, %v2401, 0.0
        %2408 = vadd.xlane.f32.xlu0 %v2407
        %v2409 = vpop.xlane.xlu0 %2408
        %v2410 = vrcp.pop 32.0
        %v2411 = vmul.f32 %v2406, %v2410
        %v2412 = vmul.f32 %v2409, %v2410
        %v2413 = vsub.f32 %v2400, %v2411
        %v2414 = vsub.f32 %v2401, %v2412
        %v2415 = vmul.f32 %v2413, %v2413
        %v2416 = vmul.f32 %v2414, %v2414
        %v2417 = vsel %vm929, %v2415, 0.0
        %2418 = vadd.xlane.f32.xlu0 %v2417
        %v2419 = vpop.xlane.xlu0 %2418
        %v2420 = vsel %vm929, %v2416, 0.0
        %2421 = vadd.xlane.f32.xlu0 %v2420
        %v2422 = vpop.xlane.xlu0 %2421
        %v2423 = vmul.f32 %v2419, %v2410
        %v2424 = vmul.f32 %v2422, %v2410
        %v2425 = vadd.f32 %v2423, 1e-05
        %v2426 = vadd.f32 %v2424, 1e-05
        %v2427 = vrsqrt.pop %v2425
        %v2428 = vrsqrt.pop %v2426
        %v2429 = vmul.f32 %v2413, %v2427
        %v2430 = vmul.f32 %v2414, %v2428
        %v2432 = vlaneseq
        %v2433 = vshrl.u32 %v2432, 7
        %v2434 = vsub.s32 0, %v2433
        %v2435 = vrot.slane %v2402, %v2434
        %v2437 = vmul.f32 %v2429, %v2435
        %v2438 = vmul.f32 %v2430, %v2435
        %v2440 = vlaneseq
        %v2441 = vshrl.u32 %v2440, 7
        %v2442 = vsub.s32 0, %v2441
        %v2443 = vrot.slane %v2403, %v2442
        %v2445 = vadd.f32 %v2437, %v2443
        %v2446 = vadd.f32 %v2438, %v2443
        %v2447 = vpack.c.bf16 %v2446, %v2445
        %v2448 = vld [vmem:[#allocation10] sm:$0xf]
        %v2449 = vld [vmem:[#allocation10 + $0x4] sm:$0xf]
        %v2450 = vld [vmem:[#allocation10 + $0x8] sm:$0xf]
        %v2451 = vld [vmem:[#allocation10 + $0xc] sm:$0xf]
        %v2452 = vld [vmem:[%s15] sm:$0x1]
        %v2454 = vlaneseq
        %v2455 = vshrl.u32 %v2454, 7
        %v2456 = vsub.s32 0, %v2455
        %v2457 = vrot.slane %v2452, %v2456
        %v2463 = vunpack.c.l.b16 %v2448
        %v2464 = vunpack.c.l.b16 %v2449
        %v2465 = vunpack.c.l.b16 %v2450
        %v2466 = vunpack.c.l.b16 %v2451
        %v2467 = vpack.c.b16 %v2464, %v2463
        %v2468 = vpack.c.b16 %v2466, %v2465
        %v2472 = vsel %vm929, %v2447, 0
        %2474 = vmatprep.subr.bf16.mxu0 0
        %2475 = vmatpush1.bf16.msra.mxu0 0
        %2476 = vmatprep.subr.bf16.mxu0 0
        %2477 = vmatpush1.bf16.msra.mxu0 0
        %2478 = vmatprep.subr.bf16.mxu0 0
        %2479 = vmatpush1.bf16.msra.mxu0 0
        %2480 = vmatprep.subr.bf16.mxu0 0
        %2481 = vmatpush1.bf16.msra.mxu0 0
        %2482 = vmatprep.subr.bf16.mxu0 0
        %2483 = vmatpush1.bf16.msra.mxu0 0
        %2484 = vmatprep.subr.bf16.mxu0 0
        %2485 = vmatpush1.bf16.msra.mxu0 0
        %2486 = vmatprep.subr.bf16.mxu0 0
        %2487 = vmatpush1.bf16.msra.mxu0 %v2468
        %2488 = vmatprep.subr.bf16.mxu0 0
        %2489 = vmatpush1.bf16.msra.mxu0 %v2467
        %2490 = vmatprep.subr.bf16.mxu0 0
        %2491 = vmatpush2.bf16.msra.mxu0 0
        %2492 = vmatprep.subr.bf16.mxu0 0
        %2493 = vmatpush2.bf16.msra.mxu0 0
        %2494 = vmatprep.subr.bf16.mxu0 0
        %2495 = vmatpush2.bf16.msra.mxu0 0
        %2496 = vmatprep.subr.bf16.mxu0 0
        %2497 = vmatpush2.bf16.msra.mxu0 0
        %2498 = vmatprep.subr.bf16.mxu0 0
        %2499 = vmatpush2.bf16.msra.mxu0 0
        %2500 = vmatprep.subr.bf16.mxu0 0
        %2501 = vmatpush2.bf16.msra.mxu0 0
        %2502 = vmatprep.subr.bf16.mxu0 0
        %2503 = vmatpush2.bf16.msra.mxu0 0
        %2504 = vmatprep.subr.bf16.mxu0 0
        %2505 = vmatpush2.bf16.msra.mxu0 0
        %2506 = vmatprep.mubr.bf16.mxu0 0
        %2507 = vmatmul.mubr.bf16.gmra.mxu0 %v2472
        %v2508 = vpop.f32.mrf.mxu0
        %v2509 = vadd.f32 %v2457, %v2508
        %v2510 = vpop.f32.mrf.mxu0
        %v2511 = vpop.f32.mrf.mxu0
        %v2512 = vadd.f32 %v2457, %v2511
        %v2513 = vpop.f32.mrf.mxu0
        %2514 = vdwg.mxu0
        %v2515 = vmul.f32 %v2509, %v2509
        %v2516 = vmul.f32 %v2512, %v2512
        %v2517 = vmul.f32 %v2509, %v2515
        %v2518 = vmul.f32 %v2512, %v2516
        %v2519 = vmul.f32 %v2517, 0.044715
        %v2520 = vmul.f32 %v2518, 0.044715
        %v2521 = vadd.f32 %v2509, %v2519
        %v2522 = vadd.f32 %v2512, %v2520
        %v2523 = vmul.f32 %v2521, 0.7978846
        %v2524 = vmul.f32 %v2522, 0.7978846
        %v2525 = vtanh.pop %v2523
        %v2526 = vtanh.pop %v2524
        %v2527 = vadd.f32 %v2525, 1.0
        %v2528 = vadd.f32 %v2526, 1.0
        %v2529 = vmul.f32 %v2527, 0.5
        %v2530 = vmul.f32 %v2528, 0.5
        %v2531 = vmul.f32 %v2509, %v2529
        %v2532 = vmul.f32 %v2512, %v2530
        %v2533 = vpack.c.bf16 %v2532, %v2531
        %v2534 = vld [vmem:[%s16] sm:$0xf]
        %v2535 = vld [vmem:[%s16 + $0x4] sm:$0xf]
        %v2536 = vld [vmem:[%s16 + $0x8] sm:$0xf]
        %v2537 = vld [vmem:[%s16 + $0xc] sm:$0xf]
        %v2538 = vld [vmem:[%s16 + $0x10] sm:$0xf]
        %v2539 = vld [vmem:[%s16 + $0x14] sm:$0xf]
        %v2540 = vld [vmem:[%s16 + $0x18] sm:$0xf]
        %v2541 = vld [vmem:[%s16 + $0x1c] sm:$0xf]
        %v2542 = vld [vmem:[%s16 + $0x20] sm:$0xf]
        %v2543 = vld [vmem:[%s16 + $0x24] sm:$0xf]
        %v2544 = vld [vmem:[%s16 + $0x28] sm:$0xf]
        %v2545 = vld [vmem:[%s16 + $0x2c] sm:$0xf]
        %v2546 = vld [vmem:[%s16 + $0x30] sm:$0xf]
        %v2547 = vld [vmem:[%s16 + $0x34] sm:$0xf]
        %v2548 = vld [vmem:[%s16 + $0x38] sm:$0xf]
        %v2549 = vld [vmem:[%s16 + $0x3c] sm:$0xf]
        %v2550 = vld [vmem:[%s17] sm:$0x1]
        %v2552 = vlaneseq
        %v2553 = vshrl.u32 %v2552, 7
        %v2554 = vsub.s32 0, %v2553
        %v2555 = vrot.slane %v2550, %v2554
        %v2573 = vunpack.c.l.b16 %v2534
        %v2574 = vunpack.c.l.b16 %v2535
        %v2575 = vunpack.c.l.b16 %v2536
        %v2576 = vunpack.c.l.b16 %v2537
        %v2577 = vunpack.c.l.b16 %v2538
        %v2578 = vunpack.c.l.b16 %v2539
        %v2579 = vunpack.c.l.b16 %v2540
        %v2580 = vunpack.c.l.b16 %v2541
        %v2581 = vunpack.c.l.b16 %v2542
        %v2582 = vunpack.c.l.b16 %v2543
        %v2583 = vunpack.c.l.b16 %v2544
        %v2584 = vunpack.c.l.b16 %v2545
        %v2585 = vunpack.c.l.b16 %v2546
        %v2586 = vunpack.c.l.b16 %v2547
        %v2587 = vunpack.c.l.b16 %v2548
        %v2588 = vunpack.c.l.b16 %v2549
        %v2589 = vpack.c.b16 %v2574, %v2573
        %v2590 = vpack.c.b16 %v2576, %v2575
        %v2591 = vpack.c.b16 %v2578, %v2577
        %v2592 = vpack.c.b16 %v2580, %v2579
        %v2593 = vpack.c.b16 %v2582, %v2581
        %v2594 = vpack.c.b16 %v2584, %v2583
        %v2595 = vpack.c.b16 %v2586, %v2585
        %v2596 = vpack.c.b16 %v2588, %v2587
        %2605 = vmatprep.subr.bf16.mxu0 0
        %2606 = vmatpush1.bf16.msra.mxu0 %v2596
        %2607 = vmatprep.subr.bf16.mxu0 0
        %2608 = vmatpush1.bf16.msra.mxu0 %v2595
        %2609 = vmatprep.subr.bf16.mxu0 0
        %2610 = vmatpush1.bf16.msra.mxu0 %v2594
        %2611 = vmatprep.subr.bf16.mxu0 0
        %2612 = vmatpush1.bf16.msra.mxu0 %v2593
        %2613 = vmatprep.subr.bf16.mxu0 0
        %2614 = vmatpush1.bf16.msra.mxu0 %v2592
        %2615 = vmatprep.subr.bf16.mxu0 0
        %2616 = vmatpush1.bf16.msra.mxu0 %v2591
        %2617 = vmatprep.subr.bf16.mxu0 0
        %2618 = vmatpush1.bf16.msra.mxu0 %v2590
        %2619 = vmatprep.subr.bf16.mxu0 0
        %2620 = vmatpush1.bf16.msra.mxu0 %v2589
        %2621 = vmatprep.subr.bf16.mxu0 0
        %2622 = vmatpush2.bf16.msra.mxu0 0
        %2623 = vmatprep.subr.bf16.mxu0 0
        %2624 = vmatpush2.bf16.msra.mxu0 0
        %2625 = vmatprep.subr.bf16.mxu0 0
        %2626 = vmatpush2.bf16.msra.mxu0 0
        %2627 = vmatprep.subr.bf16.mxu0 0
        %2628 = vmatpush2.bf16.msra.mxu0 0
        %2629 = vmatprep.subr.bf16.mxu0 0
        %2630 = vmatpush2.bf16.msra.mxu0 0
        %2631 = vmatprep.subr.bf16.mxu0 0
        %2632 = vmatpush2.bf16.msra.mxu0 0
        %2633 = vmatprep.subr.bf16.mxu0 0
        %2634 = vmatpush2.bf16.msra.mxu0 0
        %2635 = vmatprep.subr.bf16.mxu0 0
        %2636 = vmatpush2.bf16.msra.mxu0 0
        %2637 = vmatprep.mubr.bf16.mxu0 0
        %2638 = vmatmul.mubr.bf16.gmra.mxu0 %v2533
        %v2639 = vpop.f32.mrf.mxu0
        %v2640 = vadd.f32 %v2555, %v2639
        %v2641 = vpop.f32.mrf.mxu0
        %v2642 = vpop.f32.mrf.mxu0
        %v2643 = vadd.f32 %v2555, %v2642
        %v2644 = vpop.f32.mrf.mxu0
        %2645 = vdwg.mxu0
        %v2646 = vmul.f32 %v2640, 0.01
        %v2647 = vmul.f32 %v2643, 0.01
        %v2648 = vadd.f32 %v2646, %v2445
        %v2649 = vadd.f32 %v2647, %v2446
        %v2650 = vld [vmem:[%s18] sm:$0x1]
        %v2651 = vld [vmem:[%s19] sm:$0x1]
        %v2652 = vsel %vm929, %v2648, 0.0
        %2653 = vadd.xlane.f32.xlu0 %v2652
        %v2654 = vpop.xlane.xlu0 %2653
        %v2655 = vsel %vm929, %v2649, 0.0
        %2656 = vadd.xlane.f32.xlu0 %v2655
        %v2657 = vpop.xlane.xlu0 %2656
        %v2658 = vmul.f32 %v2654, %v2410
        %v2659 = vmul.f32 %v2657, %v2410
        %v2660 = vsub.f32 %v2648, %v2658
        %v2661 = vsub.f32 %v2649, %v2659
        %v2662 = vmul.f32 %v2660, %v2660
        %v2663 = vmul.f32 %v2661, %v2661
        %v2664 = vsel %vm929, %v2662, 0.0
        %2665 = vadd.xlane.f32.xlu0 %v2664
        %v2666 = vpop.xlane.xlu0 %2665
        %v2667 = vsel %vm929, %v2663, 0.0
        %2668 = vadd.xlane.f32.xlu0 %v2667
        %v2669 = vpop.xlane.xlu0 %2668
        %v2670 = vmul.f32 %v2666, %v2410
        %v2671 = vmul.f32 %v2669, %v2410
        %v2672 = vadd.f32 %v2670, 1e-05
        %v2673 = vadd.f32 %v2671, 1e-05
        %v2674 = vrsqrt.pop %v2672
        %v2675 = vrsqrt.pop %v2673
        %v2676 = vmul.f32 %v2660, %v2674
        %v2677 = vmul.f32 %v2661, %v2675
        %v2679 = vlaneseq
        %v2680 = vshrl.u32 %v2679, 7
        %v2681 = vsub.s32 0, %v2680
        %v2682 = vrot.slane %v2650, %v2681
        %v2684 = vmul.f32 %v2676, %v2682
        %v2685 = vmul.f32 %v2677, %v2682
        %v2687 = vlaneseq
        %v2688 = vshrl.u32 %v2687, 7
        %v2689 = vsub.s32 0, %v2688
        %v2690 = vrot.slane %v2651, %v2689
        %v2692 = vadd.f32 %v2684, %v2690
        %v2693 = vadd.f32 %v2685, %v2690
        %2695 = vset.pattern.permute.xlu0 0
        %2696 = vperm.xlu0 %2695, %v903
        %v2697 = vpop.permute.xlu0 %2696
        %2700 = vset.pattern.permute.xlu0 0
        %2701 = vperm.xlu0 %2700, %v904
        %v2702 = vpop.permute.xlu0 %2701
        %v2704 = vmul.f32 %v2697, %v2692
        %v2705 = vmul.f32 %v2702, %v2693
        %2706 = vst.msk [vmem:[%s823] sm:$0xff] %vm929, %v2704
        %2707 = vst.msk [vmem:[%s823 + $0x8] sm:$0xff] %vm929, %v2705
        %s2708 = sand.u32 %s516, 1
        %s2709 = scalar_lea.sflag [#allocation4], %s2708
        %s2710 = sand.u32 %s516, 1
        %s2711 = smul.addr %s2710, 16
        %s2712 = scalar_lea.vmem [#allocation11], %s2711
        // Predicated region
        $region121: #{tpu_custom_call.1} parent=99 // pred_check
          %p2713 = pneg %p526
        $region122: #{tpu_custom_call.1} parent=99 // pred_check_branch
          %2715 = sbr.rel (%p2713) target = $region124
        $region123: #{tpu_custom_call.1} parent=99 // pred_region
          %s2716 = smul.u32 2, %s44
          %s2718 = ssub.s32 256, 256
          %2719 = vsyncadd %s2709, %s2718
          %s2720 = smul.addr %s43, 2
          %s2721 = sadd.s32 %s2716, %s2720
          %s2722 = smul.addr %s2721, 128
          %s2723 = scalar_lea.hbm %s20, %s2722
          %s2724 = sshll.u32 %s2712, 4
          %s2725 = int_to_ptr.vmem [resolvable:$true] %s2724
          %2730 = dma.vmem_to_hbm [thread:$0]  %s2725, 256, %s2723, %s2709, 128, 128, 8
        $region124: #{tpu_custom_call.1} parent=99 // pred_fallthru
          _
      $region100: #{tpu_custom_call.1} parent=5 // pred_fallthru
        _
      %p2731 = scmp.le.s32.totalorder 2, %s34
      // Predicated region
      $region125: #{tpu_custom_call.1} parent=5 // pred_check
        %p2732 = pneg %p2731
      $region126: #{tpu_custom_call.1} parent=5 // pred_check_branch
        %2734 = sbr.rel (%p2732) target = $region128
      $region127: #{tpu_custom_call.1} parent=5 // pred_region
        %s2735 = ssub.s32 %s34, 2
        // Predicated region
        $region129: #{tpu_custom_call.1} parent=127 // pred_check
          %p2736 = pneg %p532
        $region130: #{tpu_custom_call.1} parent=127 // pred_check_branch
          %2738 = sbr.rel (%p2736) target = $region132
        $region131: #{tpu_custom_call.1} parent=127 // pred_region
          %s2739 = sand.u32 %s517, 1
          %s2740 = scalar_lea.sflag [#allocation4], %s2739
          %s2741 = sand.u32 %s517, 1
          %s2742 = smul.addr %s2741, 16
          %s2743 = scalar_lea.vmem [#allocation11], %s2742
          %2744 = dma.done %s2740, 256
        $region132: #{tpu_custom_call.1} parent=127 // pred_fallthru
          _
      $region128: #{tpu_custom_call.1} parent=5 // pred_fallthru
        _
    $region6: #{tpu_custom_call.1} parent=1 // loop_footer
      %s38 = sadd.s32 1, %s34
    $region7: #{tpu_custom_call.1} parent=1 // loop_footer_branch
      %33 = sbr.rel target = $region3
    $region8: #{tpu_custom_call.1} parent=1 // loop_exit
      _
    %2745 = vsyncpa [#allocation3], 1
    %s2746 = scalar_lea.sflag [#allocation3], 1
    %2747 = vsyncpa %s2746, 1
    %2748 = vsyncpa [#allocation6], 1
    %2749 = vsyncpa [#allocation9], 1
    %2750 = vsyncpa [#allocation4], 1
    %s2751 = scalar_lea.sflag [#allocation4], 1
    %2752 = vsyncpa %s2751, 1

</llo_original>
